<compile_context>
chip_gen: v7x
topology: tpu7x:2x2x1
jax: 0.10.0
libtpu: 0.0.40
codegen_flags: <defaults>
</compile_context>

<pallas_src>
import math

import numpy as np

import jax
import jax.numpy as jnp
from jax import lax
from jax.experimental import pallas as pl
from jax.experimental.pallas import tpu as pltpu

# ---- problem sizes (small, consistent with the module) ----------------------
B = 2             # batch
S = 8             # seq_len
H = 32            # hidden_size
BS = B * S        # fused batch*seq rows
NUM_OPS = 6       # num_operations
NUM_HEADS = 4     # num_heads
HEAD_DIM = H // NUM_HEADS
MAX_DEPTH = 3     # max_recursive_depth
LN_EPS = 1e-5
OPS_H = NUM_OPS * H          # 192
XW_W = OPS_H + 2 * H         # 256  (fused x-side matmul width)

# ---- packed-parameter layout -------------------------------------------------
# matrix stack (NUM_MATS, H, H), stored bf16
(M_SEL_W2P, M_GATE_WB, M_OUT_W, M_WO_AGG, M_OP_B2P) = range(5)
NUM_MATS = 5

# vector-row stack (NUM_VEC_ROWS, H), stored f32
V_SEL_B1 = 0
V_SEL_B2P = 1                 # 6 real logits biases + (-1e30) pads
V_REC_BIAS = 2                # MAX_DEPTH rows: bo@agg_wa + depth_emb@agg_wb + agg_b
V_GATE_B = V_REC_BIAS + MAX_DEPTH
V_OUT_LNG = V_GATE_B + 1
V_OUT_LNB = V_OUT_LNG + 1
V_OUT_B = V_OUT_LNB + 1
NUM_VEC_ROWS = V_OUT_B + 1


# ---- in-kernel helpers --------------------------------------------------------
def _dot(a, b):
    # bf16 MXU operands, f32 accumulate.
    return jnp.dot(a.astype(jnp.bfloat16), b.astype(jnp.bfloat16),
                   preferred_element_type=jnp.float32)


def _gelu_tanh(x):
    c = math.sqrt(2.0 / math.pi)
    return 0.5 * x * (1.0 + jnp.tanh(c * (x + 0.044715 * x * x * x)))


def _softmax(x):
    m = jnp.max(x, axis=-1, keepdims=True)
    e = jnp.exp(x - m)
    return e * pl.reciprocal(jnp.sum(e, axis=-1, keepdims=True), approx=True)


# ---- Pallas kernel (single invocation, whole problem in VMEM) ----------------
def logical_reasoning_kernel(x_ref, mats_ref, w256_ref, w2s_ref, wpqkv_ref,
                             qkvb_ref, pool_ref, expand_ref, opln_ref,
                             vecs_ref, amask_ref, o_ref):
    x = x_ref[...]                                      # (BS, H) f32

    def vrow(i):                                        # (1, H) f32 bias row
        return vecs_ref[i:i + 1, :]

    # ---- fused x-side matmul: x @ [op_w1a_cat | sel_w1 | gate_wa] ----
    xw = _dot(x, w256_ref[...])                         # (BS, 256)
    t_all = xw[:, :OPS_H] + opln_ref[0:1, :]            # + precomputed op-emb bias
    sel_pre = xw[:, OPS_H:OPS_H + H] + vrow(V_SEL_B1)
    gate_x = xw[:, OPS_H + H:]                          # hoisted gate(x) term

    # ---- operation selector (padded-lane softmax; pad logits are -1e30) ----
    sel_h = _gelu_tanh(sel_pre)
    logits = _dot(sel_h, mats_ref[M_SEL_W2P]) + vrow(V_SEL_B2P)
    op_w = _softmax(logits)                             # (BS, H); cols >= NUM_OPS are 0

    # ---- logical ops: per-op LayerNorm via pooling / expansion matmuls ----
    mean = _dot(t_all, pool_ref[...])                   # (BS, H): per-op means
    msq = _dot(t_all * t_all, pool_ref[...])            # per-op mean of squares
    inv = lax.rsqrt(msq - mean * mean + LN_EPS)
    normed = (t_all - _dot(mean, expand_ref[...])) * _dot(inv, expand_ref[...])
    normed = normed * opln_ref[1:2, :] + opln_ref[2:3, :]     # LN gamma / beta (flat)
    scaled = _gelu_tanh(normed) * _dot(op_w, expand_ref[...]) # op-weighted, lane-dense
    enhanced = x + _dot(scaled, w2s_ref[...]) + _dot(op_w, mats_ref[M_OP_B2P])

    # ---- recursive reasoning (proj + QKV + out_proj + aggregator folded) ----
    amask = amask_ref[...]                              # (BS, BS) block-diag bias
    wo_agg = mats_ref[M_WO_AGG]                         # (H, H) bf16
    rec = enhanced
    for depth in range(MAX_DEPTH):
        qkv = _dot(rec, wpqkv_ref[...]) + qkvb_ref[...]          # (BS, 3H)
        q = qkv[:, 0:H]
        k = qkv[:, H:2 * H]
        v = qkv[:, 2 * H:3 * H]
        acc = None
        for h in range(NUM_HEADS):
            sl = slice(h * HEAD_DIM, (h + 1) * HEAD_DIM)
            s = lax.dot_general(q[:, sl].astype(jnp.bfloat16),
                                k[:, sl].astype(jnp.bfloat16),
                                (((1,), (1,)), ((), ())),
                                preferred_element_type=jnp.float32)
            p = _softmax(s + amask)                      # cross-batch masked out
            pv = _dot(p, v[:, sl])                       # (BS, HEAD_DIM)
            c = _dot(pv, wo_agg[sl, :])                  # (BS, H)  (wo@agg row-slice)
            acc = c if acc is None else acc + c
        rec = acc + vrow(V_REC_BIAS + depth)
        enhanced = enhanced + (0.5 ** (depth + 1)) * rec

    # ---- gating: sigmoid(x@Wa + enhanced@Wb + b) ----
    gate = jax.nn.sigmoid(gate_x + _dot(enhanced, mats_ref[M_GATE_WB]) + vrow(V_GATE_B))
    enhanced = x + gate * (enhanced - x)

    # ---- output layer: LayerNorm -> Linear (Dropout identity at eval) ----
    mu = jnp.mean(enhanced, axis=-1, keepdims=True)
    var = jnp.mean(jnp.square(enhanced - mu), axis=-1, keepdims=True)
    y = (enhanced - mu) * lax.rsqrt(var + LN_EPS) * vrow(V_OUT_LNG) + vrow(V_OUT_LNB)
    o_ref[...] = _dot(y, mats_ref[M_OUT_W]) + vrow(V_OUT_B)


def logical_reasoning_forward(x, packed):
    # Whole problem (<100 KiB) resides in VMEM: no grid, one invocation.
    x2d = x.reshape(BS, H)
    out2d = pl.pallas_call(
        logical_reasoning_kernel,
        out_shape=jax.ShapeDtypeStruct((BS, H), jnp.float32),
        compiler_params=pltpu.CompilerParams(vmem_limit_bytes=32 * 1024 * 1024),
    )(x2d, *packed)
    return out2d.reshape(B, S, H)


# ---- deterministic parameter construction ------------------------------------
def init_params(key):
    ks = iter(jax.random.split(key, 32))

    def nrm(shape, scale=0.05):
        return scale * jax.random.normal(next(ks), shape, dtype=jnp.float32)

    return dict(
        sel_w1=nrm((H, H)), sel_b1=nrm((H,)),
        sel_w2=nrm((H, NUM_OPS)), sel_b2=nrm((NUM_OPS,)),
        op_emb=nrm((NUM_OPS, H)),
        op_w1a=nrm((NUM_OPS, H, H)), op_w1b=nrm((NUM_OPS, H, H)), op_b1=nrm((NUM_OPS, H)),
        op_lng=jnp.ones((NUM_OPS, H), jnp.float32), op_lnb=jnp.zeros((NUM_OPS, H), jnp.float32),
        op_w2=nrm((NUM_OPS, H, H)), op_b2=nrm((NUM_OPS, H)),
        wq=nrm((H, H)), bq=nrm((H,)), wk=nrm((H, H)), bk=nrm((H,)),
        wv=nrm((H, H)), bv=nrm((H,)), wo=nrm((H, H)), bo=nrm((H,)),
        proj_w=nrm((H, H)), proj_b=nrm((H,)),
        agg_wa=nrm((H, H)), agg_wb=nrm((H, H)), agg_b=nrm((H,)),
        depth_emb=nrm((MAX_DEPTH, H)),
        gate_wa=nrm((H, H)), gate_wb=nrm((H, H)), gate_b=nrm((H,)),
        out_lng=jnp.ones((H,), jnp.float32), out_lnb=jnp.zeros((H,), jnp.float32),
        out_w=nrm((H, H)), out_b=nrm((H,)),
    )


def pack_params(p):
    """Host-side packing: precompute x-independent terms, fold weights, cast to bf16."""
    f32, bf16 = jnp.float32, jnp.bfloat16
    scale = 1.0 / math.sqrt(HEAD_DIM)

    # fused x-side weight: [op_w1a_cat (H,192) | sel_w1 (H,32) | gate_wa (H,32)]
    w1a_cat = jnp.transpose(p['op_w1a'], (1, 0, 2)).reshape(H, OPS_H)
    w256 = jnp.concatenate([w1a_cat, p['sel_w1'], p['gate_wa']], axis=1)       # (H, 256)

    # selector second linear, lane-padded; padded logits get a -1e30 bias
    sel_w2p = jnp.pad(p['sel_w2'], ((0, 0), (0, H - NUM_OPS)))
    sel_b2p = jnp.concatenate([p['sel_b2'], jnp.full((H - NUM_OPS,), -1e30, f32)])

    # logical-op second linear (stacked) + op output biases (zero pad rows)
    w2s = p['op_w2'].reshape(OPS_H, H)                                          # (192, H)
    op_b2p = jnp.concatenate([p['op_b2'], jnp.zeros((H - NUM_OPS, H), f32)], axis=0)

    # x-independent op-input bias + LN params, flattened to (1, 192) lane layout
    op_bias = jnp.einsum('oh,ohk->ok', p['op_emb'], p['op_w1b']) + p['op_b1']   # (6, H)
    opln = jnp.stack([op_bias.reshape(OPS_H),
                      p['op_lng'].reshape(OPS_H),
                      p['op_lnb'].reshape(OPS_H)], axis=0)                      # (3, 192)

    # block pooling / expansion matrices for the per-op LayerNorm statistics
    pool_np = np.zeros((OPS_H, H), np.float32)
    exp_np = np.zeros((H, OPS_H), np.float32)
    for op in range(NUM_OPS):
        pool_np[op * H:(op + 1) * H, op] = 1.0 / H
        exp_np[op, op * H:(op + 1) * H] = 1.0
    pool, expand = jnp.asarray(pool_np), jnp.asarray(exp_np)

    # recursive attention folds: proj -> QKV, scale -> Q, wo -> agg_wa
    wqkv = jnp.concatenate([p['wq'] * scale, p['wk'], p['wv']], axis=1)         # (H, 3H)
    bqkv = jnp.concatenate([p['bq'] * scale, p['bk'], p['bv']])
    wpqkv = p['proj_w'] @ wqkv                                                  # (H, 3H)
    qkvb = (p['proj_b'] @ wqkv + bqkv)[None, :]                                 # (1, 3H)
    wo_agg = p['wo'] @ p['agg_wa']                                              # (H, H)
    rec_bias = (p['depth_emb'] @ p['agg_wb'] + (p['bo'] @ p['agg_wa'])[None, :]
                + p['agg_b'][None, :])                                          # (MAX_DEPTH, H)

    mats = jnp.stack([sel_w2p, p['gate_wb'], p['out_w'], wo_agg, op_b2p])       # (5, H, H)

    vecs = jnp.concatenate([
        p['sel_b1'][None, :], sel_b2p[None, :], rec_bias,
        p['gate_b'][None, :], p['out_lng'][None, :], p['out_lnb'][None, :],
        p['out_b'][None, :]], axis=0)                                           # (9, H)
    assert vecs.shape == (NUM_VEC_ROWS, H)

    # block-diagonal attention bias: rows/cols in different sequences -> -1e30
    batch_id = np.repeat(np.arange(B), S)
    amask = jnp.asarray(
        np.where(batch_id[:, None] == batch_id[None, :], 0.0, -1e30), dtype=f32)

    # matmul weights pre-cast to bf16 (MXU-native); biases/LN params stay f32
    return (mats.astype(bf16), w256.astype(bf16), w2s.astype(bf16),
            wpqkv.astype(bf16), qkvb.astype(f32), pool.astype(bf16),
            expand.astype(bf16), opln.astype(f32), vecs.astype(f32), amask)


# ---- pure-JAX reference (unfused, straightforward translation of the module) --
def _ref_softmax(x):
    return jax.nn.softmax(x, axis=-1)


def _ref_layer_norm(x, g, b):
    mu = jnp.mean(x, axis=-1, keepdims=True)
    var = jnp.mean(jnp.square(x - mu), axis=-1, keepdims=True)
    return (x - mu) * jax.lax.rsqrt(var + LN_EPS) * g + b


def _ref_mha(xs, p):
    q = xs @ p['wq'] + p['bq']
    k = xs @ p['wk'] + p['bk']
    v = xs @ p['wv'] + p['bv']
    outs = []
    for h in range(NUM_HEADS):
        sl = slice(h * HEAD_DIM, (h + 1) * HEAD_DIM)
        s = (q[:, sl] @ k[:, sl].T) * (1.0 / math.sqrt(HEAD_DIM))
        outs.append(_ref_softmax(s) @ v[:, sl])
    return jnp.concatenate(outs, axis=-1) @ p['wo'] + p['bo']


def _reference_seq(x, p):
    gelu = lambda v: jax.nn.gelu(v, approximate=False)
    sel_h = gelu(x @ p['sel_w1'] + p['sel_b1'])
    op_w = _ref_softmax(sel_h @ p['sel_w2'] + p['sel_b2'])
    enhanced = x
    for op in range(NUM_OPS):
        emb = p['op_emb'][op][None, :]
        t = x @ p['op_w1a'][op] + emb @ p['op_w1b'][op] + p['op_b1'][op][None, :]
        t = _ref_layer_norm(t, p['op_lng'][op][None, :], p['op_lnb'][op][None, :])
        t = gelu(t)
        t = t @ p['op_w2'][op] + p['op_b2'][op][None, :]
        enhanced = enhanced + op_w[:, op:op + 1] * t
    rec = enhanced
    for depth in range(MAX_DEPTH):
        proj = rec @ p['proj_w'] + p['proj_b']
        att = _ref_mha(proj, p)
        rec = att @ p['agg_wa'] + p['depth_emb'][depth][None, :] @ p['agg_wb'] + p['agg_b']
        enhanced = enhanced + (1.0 / (2.0 ** (depth + 1))) * rec
    gate = jax.nn.sigmoid(x @ p['gate_wa'] + enhanced @ p['gate_wb'] + p['gate_b'])
    enhanced = x + gate * (enhanced - x)
    y = _ref_layer_norm(enhanced, p['out_lng'][None, :], p['out_lnb'][None, :])
    return y @ p['out_w'] + p['out_b']


def reference_forward(x, raw):
    return jax.vmap(lambda xb: _reference_seq(xb, raw))(x)


if __name__ == "__main__":
    key = jax.random.PRNGKey(0)
    kx, kp = jax.random.split(key)
    x = jax.random.normal(kx, (B, S, H), dtype=jnp.float32)

    raw = init_params(kp)
    packed = pack_params(raw)

    out = jax.block_until_ready(logical_reasoning_forward(x, packed))
    ref = jax.block_until_ready(reference_forward(x, raw))

    assert out.shape == (B, S, H)
    assert bool(jnp.all(jnp.isfinite(out)))
    max_diff = float(jnp.max(jnp.abs(out - ref)))
    assert bool(jnp.allclose(out, ref, atol=2e-2, rtol=2e-2)), f"max abs diff {max_diff}"

    print("KERNEL_OK")
</pallas_src>

<mosaic_0001>
module attributes {stable_mosaic.version = 11 : i64} {
  func.func @logical_reasoning_kernel(%arg0: memref<16x32xf32, #tpu.memory_space<vmem>>, %arg1: memref<5x32x32xbf16, #tpu.memory_space<vmem>>, %arg2: memref<32x256xbf16, #tpu.memory_space<vmem>>, %arg3: memref<192x32xbf16, #tpu.memory_space<vmem>>, %arg4: memref<32x96xbf16, #tpu.memory_space<vmem>>, %arg5: memref<1x96xf32, #tpu.memory_space<vmem>>, %arg6: memref<192x32xbf16, #tpu.memory_space<vmem>>, %arg7: memref<32x192xbf16, #tpu.memory_space<vmem>>, %arg8: memref<3x192xf32, #tpu.memory_space<vmem>>, %arg9: memref<9x32xf32, #tpu.memory_space<vmem>>, %arg10: memref<16x16xf32, #tpu.memory_space<vmem>>, %arg11: memref<16x32xf32, #tpu.memory_space<vmem>>) attributes {dimension_semantics = [], scalar_prefetch = 0 : i64, scratch_operands = 0 : i64, tpu.core_type = #tpu.core_type<tc>} {
    %c0 = arith.constant 0 : index
    %c0_0 = arith.constant 0 : index
    %0 = vector.load %arg0[%c0, %c0_0] : memref<16x32xf32, #tpu.memory_space<vmem>>, vector<16x32xf32>
    %c0_1 = arith.constant 0 : index
    %c0_2 = arith.constant 0 : index
    %1 = vector.load %arg2[%c0_1, %c0_2] : memref<32x256xbf16, #tpu.memory_space<vmem>>, vector<32x256xbf16>
    %2 = arith.truncf %0 : vector<16x32xf32> to vector<16x32xbf16>
    %cst = arith.constant dense<0.000000e+00> : vector<16x256xf32>
    %3 = tpu.matmul %2, %1, %cst {dimension_numbers = #tpu.dot_dimension_numbers<[1], [0], [0], [1], [0, 0, 1, 1], [], []>} : vector<16x32xbf16>, vector<32x256xbf16>, vector<16x256xf32> -> vector<16x256xf32>
    %4 = vector.extract_strided_slice %3 {offsets = [0, 0], sizes = [16, 192], strides = [1, 1]} : vector<16x256xf32> to vector<16x192xf32>
    %c0_3 = arith.constant 0 : index
    %c0_4 = arith.constant 0 : index
    %5 = vector.load %arg8[%c0_3, %c0_4] : memref<3x192xf32, #tpu.memory_space<vmem>>, vector<1x192xf32>
    %6 = vector.broadcast %5 : vector<1x192xf32> to vector<16x192xf32>
    %7 = arith.addf %4, %6 : vector<16x192xf32>
    %8 = vector.extract_strided_slice %3 {offsets = [0, 192], sizes = [16, 32], strides = [1, 1]} : vector<16x256xf32> to vector<16x32xf32>
    %c0_5 = arith.constant 0 : index
    %c0_6 = arith.constant 0 : index
    %9 = vector.load %arg9[%c0_5, %c0_6] : memref<9x32xf32, #tpu.memory_space<vmem>>, vector<1x32xf32>
    %10 = vector.broadcast %9 : vector<1x32xf32> to vector<16x32xf32>
    %11 = arith.addf %8, %10 : vector<16x32xf32>
    %12 = vector.extract_strided_slice %3 {offsets = [0, 224], sizes = [16, 32], strides = [1, 1]} : vector<16x256xf32> to vector<16x32xf32>
    %cst_7 = arith.constant 5.000000e-01 : f32
    %13 = vector.broadcast %cst_7 : f32 to vector<16x32xf32>
    %14 = arith.mulf %13, %11 : vector<16x32xf32>
    %cst_8 = arith.constant 4.471500e-02 : f32
    %15 = vector.broadcast %cst_8 : f32 to vector<16x32xf32>
    %16 = arith.mulf %15, %11 : vector<16x32xf32>
    %17 = arith.mulf %16, %11 : vector<16x32xf32>
    %18 = arith.mulf %17, %11 : vector<16x32xf32>
    %19 = arith.addf %11, %18 : vector<16x32xf32>
    %cst_9 = arith.constant 0.797884583 : f32
    %20 = vector.broadcast %cst_9 : f32 to vector<16x32xf32>
    %21 = arith.mulf %20, %19 : vector<16x32xf32>
    %22 = math.tanh %21 : vector<16x32xf32>
    %cst_10 = arith.constant 1.000000e+00 : f32
    %23 = vector.broadcast %cst_10 : f32 to vector<16x32xf32>
    %24 = arith.addf %23, %22 : vector<16x32xf32>
    %25 = arith.mulf %14, %24 : vector<16x32xf32>
    %c0_11 = arith.constant 0 : index
    %c0_12 = arith.constant 0 : index
    %c0_13 = arith.constant 0 : index
    %26 = vector.load %arg1[%c0_11, %c0_12, %c0_13] : memref<5x32x32xbf16, #tpu.memory_space<vmem>>, vector<1x32x32xbf16>
    %27 = vector.shape_cast %26 : vector<1x32x32xbf16> to vector<32x32xbf16>
    %28 = arith.truncf %25 : vector<16x32xf32> to vector<16x32xbf16>
    %cst_14 = arith.constant dense<0.000000e+00> : vector<16x32xf32>
    %29 = tpu.matmul %28, %27, %cst_14 {dimension_numbers = #tpu.dot_dimension_numbers<[1], [0], [0], [1], [0, 0, 1, 1], [], []>} : vector<16x32xbf16>, vector<32x32xbf16>, vector<16x32xf32> -> vector<16x32xf32>
    %c1 = arith.constant 1 : index
    %c0_15 = arith.constant 0 : index
    %30 = vector.load %arg9[%c1, %c0_15] : memref<9x32xf32, #tpu.memory_space<vmem>>, vector<1x32xf32>
    %31 = vector.broadcast %30 : vector<1x32xf32> to vector<16x32xf32>
    %32 = arith.addf %29, %31 : vector<16x32xf32>
    %cst_16 = arith.constant dense<0xFF800000> : vector<16xf32>
    %33 = vector.multi_reduction <maximumf>, %32, %cst_16 [1] : vector<16x32xf32> to vector<16xf32>
    %34 = vector.shape_cast %33 : vector<16xf32> to vector<16x1xf32>
    %35 = vector.broadcast %34 : vector<16x1xf32> to vector<16x32xf32>
    %36 = arith.subf %32, %35 : vector<16x32xf32>
    %37 = math.exp %36 : vector<16x32xf32>
    %cst_17 = arith.constant dense<0.000000e+00> : vector<16xf32>
    %38 = vector.multi_reduction <add>, %37, %cst_17 [1] : vector<16x32xf32> to vector<16xf32>
    %39 = vector.shape_cast %38 : vector<16xf32> to vector<16x1xf32>
    %40 = tpu.reciprocal %39 {approx = true} : vector<16x1xf32> -> vector<16x1xf32>
    %41 = vector.broadcast %40 : vector<16x1xf32> to vector<16x32xf32>
    %42 = arith.mulf %37, %41 : vector<16x32xf32>
    %c0_18 = arith.constant 0 : index
    %c0_19 = arith.constant 0 : index
    %43 = vector.load %arg6[%c0_18, %c0_19] : memref<192x32xbf16, #tpu.memory_space<vmem>>, vector<192x32xbf16>
    %44 = arith.truncf %7 : vector<16x192xf32> to vector<16x192xbf16>
    %cst_20 = arith.constant dense<0.000000e+00> : vector<16x32xf32>
    %45 = tpu.matmul %44, %43, %cst_20 {dimension_numbers = #tpu.dot_dimension_numbers<[1], [0], [0], [1], [0, 0, 1, 1], [], []>} : vector<16x192xbf16>, vector<192x32xbf16>, vector<16x32xf32> -> vector<16x32xf32>
    %46 = arith.mulf %7, %7 : vector<16x192xf32>
    %c0_21 = arith.constant 0 : index
    %c0_22 = arith.constant 0 : index
    %47 = vector.load %arg6[%c0_21, %c0_22] : memref<192x32xbf16, #tpu.memory_space<vmem>>, vector<192x32xbf16>
    %48 = arith.truncf %46 : vector<16x192xf32> to vector<16x192xbf16>
    %cst_23 = arith.constant dense<0.000000e+00> : vector<16x32xf32>
    %49 = tpu.matmul %48, %47, %cst_23 {dimension_numbers = #tpu.dot_dimension_numbers<[1], [0], [0], [1], [0, 0, 1, 1], [], []>} : vector<16x192xbf16>, vector<192x32xbf16>, vector<16x32xf32> -> vector<16x32xf32>
    %50 = arith.mulf %45, %45 : vector<16x32xf32>
    %51 = arith.subf %49, %50 : vector<16x32xf32>
    %cst_24 = arith.constant 9.99999974E-6 : f32
    %52 = vector.broadcast %cst_24 : f32 to vector<16x32xf32>
    %53 = arith.addf %51, %52 : vector<16x32xf32>
    %54 = math.rsqrt %53 : vector<16x32xf32>
    %c0_25 = arith.constant 0 : index
    %c0_26 = arith.constant 0 : index
    %55 = vector.load %arg7[%c0_25, %c0_26] : memref<32x192xbf16, #tpu.memory_space<vmem>>, vector<32x192xbf16>
    %56 = arith.truncf %45 : vector<16x32xf32> to vector<16x32xbf16>
    %cst_27 = arith.constant dense<0.000000e+00> : vector<16x192xf32>
    %57 = tpu.matmul %56, %55, %cst_27 {dimension_numbers = #tpu.dot_dimension_numbers<[1], [0], [0], [1], [0, 0, 1, 1], [], []>} : vector<16x32xbf16>, vector<32x192xbf16>, vector<16x192xf32> -> vector<16x192xf32>
    %58 = arith.subf %7, %57 : vector<16x192xf32>
    %c0_28 = arith.constant 0 : index
    %c0_29 = arith.constant 0 : index
    %59 = vector.load %arg7[%c0_28, %c0_29] : memref<32x192xbf16, #tpu.memory_space<vmem>>, vector<32x192xbf16>
    %60 = arith.truncf %54 : vector<16x32xf32> to vector<16x32xbf16>
    %cst_30 = arith.constant dense<0.000000e+00> : vector<16x192xf32>
    %61 = tpu.matmul %60, %59, %cst_30 {dimension_numbers = #tpu.dot_dimension_numbers<[1], [0], [0], [1], [0, 0, 1, 1], [], []>} : vector<16x32xbf16>, vector<32x192xbf16>, vector<16x192xf32> -> vector<16x192xf32>
    %62 = arith.mulf %58, %61 : vector<16x192xf32>
    %c1_31 = arith.constant 1 : index
    %c0_32 = arith.constant 0 : index
    %63 = vector.load %arg8[%c1_31, %c0_32] : memref<3x192xf32, #tpu.memory_space<vmem>>, vector<1x192xf32>
    %64 = vector.broadcast %63 : vector<1x192xf32> to vector<16x192xf32>
    %65 = arith.mulf %62, %64 : vector<16x192xf32>
    %c2 = arith.constant 2 : index
    %c0_33 = arith.constant 0 : index
    %66 = vector.load %arg8[%c2, %c0_33] : memref<3x192xf32, #tpu.memory_space<vmem>>, vector<1x192xf32>
    %67 = vector.broadcast %66 : vector<1x192xf32> to vector<16x192xf32>
    %68 = arith.addf %65, %67 : vector<16x192xf32>
    %cst_34 = arith.constant 5.000000e-01 : f32
    %69 = vector.broadcast %cst_34 : f32 to vector<16x192xf32>
    %70 = arith.mulf %69, %68 : vector<16x192xf32>
    %cst_35 = arith.constant 4.471500e-02 : f32
    %71 = vector.broadcast %cst_35 : f32 to vector<16x192xf32>
    %72 = arith.mulf %71, %68 : vector<16x192xf32>
    %73 = arith.mulf %72, %68 : vector<16x192xf32>
    %74 = arith.mulf %73, %68 : vector<16x192xf32>
    %75 = arith.addf %68, %74 : vector<16x192xf32>
    %cst_36 = arith.constant 0.797884583 : f32
    %76 = vector.broadcast %cst_36 : f32 to vector<16x192xf32>
    %77 = arith.mulf %76, %75 : vector<16x192xf32>
    %78 = math.tanh %77 : vector<16x192xf32>
    %cst_37 = arith.constant 1.000000e+00 : f32
    %79 = vector.broadcast %cst_37 : f32 to vector<16x192xf32>
    %80 = arith.addf %79, %78 : vector<16x192xf32>
    %81 = arith.mulf %70, %80 : vector<16x192xf32>
    %c0_38 = arith.constant 0 : index
    %c0_39 = arith.constant 0 : index
    %82 = vector.load %arg7[%c0_38, %c0_39] : memref<32x192xbf16, #tpu.memory_space<vmem>>, vector<32x192xbf16>
    %83 = arith.truncf %42 : vector<16x32xf32> to vector<16x32xbf16>
    %cst_40 = arith.constant dense<0.000000e+00> : vector<16x192xf32>
    %84 = tpu.matmul %83, %82, %cst_40 {dimension_numbers = #tpu.dot_dimension_numbers<[1], [0], [0], [1], [0, 0, 1, 1], [], []>} : vector<16x32xbf16>, vector<32x192xbf16>, vector<16x192xf32> -> vector<16x192xf32>
    %85 = arith.mulf %81, %84 : vector<16x192xf32>
    %c0_41 = arith.constant 0 : index
    %c0_42 = arith.constant 0 : index
    %86 = vector.load %arg3[%c0_41, %c0_42] : memref<192x32xbf16, #tpu.memory_space<vmem>>, vector<192x32xbf16>
    %87 = arith.truncf %85 : vector<16x192xf32> to vector<16x192xbf16>
    %cst_43 = arith.constant dense<0.000000e+00> : vector<16x32xf32>
    %88 = tpu.matmul %87, %86, %cst_43 {dimension_numbers = #tpu.dot_dimension_numbers<[1], [0], [0], [1], [0, 0, 1, 1], [], []>} : vector<16x192xbf16>, vector<192x32xbf16>, vector<16x32xf32> -> vector<16x32xf32>
    %89 = arith.addf %0, %88 : vector<16x32xf32>
    %c4 = arith.constant 4 : index
    %c0_44 = arith.constant 0 : index
    %c0_45 = arith.constant 0 : index
    %90 = vector.load %arg1[%c4, %c0_44, %c0_45] : memref<5x32x32xbf16, #tpu.memory_space<vmem>>, vector<1x32x32xbf16>
    %91 = vector.shape_cast %90 : vector<1x32x32xbf16> to vector<32x32xbf16>
    %92 = arith.truncf %42 : vector<16x32xf32> to vector<16x32xbf16>
    %cst_46 = arith.constant dense<0.000000e+00> : vector<16x32xf32>
    %93 = tpu.matmul %92, %91, %cst_46 {dimension_numbers = #tpu.dot_dimension_numbers<[1], [0], [0], [1], [0, 0, 1, 1], [], []>} : vector<16x32xbf16>, vector<32x32xbf16>, vector<16x32xf32> -> vector<16x32xf32>
    %94 = arith.addf %89, %93 : vector<16x32xf32>
    %c0_47 = arith.constant 0 : index
    %c0_48 = arith.constant 0 : index
    %95 = vector.load %arg10[%c0_47, %c0_48] : memref<16x16xf32, #tpu.memory_space<vmem>>, vector<16x16xf32>
    %c3 = arith.constant 3 : index
    %c0_49 = arith.constant 0 : index
    %c0_50 = arith.constant 0 : index
    %96 = vector.load %arg1[%c3, %c0_49, %c0_50] : memref<5x32x32xbf16, #tpu.memory_space<vmem>>, vector<1x32x32xbf16>
    %97 = vector.shape_cast %96 : vector<1x32x32xbf16> to vector<32x32xbf16>
    %c0_51 = arith.constant 0 : index
    %c0_52 = arith.constant 0 : index
    %98 = vector.load %arg4[%c0_51, %c0_52] : memref<32x96xbf16, #tpu.memory_space<vmem>>, vector<32x96xbf16>
    %99 = arith.truncf %94 : vector<16x32xf32> to vector<16x32xbf16>
    %cst_53 = arith.constant dense<0.000000e+00> : vector<16x96xf32>
    %100 = tpu.matmul %99, %98, %cst_53 {dimension_numbers = #tpu.dot_dimension_numbers<[1], [0], [0], [1], [0, 0, 1, 1], [], []>} : vector<16x32xbf16>, vector<32x96xbf16>, vector<16x96xf32> -> vector<16x96xf32>
    %c0_54 = arith.constant 0 : index
    %c0_55 = arith.constant 0 : index
    %101 = vector.load %arg5[%c0_54, %c0_55] : memref<1x96xf32, #tpu.memory_space<vmem>>, vector<1x96xf32>
    %102 = vector.broadcast %101 : vector<1x96xf32> to vector<16x96xf32>
    %103 = arith.addf %100, %102 : vector<16x96xf32>
    %104 = vector.extract_strided_slice %103 {offsets = [0, 0], sizes = [16, 32], strides = [1, 1]} : vector<16x96xf32> to vector<16x32xf32>
    %105 = vector.extract_strided_slice %103 {offsets = [0, 32], sizes = [16, 32], strides = [1, 1]} : vector<16x96xf32> to vector<16x32xf32>
    %106 = vector.extract_strided_slice %103 {offsets = [0, 64], sizes = [16, 32], strides = [1, 1]} : vector<16x96xf32> to vector<16x32xf32>
    %107 = vector.extract_strided_slice %104 {offsets = [0, 0], sizes = [16, 8], strides = [1, 1]} : vector<16x32xf32> to vector<16x8xf32>
    %108 = arith.truncf %107 : vector<16x8xf32> to vector<16x8xbf16>
    %109 = vector.extract_strided_slice %105 {offsets = [0, 0], sizes = [16, 8], strides = [1, 1]} : vector<16x32xf32> to vector<16x8xf32>
    %110 = arith.truncf %109 : vector<16x8xf32> to vector<16x8xbf16>
    %cst_56 = arith.constant dense<0.000000e+00> : vector<16x16xf32>
    %111 = tpu.matmul %108, %110, %cst_56 {dimension_numbers = #tpu.dot_dimension_numbers<[1], [1], [0], [0], [0, 0, 1, 0], [], []>} : vector<16x8xbf16>, vector<16x8xbf16>, vector<16x16xf32> -> vector<16x16xf32>
    %112 = arith.addf %111, %95 : vector<16x16xf32>
    %cst_57 = arith.constant dense<0xFF800000> : vector<16xf32>
    %113 = vector.multi_reduction <maximumf>, %112, %cst_57 [1] : vector<16x16xf32> to vector<16xf32>
    %114 = vector.shape_cast %113 : vector<16xf32> to vector<16x1xf32>
    %115 = vector.broadcast %114 : vector<16x1xf32> to vector<16x16xf32>
    %116 = arith.subf %112, %115 : vector<16x16xf32>
    %117 = math.exp %116 : vector<16x16xf32>
    %cst_58 = arith.constant dense<0.000000e+00> : vector<16xf32>
    %118 = vector.multi_reduction <add>, %117, %cst_58 [1] : vector<16x16xf32> to vector<16xf32>
    %119 = vector.shape_cast %118 : vector<16xf32> to vector<16x1xf32>
    %120 = tpu.reciprocal %119 {approx = true} : vector<16x1xf32> -> vector<16x1xf32>
    %121 = vector.broadcast %120 : vector<16x1xf32> to vector<16x16xf32>
    %122 = arith.mulf %117, %121 : vector<16x16xf32>
    %123 = vector.extract_strided_slice %106 {offsets = [0, 0], sizes = [16, 8], strides = [1, 1]} : vector<16x32xf32> to vector<16x8xf32>
    %124 = arith.truncf %122 : vector<16x16xf32> to vector<16x16xbf16>
    %125 = arith.truncf %123 : vector<16x8xf32> to vector<16x8xbf16>
    %cst_59 = arith.constant dense<0.000000e+00> : vector<16x8xf32>
    %126 = tpu.matmul %124, %125, %cst_59 {dimension_numbers = #tpu.dot_dimension_numbers<[1], [0], [0], [1], [0, 0, 1, 1], [], []>} : vector<16x16xbf16>, vector<16x8xbf16>, vector<16x8xf32> -> vector<16x8xf32>
    %127 = vector.extract_strided_slice %97 {offsets = [0, 0], sizes = [8, 32], strides = [1, 1]} : vector<32x32xbf16> to vector<8x32xbf16>
    %128 = arith.truncf %126 : vector<16x8xf32> to vector<16x8xbf16>
    %cst_60 = arith.constant dense<0.000000e+00> : vector<16x32xf32>
    %129 = tpu.matmul %128, %127, %cst_60 {dimension_numbers = #tpu.dot_dimension_numbers<[1], [0], [0], [1], [0, 0, 1, 1], [], []>} : vector<16x8xbf16>, vector<8x32xbf16>, vector<16x32xf32> -> vector<16x32xf32>
    %130 = vector.extract_strided_slice %104 {offsets = [0, 8], sizes = [16, 8], strides = [1, 1]} : vector<16x32xf32> to vector<16x8xf32>
    %131 = arith.truncf %130 : vector<16x8xf32> to vector<16x8xbf16>
    %132 = vector.extract_strided_slice %105 {offsets = [0, 8], sizes = [16, 8], strides = [1, 1]} : vector<16x32xf32> to vector<16x8xf32>
    %133 = arith.truncf %132 : vector<16x8xf32> to vector<16x8xbf16>
    %cst_61 = arith.constant dense<0.000000e+00> : vector<16x16xf32>
    %134 = tpu.matmul %131, %133, %cst_61 {dimension_numbers = #tpu.dot_dimension_numbers<[1], [1], [0], [0], [0, 0, 1, 0], [], []>} : vector<16x8xbf16>, vector<16x8xbf16>, vector<16x16xf32> -> vector<16x16xf32>
    %135 = arith.addf %134, %95 : vector<16x16xf32>
    %cst_62 = arith.constant dense<0xFF800000> : vector<16xf32>
    %136 = vector.multi_reduction <maximumf>, %135, %cst_62 [1] : vector<16x16xf32> to vector<16xf32>
    %137 = vector.shape_cast %136 : vector<16xf32> to vector<16x1xf32>
    %138 = vector.broadcast %137 : vector<16x1xf32> to vector<16x16xf32>
    %139 = arith.subf %135, %138 : vector<16x16xf32>
    %140 = math.exp %139 : vector<16x16xf32>
    %cst_63 = arith.constant dense<0.000000e+00> : vector<16xf32>
    %141 = vector.multi_reduction <add>, %140, %cst_63 [1] : vector<16x16xf32> to vector<16xf32>
    %142 = vector.shape_cast %141 : vector<16xf32> to vector<16x1xf32>
    %143 = tpu.reciprocal %142 {approx = true} : vector<16x1xf32> -> vector<16x1xf32>
    %144 = vector.broadcast %143 : vector<16x1xf32> to vector<16x16xf32>
    %145 = arith.mulf %140, %144 : vector<16x16xf32>
    %146 = vector.extract_strided_slice %106 {offsets = [0, 8], sizes = [16, 8], strides = [1, 1]} : vector<16x32xf32> to vector<16x8xf32>
    %147 = arith.truncf %145 : vector<16x16xf32> to vector<16x16xbf16>
    %148 = arith.truncf %146 : vector<16x8xf32> to vector<16x8xbf16>
    %cst_64 = arith.constant dense<0.000000e+00> : vector<16x8xf32>
    %149 = tpu.matmul %147, %148, %cst_64 {dimension_numbers = #tpu.dot_dimension_numbers<[1], [0], [0], [1], [0, 0, 1, 1], [], []>} : vector<16x16xbf16>, vector<16x8xbf16>, vector<16x8xf32> -> vector<16x8xf32>
    %150 = vector.extract_strided_slice %97 {offsets = [8, 0], sizes = [8, 32], strides = [1, 1]} : vector<32x32xbf16> to vector<8x32xbf16>
    %151 = arith.truncf %149 : vector<16x8xf32> to vector<16x8xbf16>
    %cst_65 = arith.constant dense<0.000000e+00> : vector<16x32xf32>
    %152 = tpu.matmul %151, %150, %cst_65 {dimension_numbers = #tpu.dot_dimension_numbers<[1], [0], [0], [1], [0, 0, 1, 1], [], []>} : vector<16x8xbf16>, vector<8x32xbf16>, vector<16x32xf32> -> vector<16x32xf32>
    %153 = arith.addf %129, %152 : vector<16x32xf32>
    %154 = vector.extract_strided_slice %104 {offsets = [0, 16], sizes = [16, 8], strides = [1, 1]} : vector<16x32xf32> to vector<16x8xf32>
    %155 = arith.truncf %154 : vector<16x8xf32> to vector<16x8xbf16>
    %156 = vector.extract_strided_slice %105 {offsets = [0, 16], sizes = [16, 8], strides = [1, 1]} : vector<16x32xf32> to vector<16x8xf32>
    %157 = arith.truncf %156 : vector<16x8xf32> to vector<16x8xbf16>
    %cst_66 = arith.constant dense<0.000000e+00> : vector<16x16xf32>
    %158 = tpu.matmul %155, %157, %cst_66 {dimension_numbers = #tpu.dot_dimension_numbers<[1], [1], [0], [0], [0, 0, 1, 0], [], []>} : vector<16x8xbf16>, vector<16x8xbf16>, vector<16x16xf32> -> vector<16x16xf32>
    %159 = arith.addf %158, %95 : vector<16x16xf32>
    %cst_67 = arith.constant dense<0xFF800000> : vector<16xf32>
    %160 = vector.multi_reduction <maximumf>, %159, %cst_67 [1] : vector<16x16xf32> to vector<16xf32>
    %161 = vector.shape_cast %160 : vector<16xf32> to vector<16x1xf32>
    %162 = vector.broadcast %161 : vector<16x1xf32> to vector<16x16xf32>
    %163 = arith.subf %159, %162 : vector<16x16xf32>
    %164 = math.exp %163 : vector<16x16xf32>
    %cst_68 = arith.constant dense<0.000000e+00> : vector<16xf32>
    %165 = vector.multi_reduction <add>, %164, %cst_68 [1] : vector<16x16xf32> to vector<16xf32>
    %166 = vector.shape_cast %165 : vector<16xf32> to vector<16x1xf32>
    %167 = tpu.reciprocal %166 {approx = true} : vector<16x1xf32> -> vector<16x1xf32>
    %168 = vector.broadcast %167 : vector<16x1xf32> to vector<16x16xf32>
    %169 = arith.mulf %164, %168 : vector<16x16xf32>
    %170 = vector.extract_strided_slice %106 {offsets = [0, 16], sizes = [16, 8], strides = [1, 1]} : vector<16x32xf32> to vector<16x8xf32>
    %171 = arith.truncf %169 : vector<16x16xf32> to vector<16x16xbf16>
    %172 = arith.truncf %170 : vector<16x8xf32> to vector<16x8xbf16>
    %cst_69 = arith.constant dense<0.000000e+00> : vector<16x8xf32>
    %173 = tpu.matmul %171, %172, %cst_69 {dimension_numbers = #tpu.dot_dimension_numbers<[1], [0], [0], [1], [0, 0, 1, 1], [], []>} : vector<16x16xbf16>, vector<16x8xbf16>, vector<16x8xf32> -> vector<16x8xf32>
    %174 = vector.extract_strided_slice %97 {offsets = [16, 0], sizes = [8, 32], strides = [1, 1]} : vector<32x32xbf16> to vector<8x32xbf16>
    %175 = arith.truncf %173 : vector<16x8xf32> to vector<16x8xbf16>
    %cst_70 = arith.constant dense<0.000000e+00> : vector<16x32xf32>
    %176 = tpu.matmul %175, %174, %cst_70 {dimension_numbers = #tpu.dot_dimension_numbers<[1], [0], [0], [1], [0, 0, 1, 1], [], []>} : vector<16x8xbf16>, vector<8x32xbf16>, vector<16x32xf32> -> vector<16x32xf32>
    %177 = arith.addf %153, %176 : vector<16x32xf32>
    %178 = vector.extract_strided_slice %104 {offsets = [0, 24], sizes = [16, 8], strides = [1, 1]} : vector<16x32xf32> to vector<16x8xf32>
    %179 = arith.truncf %178 : vector<16x8xf32> to vector<16x8xbf16>
    %180 = vector.extract_strided_slice %105 {offsets = [0, 24], sizes = [16, 8], strides = [1, 1]} : vector<16x32xf32> to vector<16x8xf32>
    %181 = arith.truncf %180 : vector<16x8xf32> to vector<16x8xbf16>
    %cst_71 = arith.constant dense<0.000000e+00> : vector<16x16xf32>
    %182 = tpu.matmul %179, %181, %cst_71 {dimension_numbers = #tpu.dot_dimension_numbers<[1], [1], [0], [0], [0, 0, 1, 0], [], []>} : vector<16x8xbf16>, vector<16x8xbf16>, vector<16x16xf32> -> vector<16x16xf32>
    %183 = arith.addf %182, %95 : vector<16x16xf32>
    %cst_72 = arith.constant dense<0xFF800000> : vector<16xf32>
    %184 = vector.multi_reduction <maximumf>, %183, %cst_72 [1] : vector<16x16xf32> to vector<16xf32>
    %185 = vector.shape_cast %184 : vector<16xf32> to vector<16x1xf32>
    %186 = vector.broadcast %185 : vector<16x1xf32> to vector<16x16xf32>
    %187 = arith.subf %183, %186 : vector<16x16xf32>
    %188 = math.exp %187 : vector<16x16xf32>
    %cst_73 = arith.constant dense<0.000000e+00> : vector<16xf32>
    %189 = vector.multi_reduction <add>, %188, %cst_73 [1] : vector<16x16xf32> to vector<16xf32>
    %190 = vector.shape_cast %189 : vector<16xf32> to vector<16x1xf32>
    %191 = tpu.reciprocal %190 {approx = true} : vector<16x1xf32> -> vector<16x1xf32>
    %192 = vector.broadcast %191 : vector<16x1xf32> to vector<16x16xf32>
    %193 = arith.mulf %188, %192 : vector<16x16xf32>
    %194 = vector.extract_strided_slice %106 {offsets = [0, 24], sizes = [16, 8], strides = [1, 1]} : vector<16x32xf32> to vector<16x8xf32>
    %195 = arith.truncf %193 : vector<16x16xf32> to vector<16x16xbf16>
    %196 = arith.truncf %194 : vector<16x8xf32> to vector<16x8xbf16>
    %cst_74 = arith.constant dense<0.000000e+00> : vector<16x8xf32>
    %197 = tpu.matmul %195, %196, %cst_74 {dimension_numbers = #tpu.dot_dimension_numbers<[1], [0], [0], [1], [0, 0, 1, 1], [], []>} : vector<16x16xbf16>, vector<16x8xbf16>, vector<16x8xf32> -> vector<16x8xf32>
    %198 = vector.extract_strided_slice %97 {offsets = [24, 0], sizes = [8, 32], strides = [1, 1]} : vector<32x32xbf16> to vector<8x32xbf16>
    %199 = arith.truncf %197 : vector<16x8xf32> to vector<16x8xbf16>
    %cst_75 = arith.constant dense<0.000000e+00> : vector<16x32xf32>
    %200 = tpu.matmul %199, %198, %cst_75 {dimension_numbers = #tpu.dot_dimension_numbers<[1], [0], [0], [1], [0, 0, 1, 1], [], []>} : vector<16x8xbf16>, vector<8x32xbf16>, vector<16x32xf32> -> vector<16x32xf32>
    %201 = arith.addf %177, %200 : vector<16x32xf32>
    %c2_76 = arith.constant 2 : index
    %c0_77 = arith.constant 0 : index
    %202 = vector.load %arg9[%c2_76, %c0_77] : memref<9x32xf32, #tpu.memory_space<vmem>>, vector<1x32xf32>
    %203 = vector.broadcast %202 : vector<1x32xf32> to vector<16x32xf32>
    %204 = arith.addf %201, %203 : vector<16x32xf32>
    %cst_78 = arith.constant 5.000000e-01 : f32
    %205 = vector.broadcast %cst_78 : f32 to vector<16x32xf32>
    %206 = arith.mulf %205, %204 : vector<16x32xf32>
    %207 = arith.addf %94, %206 : vector<16x32xf32>
    %c0_79 = arith.constant 0 : index
    %c0_80 = arith.constant 0 : index
    %208 = vector.load %arg4[%c0_79, %c0_80] : memref<32x96xbf16, #tpu.memory_space<vmem>>, vector<32x96xbf16>
    %209 = arith.truncf %204 : vector<16x32xf32> to vector<16x32xbf16>
    %cst_81 = arith.constant dense<0.000000e+00> : vector<16x96xf32>
    %210 = tpu.matmul %209, %208, %cst_81 {dimension_numbers = #tpu.dot_dimension_numbers<[1], [0], [0], [1], [0, 0, 1, 1], [], []>} : vector<16x32xbf16>, vector<32x96xbf16>, vector<16x96xf32> -> vector<16x96xf32>
    %c0_82 = arith.constant 0 : index
    %c0_83 = arith.constant 0 : index
    %211 = vector.load %arg5[%c0_82, %c0_83] : memref<1x96xf32, #tpu.memory_space<vmem>>, vector<1x96xf32>
    %212 = vector.broadcast %211 : vector<1x96xf32> to vector<16x96xf32>
    %213 = arith.addf %210, %212 : vector<16x96xf32>
    %214 = vector.extract_strided_slice %213 {offsets = [0, 0], sizes = [16, 32], strides = [1, 1]} : vector<16x96xf32> to vector<16x32xf32>
    %215 = vector.extract_strided_slice %213 {offsets = [0, 32], sizes = [16, 32], strides = [1, 1]} : vector<16x96xf32> to vector<16x32xf32>
    %216 = vector.extract_strided_slice %213 {offsets = [0, 64], sizes = [16, 32], strides = [1, 1]} : vector<16x96xf32> to vector<16x32xf32>
    %217 = vector.extract_strided_slice %214 {offsets = [0, 0], sizes = [16, 8], strides = [1, 1]} : vector<16x32xf32> to vector<16x8xf32>
    %218 = arith.truncf %217 : vector<16x8xf32> to vector<16x8xbf16>
    %219 = vector.extract_strided_slice %215 {offsets = [0, 0], sizes = [16, 8], strides = [1, 1]} : vector<16x32xf32> to vector<16x8xf32>
    %220 = arith.truncf %219 : vector<16x8xf32> to vector<16x8xbf16>
    %cst_84 = arith.constant dense<0.000000e+00> : vector<16x16xf32>
    %221 = tpu.matmul %218, %220, %cst_84 {dimension_numbers = #tpu.dot_dimension_numbers<[1], [1], [0], [0], [0, 0, 1, 0], [], []>} : vector<16x8xbf16>, vector<16x8xbf16>, vector<16x16xf32> -> vector<16x16xf32>
    %222 = arith.addf %221, %95 : vector<16x16xf32>
    %cst_85 = arith.constant dense<0xFF800000> : vector<16xf32>
    %223 = vector.multi_reduction <maximumf>, %222, %cst_85 [1] : vector<16x16xf32> to vector<16xf32>
    %224 = vector.shape_cast %223 : vector<16xf32> to vector<16x1xf32>
    %225 = vector.broadcast %224 : vector<16x1xf32> to vector<16x16xf32>
    %226 = arith.subf %222, %225 : vector<16x16xf32>
    %227 = math.exp %226 : vector<16x16xf32>
    %cst_86 = arith.constant dense<0.000000e+00> : vector<16xf32>
    %228 = vector.multi_reduction <add>, %227, %cst_86 [1] : vector<16x16xf32> to vector<16xf32>
    %229 = vector.shape_cast %228 : vector<16xf32> to vector<16x1xf32>
    %230 = tpu.reciprocal %229 {approx = true} : vector<16x1xf32> -> vector<16x1xf32>
    %231 = vector.broadcast %230 : vector<16x1xf32> to vector<16x16xf32>
    %232 = arith.mulf %227, %231 : vector<16x16xf32>
    %233 = vector.extract_strided_slice %216 {offsets = [0, 0], sizes = [16, 8], strides = [1, 1]} : vector<16x32xf32> to vector<16x8xf32>
    %234 = arith.truncf %232 : vector<16x16xf32> to vector<16x16xbf16>
    %235 = arith.truncf %233 : vector<16x8xf32> to vector<16x8xbf16>
    %cst_87 = arith.constant dense<0.000000e+00> : vector<16x8xf32>
    %236 = tpu.matmul %234, %235, %cst_87 {dimension_numbers = #tpu.dot_dimension_numbers<[1], [0], [0], [1], [0, 0, 1, 1], [], []>} : vector<16x16xbf16>, vector<16x8xbf16>, vector<16x8xf32> -> vector<16x8xf32>
    %237 = vector.extract_strided_slice %97 {offsets = [0, 0], sizes = [8, 32], strides = [1, 1]} : vector<32x32xbf16> to vector<8x32xbf16>
    %238 = arith.truncf %236 : vector<16x8xf32> to vector<16x8xbf16>
    %cst_88 = arith.constant dense<0.000000e+00> : vector<16x32xf32>
    %239 = tpu.matmul %238, %237, %cst_88 {dimension_numbers = #tpu.dot_dimension_numbers<[1], [0], [0], [1], [0, 0, 1, 1], [], []>} : vector<16x8xbf16>, vector<8x32xbf16>, vector<16x32xf32> -> vector<16x32xf32>
    %240 = vector.extract_strided_slice %214 {offsets = [0, 8], sizes = [16, 8], strides = [1, 1]} : vector<16x32xf32> to vector<16x8xf32>
    %241 = arith.truncf %240 : vector<16x8xf32> to vector<16x8xbf16>
    %242 = vector.extract_strided_slice %215 {offsets = [0, 8], sizes = [16, 8], strides = [1, 1]} : vector<16x32xf32> to vector<16x8xf32>
    %243 = arith.truncf %242 : vector<16x8xf32> to vector<16x8xbf16>
    %cst_89 = arith.constant dense<0.000000e+00> : vector<16x16xf32>
    %244 = tpu.matmul %241, %243, %cst_89 {dimension_numbers = #tpu.dot_dimension_numbers<[1], [1], [0], [0], [0, 0, 1, 0], [], []>} : vector<16x8xbf16>, vector<16x8xbf16>, vector<16x16xf32> -> vector<16x16xf32>
    %245 = arith.addf %244, %95 : vector<16x16xf32>
    %cst_90 = arith.constant dense<0xFF800000> : vector<16xf32>
    %246 = vector.multi_reduction <maximumf>, %245, %cst_90 [1] : vector<16x16xf32> to vector<16xf32>
    %247 = vector.shape_cast %246 : vector<16xf32> to vector<16x1xf32>
    %248 = vector.broadcast %247 : vector<16x1xf32> to vector<16x16xf32>
    %249 = arith.subf %245, %248 : vector<16x16xf32>
    %250 = math.exp %249 : vector<16x16xf32>
    %cst_91 = arith.constant dense<0.000000e+00> : vector<16xf32>
    %251 = vector.multi_reduction <add>, %250, %cst_91 [1] : vector<16x16xf32> to vector<16xf32>
    %252 = vector.shape_cast %251 : vector<16xf32> to vector<16x1xf32>
    %253 = tpu.reciprocal %252 {approx = true} : vector<16x1xf32> -> vector<16x1xf32>
    %254 = vector.broadcast %253 : vector<16x1xf32> to vector<16x16xf32>
    %255 = arith.mulf %250, %254 : vector<16x16xf32>
    %256 = vector.extract_strided_slice %216 {offsets = [0, 8], sizes = [16, 8], strides = [1, 1]} : vector<16x32xf32> to vector<16x8xf32>
    %257 = arith.truncf %255 : vector<16x16xf32> to vector<16x16xbf16>
    %258 = arith.truncf %256 : vector<16x8xf32> to vector<16x8xbf16>
    %cst_92 = arith.constant dense<0.000000e+00> : vector<16x8xf32>
    %259 = tpu.matmul %257, %258, %cst_92 {dimension_numbers = #tpu.dot_dimension_numbers<[1], [0], [0], [1], [0, 0, 1, 1], [], []>} : vector<16x16xbf16>, vector<16x8xbf16>, vector<16x8xf32> -> vector<16x8xf32>
    %260 = vector.extract_strided_slice %97 {offsets = [8, 0], sizes = [8, 32], strides = [1, 1]} : vector<32x32xbf16> to vector<8x32xbf16>
    %261 = arith.truncf %259 : vector<16x8xf32> to vector<16x8xbf16>
    %cst_93 = arith.constant dense<0.000000e+00> : vector<16x32xf32>
    %262 = tpu.matmul %261, %260, %cst_93 {dimension_numbers = #tpu.dot_dimension_numbers<[1], [0], [0], [1], [0, 0, 1, 1], [], []>} : vector<16x8xbf16>, vector<8x32xbf16>, vector<16x32xf32> -> vector<16x32xf32>
    %263 = arith.addf %239, %262 : vector<16x32xf32>
    %264 = vector.extract_strided_slice %214 {offsets = [0, 16], sizes = [16, 8], strides = [1, 1]} : vector<16x32xf32> to vector<16x8xf32>
    %265 = arith.truncf %264 : vector<16x8xf32> to vector<16x8xbf16>
    %266 = vector.extract_strided_slice %215 {offsets = [0, 16], sizes = [16, 8], strides = [1, 1]} : vector<16x32xf32> to vector<16x8xf32>
    %267 = arith.truncf %266 : vector<16x8xf32> to vector<16x8xbf16>
    %cst_94 = arith.constant dense<0.000000e+00> : vector<16x16xf32>
    %268 = tpu.matmul %265, %267, %cst_94 {dimension_numbers = #tpu.dot_dimension_numbers<[1], [1], [0], [0], [0, 0, 1, 0], [], []>} : vector<16x8xbf16>, vector<16x8xbf16>, vector<16x16xf32> -> vector<16x16xf32>
    %269 = arith.addf %268, %95 : vector<16x16xf32>
    %cst_95 = arith.constant dense<0xFF800000> : vector<16xf32>
    %270 = vector.multi_reduction <maximumf>, %269, %cst_95 [1] : vector<16x16xf32> to vector<16xf32>
    %271 = vector.shape_cast %270 : vector<16xf32> to vector<16x1xf32>
    %272 = vector.broadcast %271 : vector<16x1xf32> to vector<16x16xf32>
    %273 = arith.subf %269, %272 : vector<16x16xf32>
    %274 = math.exp %273 : vector<16x16xf32>
    %cst_96 = arith.constant dense<0.000000e+00> : vector<16xf32>
    %275 = vector.multi_reduction <add>, %274, %cst_96 [1] : vector<16x16xf32> to vector<16xf32>
    %276 = vector.shape_cast %275 : vector<16xf32> to vector<16x1xf32>
    %277 = tpu.reciprocal %276 {approx = true} : vector<16x1xf32> -> vector<16x1xf32>
    %278 = vector.broadcast %277 : vector<16x1xf32> to vector<16x16xf32>
    %279 = arith.mulf %274, %278 : vector<16x16xf32>
    %280 = vector.extract_strided_slice %216 {offsets = [0, 16], sizes = [16, 8], strides = [1, 1]} : vector<16x32xf32> to vector<16x8xf32>
    %281 = arith.truncf %279 : vector<16x16xf32> to vector<16x16xbf16>
    %282 = arith.truncf %280 : vector<16x8xf32> to vector<16x8xbf16>
    %cst_97 = arith.constant dense<0.000000e+00> : vector<16x8xf32>
    %283 = tpu.matmul %281, %282, %cst_97 {dimension_numbers = #tpu.dot_dimension_numbers<[1], [0], [0], [1], [0, 0, 1, 1], [], []>} : vector<16x16xbf16>, vector<16x8xbf16>, vector<16x8xf32> -> vector<16x8xf32>
    %284 = vector.extract_strided_slice %97 {offsets = [16, 0], sizes = [8, 32], strides = [1, 1]} : vector<32x32xbf16> to vector<8x32xbf16>
    %285 = arith.truncf %283 : vector<16x8xf32> to vector<16x8xbf16>
    %cst_98 = arith.constant dense<0.000000e+00> : vector<16x32xf32>
    %286 = tpu.matmul %285, %284, %cst_98 {dimension_numbers = #tpu.dot_dimension_numbers<[1], [0], [0], [1], [0, 0, 1, 1], [], []>} : vector<16x8xbf16>, vector<8x32xbf16>, vector<16x32xf32> -> vector<16x32xf32>
    %287 = arith.addf %263, %286 : vector<16x32xf32>
    %288 = vector.extract_strided_slice %214 {offsets = [0, 24], sizes = [16, 8], strides = [1, 1]} : vector<16x32xf32> to vector<16x8xf32>
    %289 = arith.truncf %288 : vector<16x8xf32> to vector<16x8xbf16>
    %290 = vector.extract_strided_slice %215 {offsets = [0, 24], sizes = [16, 8], strides = [1, 1]} : vector<16x32xf32> to vector<16x8xf32>
    %291 = arith.truncf %290 : vector<16x8xf32> to vector<16x8xbf16>
    %cst_99 = arith.constant dense<0.000000e+00> : vector<16x16xf32>
    %292 = tpu.matmul %289, %291, %cst_99 {dimension_numbers = #tpu.dot_dimension_numbers<[1], [1], [0], [0], [0, 0, 1, 0], [], []>} : vector<16x8xbf16>, vector<16x8xbf16>, vector<16x16xf32> -> vector<16x16xf32>
    %293 = arith.addf %292, %95 : vector<16x16xf32>
    %cst_100 = arith.constant dense<0xFF800000> : vector<16xf32>
    %294 = vector.multi_reduction <maximumf>, %293, %cst_100 [1] : vector<16x16xf32> to vector<16xf32>
    %295 = vector.shape_cast %294 : vector<16xf32> to vector<16x1xf32>
    %296 = vector.broadcast %295 : vector<16x1xf32> to vector<16x16xf32>
    %297 = arith.subf %293, %296 : vector<16x16xf32>
    %298 = math.exp %297 : vector<16x16xf32>
    %cst_101 = arith.constant dense<0.000000e+00> : vector<16xf32>
    %299 = vector.multi_reduction <add>, %298, %cst_101 [1] : vector<16x16xf32> to vector<16xf32>
    %300 = vector.shape_cast %299 : vector<16xf32> to vector<16x1xf32>
    %301 = tpu.reciprocal %300 {approx = true} : vector<16x1xf32> -> vector<16x1xf32>
    %302 = vector.broadcast %301 : vector<16x1xf32> to vector<16x16xf32>
    %303 = arith.mulf %298, %302 : vector<16x16xf32>
    %304 = vector.extract_strided_slice %216 {offsets = [0, 24], sizes = [16, 8], strides = [1, 1]} : vector<16x32xf32> to vector<16x8xf32>
    %305 = arith.truncf %303 : vector<16x16xf32> to vector<16x16xbf16>
    %306 = arith.truncf %304 : vector<16x8xf32> to vector<16x8xbf16>
    %cst_102 = arith.constant dense<0.000000e+00> : vector<16x8xf32>
    %307 = tpu.matmul %305, %306, %cst_102 {dimension_numbers = #tpu.dot_dimension_numbers<[1], [0], [0], [1], [0, 0, 1, 1], [], []>} : vector<16x16xbf16>, vector<16x8xbf16>, vector<16x8xf32> -> vector<16x8xf32>
    %308 = vector.extract_strided_slice %97 {offsets = [24, 0], sizes = [8, 32], strides = [1, 1]} : vector<32x32xbf16> to vector<8x32xbf16>
    %309 = arith.truncf %307 : vector<16x8xf32> to vector<16x8xbf16>
    %cst_103 = arith.constant dense<0.000000e+00> : vector<16x32xf32>
    %310 = tpu.matmul %309, %308, %cst_103 {dimension_numbers = #tpu.dot_dimension_numbers<[1], [0], [0], [1], [0, 0, 1, 1], [], []>} : vector<16x8xbf16>, vector<8x32xbf16>, vector<16x32xf32> -> vector<16x32xf32>
    %311 = arith.addf %287, %310 : vector<16x32xf32>
    %c3_104 = arith.constant 3 : index
    %c0_105 = arith.constant 0 : index
    %312 = vector.load %arg9[%c3_104, %c0_105] : memref<9x32xf32, #tpu.memory_space<vmem>>, vector<1x32xf32>
    %313 = vector.broadcast %312 : vector<1x32xf32> to vector<16x32xf32>
    %314 = arith.addf %311, %313 : vector<16x32xf32>
    %cst_106 = arith.constant 2.500000e-01 : f32
    %315 = vector.broadcast %cst_106 : f32 to vector<16x32xf32>
    %316 = arith.mulf %315, %314 : vector<16x32xf32>
    %317 = arith.addf %207, %316 : vector<16x32xf32>
    %c0_107 = arith.constant 0 : index
    %c0_108 = arith.constant 0 : index
    %318 = vector.load %arg4[%c0_107, %c0_108] : memref<32x96xbf16, #tpu.memory_space<vmem>>, vector<32x96xbf16>
    %319 = arith.truncf %314 : vector<16x32xf32> to vector<16x32xbf16>
    %cst_109 = arith.constant dense<0.000000e+00> : vector<16x96xf32>
    %320 = tpu.matmul %319, %318, %cst_109 {dimension_numbers = #tpu.dot_dimension_numbers<[1], [0], [0], [1], [0, 0, 1, 1], [], []>} : vector<16x32xbf16>, vector<32x96xbf16>, vector<16x96xf32> -> vector<16x96xf32>
    %c0_110 = arith.constant 0 : index
    %c0_111 = arith.constant 0 : index
    %321 = vector.load %arg5[%c0_110, %c0_111] : memref<1x96xf32, #tpu.memory_space<vmem>>, vector<1x96xf32>
    %322 = vector.broadcast %321 : vector<1x96xf32> to vector<16x96xf32>
    %323 = arith.addf %320, %322 : vector<16x96xf32>
    %324 = vector.extract_strided_slice %323 {offsets = [0, 0], sizes = [16, 32], strides = [1, 1]} : vector<16x96xf32> to vector<16x32xf32>
    %325 = vector.extract_strided_slice %323 {offsets = [0, 32], sizes = [16, 32], strides = [1, 1]} : vector<16x96xf32> to vector<16x32xf32>
    %326 = vector.extract_strided_slice %323 {offsets = [0, 64], sizes = [16, 32], strides = [1, 1]} : vector<16x96xf32> to vector<16x32xf32>
    %327 = vector.extract_strided_slice %324 {offsets = [0, 0], sizes = [16, 8], strides = [1, 1]} : vector<16x32xf32> to vector<16x8xf32>
    %328 = arith.truncf %327 : vector<16x8xf32> to vector<16x8xbf16>
    %329 = vector.extract_strided_slice %325 {offsets = [0, 0], sizes = [16, 8], strides = [1, 1]} : vector<16x32xf32> to vector<16x8xf32>
    %330 = arith.truncf %329 : vector<16x8xf32> to vector<16x8xbf16>
    %cst_112 = arith.constant dense<0.000000e+00> : vector<16x16xf32>
    %331 = tpu.matmul %328, %330, %cst_112 {dimension_numbers = #tpu.dot_dimension_numbers<[1], [1], [0], [0], [0, 0, 1, 0], [], []>} : vector<16x8xbf16>, vector<16x8xbf16>, vector<16x16xf32> -> vector<16x16xf32>
    %332 = arith.addf %331, %95 : vector<16x16xf32>
    %cst_113 = arith.constant dense<0xFF800000> : vector<16xf32>
    %333 = vector.multi_reduction <maximumf>, %332, %cst_113 [1] : vector<16x16xf32> to vector<16xf32>
    %334 = vector.shape_cast %333 : vector<16xf32> to vector<16x1xf32>
    %335 = vector.broadcast %334 : vector<16x1xf32> to vector<16x16xf32>
    %336 = arith.subf %332, %335 : vector<16x16xf32>
    %337 = math.exp %336 : vector<16x16xf32>
    %cst_114 = arith.constant dense<0.000000e+00> : vector<16xf32>
    %338 = vector.multi_reduction <add>, %337, %cst_114 [1] : vector<16x16xf32> to vector<16xf32>
    %339 = vector.shape_cast %338 : vector<16xf32> to vector<16x1xf32>
    %340 = tpu.reciprocal %339 {approx = true} : vector<16x1xf32> -> vector<16x1xf32>
    %341 = vector.broadcast %340 : vector<16x1xf32> to vector<16x16xf32>
    %342 = arith.mulf %337, %341 : vector<16x16xf32>
    %343 = vector.extract_strided_slice %326 {offsets = [0, 0], sizes = [16, 8], strides = [1, 1]} : vector<16x32xf32> to vector<16x8xf32>
    %344 = arith.truncf %342 : vector<16x16xf32> to vector<16x16xbf16>
    %345 = arith.truncf %343 : vector<16x8xf32> to vector<16x8xbf16>
    %cst_115 = arith.constant dense<0.000000e+00> : vector<16x8xf32>
    %346 = tpu.matmul %344, %345, %cst_115 {dimension_numbers = #tpu.dot_dimension_numbers<[1], [0], [0], [1], [0, 0, 1, 1], [], []>} : vector<16x16xbf16>, vector<16x8xbf16>, vector<16x8xf32> -> vector<16x8xf32>
    %347 = vector.extract_strided_slice %97 {offsets = [0, 0], sizes = [8, 32], strides = [1, 1]} : vector<32x32xbf16> to vector<8x32xbf16>
    %348 = arith.truncf %346 : vector<16x8xf32> to vector<16x8xbf16>
    %cst_116 = arith.constant dense<0.000000e+00> : vector<16x32xf32>
    %349 = tpu.matmul %348, %347, %cst_116 {dimension_numbers = #tpu.dot_dimension_numbers<[1], [0], [0], [1], [0, 0, 1, 1], [], []>} : vector<16x8xbf16>, vector<8x32xbf16>, vector<16x32xf32> -> vector<16x32xf32>
    %350 = vector.extract_strided_slice %324 {offsets = [0, 8], sizes = [16, 8], strides = [1, 1]} : vector<16x32xf32> to vector<16x8xf32>
    %351 = arith.truncf %350 : vector<16x8xf32> to vector<16x8xbf16>
    %352 = vector.extract_strided_slice %325 {offsets = [0, 8], sizes = [16, 8], strides = [1, 1]} : vector<16x32xf32> to vector<16x8xf32>
    %353 = arith.truncf %352 : vector<16x8xf32> to vector<16x8xbf16>
    %cst_117 = arith.constant dense<0.000000e+00> : vector<16x16xf32>
    %354 = tpu.matmul %351, %353, %cst_117 {dimension_numbers = #tpu.dot_dimension_numbers<[1], [1], [0], [0], [0, 0, 1, 0], [], []>} : vector<16x8xbf16>, vector<16x8xbf16>, vector<16x16xf32> -> vector<16x16xf32>
    %355 = arith.addf %354, %95 : vector<16x16xf32>
    %cst_118 = arith.constant dense<0xFF800000> : vector<16xf32>
    %356 = vector.multi_reduction <maximumf>, %355, %cst_118 [1] : vector<16x16xf32> to vector<16xf32>
    %357 = vector.shape_cast %356 : vector<16xf32> to vector<16x1xf32>
    %358 = vector.broadcast %357 : vector<16x1xf32> to vector<16x16xf32>
    %359 = arith.subf %355, %358 : vector<16x16xf32>
    %360 = math.exp %359 : vector<16x16xf32>
    %cst_119 = arith.constant dense<0.000000e+00> : vector<16xf32>
    %361 = vector.multi_reduction <add>, %360, %cst_119 [1] : vector<16x16xf32> to vector<16xf32>
    %362 = vector.shape_cast %361 : vector<16xf32> to vector<16x1xf32>
    %363 = tpu.reciprocal %362 {approx = true} : vector<16x1xf32> -> vector<16x1xf32>
    %364 = vector.broadcast %363 : vector<16x1xf32> to vector<16x16xf32>
    %365 = arith.mulf %360, %364 : vector<16x16xf32>
    %366 = vector.extract_strided_slice %326 {offsets = [0, 8], sizes = [16, 8], strides = [1, 1]} : vector<16x32xf32> to vector<16x8xf32>
    %367 = arith.truncf %365 : vector<16x16xf32> to vector<16x16xbf16>
    %368 = arith.truncf %366 : vector<16x8xf32> to vector<16x8xbf16>
    %cst_120 = arith.constant dense<0.000000e+00> : vector<16x8xf32>
    %369 = tpu.matmul %367, %368, %cst_120 {dimension_numbers = #tpu.dot_dimension_numbers<[1], [0], [0], [1], [0, 0, 1, 1], [], []>} : vector<16x16xbf16>, vector<16x8xbf16>, vector<16x8xf32> -> vector<16x8xf32>
    %370 = vector.extract_strided_slice %97 {offsets = [8, 0], sizes = [8, 32], strides = [1, 1]} : vector<32x32xbf16> to vector<8x32xbf16>
    %371 = arith.truncf %369 : vector<16x8xf32> to vector<16x8xbf16>
    %cst_121 = arith.constant dense<0.000000e+00> : vector<16x32xf32>
    %372 = tpu.matmul %371, %370, %cst_121 {dimension_numbers = #tpu.dot_dimension_numbers<[1], [0], [0], [1], [0, 0, 1, 1], [], []>} : vector<16x8xbf16>, vector<8x32xbf16>, vector<16x32xf32> -> vector<16x32xf32>
    %373 = arith.addf %349, %372 : vector<16x32xf32>
    %374 = vector.extract_strided_slice %324 {offsets = [0, 16], sizes = [16, 8], strides = [1, 1]} : vector<16x32xf32> to vector<16x8xf32>
    %375 = arith.truncf %374 : vector<16x8xf32> to vector<16x8xbf16>
    %376 = vector.extract_strided_slice %325 {offsets = [0, 16], sizes = [16, 8], strides = [1, 1]} : vector<16x32xf32> to vector<16x8xf32>
    %377 = arith.truncf %376 : vector<16x8xf32> to vector<16x8xbf16>
    %cst_122 = arith.constant dense<0.000000e+00> : vector<16x16xf32>
    %378 = tpu.matmul %375, %377, %cst_122 {dimension_numbers = #tpu.dot_dimension_numbers<[1], [1], [0], [0], [0, 0, 1, 0], [], []>} : vector<16x8xbf16>, vector<16x8xbf16>, vector<16x16xf32> -> vector<16x16xf32>
    %379 = arith.addf %378, %95 : vector<16x16xf32>
    %cst_123 = arith.constant dense<0xFF800000> : vector<16xf32>
    %380 = vector.multi_reduction <maximumf>, %379, %cst_123 [1] : vector<16x16xf32> to vector<16xf32>
    %381 = vector.shape_cast %380 : vector<16xf32> to vector<16x1xf32>
    %382 = vector.broadcast %381 : vector<16x1xf32> to vector<16x16xf32>
    %383 = arith.subf %379, %382 : vector<16x16xf32>
    %384 = math.exp %383 : vector<16x16xf32>
    %cst_124 = arith.constant dense<0.000000e+00> : vector<16xf32>
    %385 = vector.multi_reduction <add>, %384, %cst_124 [1] : vector<16x16xf32> to vector<16xf32>
    %386 = vector.shape_cast %385 : vector<16xf32> to vector<16x1xf32>
    %387 = tpu.reciprocal %386 {approx = true} : vector<16x1xf32> -> vector<16x1xf32>
    %388 = vector.broadcast %387 : vector<16x1xf32> to vector<16x16xf32>
    %389 = arith.mulf %384, %388 : vector<16x16xf32>
    %390 = vector.extract_strided_slice %326 {offsets = [0, 16], sizes = [16, 8], strides = [1, 1]} : vector<16x32xf32> to vector<16x8xf32>
    %391 = arith.truncf %389 : vector<16x16xf32> to vector<16x16xbf16>
    %392 = arith.truncf %390 : vector<16x8xf32> to vector<16x8xbf16>
    %cst_125 = arith.constant dense<0.000000e+00> : vector<16x8xf32>
    %393 = tpu.matmul %391, %392, %cst_125 {dimension_numbers = #tpu.dot_dimension_numbers<[1], [0], [0], [1], [0, 0, 1, 1], [], []>} : vector<16x16xbf16>, vector<16x8xbf16>, vector<16x8xf32> -> vector<16x8xf32>
    %394 = vector.extract_strided_slice %97 {offsets = [16, 0], sizes = [8, 32], strides = [1, 1]} : vector<32x32xbf16> to vector<8x32xbf16>
    %395 = arith.truncf %393 : vector<16x8xf32> to vector<16x8xbf16>
    %cst_126 = arith.constant dense<0.000000e+00> : vector<16x32xf32>
    %396 = tpu.matmul %395, %394, %cst_126 {dimension_numbers = #tpu.dot_dimension_numbers<[1], [0], [0], [1], [0, 0, 1, 1], [], []>} : vector<16x8xbf16>, vector<8x32xbf16>, vector<16x32xf32> -> vector<16x32xf32>
    %397 = arith.addf %373, %396 : vector<16x32xf32>
    %398 = vector.extract_strided_slice %324 {offsets = [0, 24], sizes = [16, 8], strides = [1, 1]} : vector<16x32xf32> to vector<16x8xf32>
    %399 = arith.truncf %398 : vector<16x8xf32> to vector<16x8xbf16>
    %400 = vector.extract_strided_slice %325 {offsets = [0, 24], sizes = [16, 8], strides = [1, 1]} : vector<16x32xf32> to vector<16x8xf32>
    %401 = arith.truncf %400 : vector<16x8xf32> to vector<16x8xbf16>
    %cst_127 = arith.constant dense<0.000000e+00> : vector<16x16xf32>
    %402 = tpu.matmul %399, %401, %cst_127 {dimension_numbers = #tpu.dot_dimension_numbers<[1], [1], [0], [0], [0, 0, 1, 0], [], []>} : vector<16x8xbf16>, vector<16x8xbf16>, vector<16x16xf32> -> vector<16x16xf32>
    %403 = arith.addf %402, %95 : vector<16x16xf32>
    %cst_128 = arith.constant dense<0xFF800000> : vector<16xf32>
    %404 = vector.multi_reduction <maximumf>, %403, %cst_128 [1] : vector<16x16xf32> to vector<16xf32>
    %405 = vector.shape_cast %404 : vector<16xf32> to vector<16x1xf32>
    %406 = vector.broadcast %405 : vector<16x1xf32> to vector<16x16xf32>
    %407 = arith.subf %403, %406 : vector<16x16xf32>
    %408 = math.exp %407 : vector<16x16xf32>
    %cst_129 = arith.constant dense<0.000000e+00> : vector<16xf32>
    %409 = vector.multi_reduction <add>, %408, %cst_129 [1] : vector<16x16xf32> to vector<16xf32>
    %410 = vector.shape_cast %409 : vector<16xf32> to vector<16x1xf32>
    %411 = tpu.reciprocal %410 {approx = true} : vector<16x1xf32> -> vector<16x1xf32>
    %412 = vector.broadcast %411 : vector<16x1xf32> to vector<16x16xf32>
    %413 = arith.mulf %408, %412 : vector<16x16xf32>
    %414 = vector.extract_strided_slice %326 {offsets = [0, 24], sizes = [16, 8], strides = [1, 1]} : vector<16x32xf32> to vector<16x8xf32>
    %415 = arith.truncf %413 : vector<16x16xf32> to vector<16x16xbf16>
    %416 = arith.truncf %414 : vector<16x8xf32> to vector<16x8xbf16>
    %cst_130 = arith.constant dense<0.000000e+00> : vector<16x8xf32>
    %417 = tpu.matmul %415, %416, %cst_130 {dimension_numbers = #tpu.dot_dimension_numbers<[1], [0], [0], [1], [0, 0, 1, 1], [], []>} : vector<16x16xbf16>, vector<16x8xbf16>, vector<16x8xf32> -> vector<16x8xf32>
    %418 = vector.extract_strided_slice %97 {offsets = [24, 0], sizes = [8, 32], strides = [1, 1]} : vector<32x32xbf16> to vector<8x32xbf16>
    %419 = arith.truncf %417 : vector<16x8xf32> to vector<16x8xbf16>
    %cst_131 = arith.constant dense<0.000000e+00> : vector<16x32xf32>
    %420 = tpu.matmul %419, %418, %cst_131 {dimension_numbers = #tpu.dot_dimension_numbers<[1], [0], [0], [1], [0, 0, 1, 1], [], []>} : vector<16x8xbf16>, vector<8x32xbf16>, vector<16x32xf32> -> vector<16x32xf32>
    %421 = arith.addf %397, %420 : vector<16x32xf32>
    %c4_132 = arith.constant 4 : index
    %c0_133 = arith.constant 0 : index
    %422 = vector.load %arg9[%c4_132, %c0_133] : memref<9x32xf32, #tpu.memory_space<vmem>>, vector<1x32xf32>
    %423 = vector.broadcast %422 : vector<1x32xf32> to vector<16x32xf32>
    %424 = arith.addf %421, %423 : vector<16x32xf32>
    %cst_134 = arith.constant 1.250000e-01 : f32
    %425 = vector.broadcast %cst_134 : f32 to vector<16x32xf32>
    %426 = arith.mulf %425, %424 : vector<16x32xf32>
    %427 = arith.addf %317, %426 : vector<16x32xf32>
    %c1_135 = arith.constant 1 : index
    %c0_136 = arith.constant 0 : index
    %c0_137 = arith.constant 0 : index
    %428 = vector.load %arg1[%c1_135, %c0_136, %c0_137] : memref<5x32x32xbf16, #tpu.memory_space<vmem>>, vector<1x32x32xbf16>
    %429 = vector.shape_cast %428 : vector<1x32x32xbf16> to vector<32x32xbf16>
    %430 = arith.truncf %427 : vector<16x32xf32> to vector<16x32xbf16>
    %cst_138 = arith.constant dense<0.000000e+00> : vector<16x32xf32>
    %431 = tpu.matmul %430, %429, %cst_138 {dimension_numbers = #tpu.dot_dimension_numbers<[1], [0], [0], [1], [0, 0, 1, 1], [], []>} : vector<16x32xbf16>, vector<32x32xbf16>, vector<16x32xf32> -> vector<16x32xf32>
    %432 = arith.addf %12, %431 : vector<16x32xf32>
    %c5 = arith.constant 5 : index
    %c0_139 = arith.constant 0 : index
    %433 = vector.load %arg9[%c5, %c0_139] : memref<9x32xf32, #tpu.memory_space<vmem>>, vector<1x32xf32>
    %434 = vector.broadcast %433 : vector<1x32xf32> to vector<16x32xf32>
    %435 = arith.addf %432, %434 : vector<16x32xf32>
    %436 = arith.negf %435 : vector<16x32xf32>
    %437 = math.exp %436 : vector<16x32xf32>
    %cst_140 = arith.constant 1.000000e+00 : f32
    %438 = vector.broadcast %cst_140 : f32 to vector<16x32xf32>
    %439 = arith.addf %438, %437 : vector<16x32xf32>
    %440 = arith.divf %438, %439 : vector<16x32xf32>
    %441 = arith.subf %427, %0 : vector<16x32xf32>
    %442 = arith.mulf %440, %441 : vector<16x32xf32>
    %443 = arith.addf %0, %442 : vector<16x32xf32>
    %cst_141 = arith.constant dense<0.000000e+00> : vector<16xf32>
    %444 = vector.multi_reduction <add>, %443, %cst_141 [1] : vector<16x32xf32> to vector<16xf32>
    %445 = vector.shape_cast %444 : vector<16xf32> to vector<16x1xf32>
    %cst_142 = arith.constant 3.200000e+01 : f32
    %446 = vector.broadcast %cst_142 : f32 to vector<16x1xf32>
    %447 = arith.divf %445, %446 : vector<16x1xf32>
    %448 = vector.broadcast %447 : vector<16x1xf32> to vector<16x32xf32>
    %449 = arith.subf %443, %448 : vector<16x32xf32>
    %450 = arith.mulf %449, %449 : vector<16x32xf32>
    %cst_143 = arith.constant dense<0.000000e+00> : vector<16xf32>
    %451 = vector.multi_reduction <add>, %450, %cst_143 [1] : vector<16x32xf32> to vector<16xf32>
    %452 = vector.shape_cast %451 : vector<16xf32> to vector<16x1xf32>
    %cst_144 = arith.constant 3.200000e+01 : f32
    %453 = vector.broadcast %cst_144 : f32 to vector<16x1xf32>
    %454 = arith.divf %452, %453 : vector<16x1xf32>
    %455 = vector.broadcast %447 : vector<16x1xf32> to vector<16x32xf32>
    %456 = arith.subf %443, %455 : vector<16x32xf32>
    %cst_145 = arith.constant 9.99999974E-6 : f32
    %457 = vector.broadcast %cst_145 : f32 to vector<16x1xf32>
    %458 = arith.addf %454, %457 : vector<16x1xf32>
    %459 = math.rsqrt %458 : vector<16x1xf32>
    %460 = vector.broadcast %459 : vector<16x1xf32> to vector<16x32xf32>
    %461 = arith.mulf %456, %460 : vector<16x32xf32>
    %c6 = arith.constant 6 : index
    %c0_146 = arith.constant 0 : index
    %462 = vector.load %arg9[%c6, %c0_146] : memref<9x32xf32, #tpu.memory_space<vmem>>, vector<1x32xf32>
    %463 = vector.broadcast %462 : vector<1x32xf32> to vector<16x32xf32>
    %464 = arith.mulf %461, %463 : vector<16x32xf32>
    %c7 = arith.constant 7 : index
    %c0_147 = arith.constant 0 : index
    %465 = vector.load %arg9[%c7, %c0_147] : memref<9x32xf32, #tpu.memory_space<vmem>>, vector<1x32xf32>
    %466 = vector.broadcast %465 : vector<1x32xf32> to vector<16x32xf32>
    %467 = arith.addf %464, %466 : vector<16x32xf32>
    %c2_148 = arith.constant 2 : index
    %c0_149 = arith.constant 0 : index
    %c0_150 = arith.constant 0 : index
    %468 = vector.load %arg1[%c2_148, %c0_149, %c0_150] : memref<5x32x32xbf16, #tpu.memory_space<vmem>>, vector<1x32x32xbf16>
    %469 = vector.shape_cast %468 : vector<1x32x32xbf16> to vector<32x32xbf16>
    %470 = arith.truncf %467 : vector<16x32xf32> to vector<16x32xbf16>
    %cst_151 = arith.constant dense<0.000000e+00> : vector<16x32xf32>
    %471 = tpu.matmul %470, %469, %cst_151 {dimension_numbers = #tpu.dot_dimension_numbers<[1], [0], [0], [1], [0, 0, 1, 1], [], []>} : vector<16x32xbf16>, vector<32x32xbf16>, vector<16x32xf32> -> vector<16x32xf32>
    %c8 = arith.constant 8 : index
    %c0_152 = arith.constant 0 : index
    %472 = vector.load %arg9[%c8, %c0_152] : memref<9x32xf32, #tpu.memory_space<vmem>>, vector<1x32xf32>
    %473 = vector.broadcast %472 : vector<1x32xf32> to vector<16x32xf32>
    %474 = arith.addf %471, %473 : vector<16x32xf32>
    %c0_153 = arith.constant 0 : index
    %c0_154 = arith.constant 0 : index
    %475 = vector.load %arg11[%c0_153, %c0_154] : memref<16x32xf32, #tpu.memory_space<vmem>>, vector<16x32xf32>
    tpu.vector_store %arg11[%c0_153, %c0_154], %474 {strides = array<i32>} : memref<16x32xf32, #tpu.memory_space<vmem>>, vector<16x32xf32>,
    return
  }
}

</mosaic_0001>

<llo_original>
// kernel: tpu_custom_call.1
$region0: #{tpu_custom_call.1}
  #allocation0 [shape = 'u32[]', space=smem, size = 0x4, offset = 0x4, fixed_abs, tag = 'smem constant byte address 0x4 - core index']
  #allocation1 [shape = 'u32[144,128]{1,0:T(1,128)}', space=vmem, size = 0x12000, scoped, tag = 'internal scratch']
  %s0 = inlined_call_operand.vmem [shape: f32[16,32], index: 0, kind: input, shape index: {}]
  %s1 = inlined_call_operand.vmem [shape: bf16[5,32,32], index: 1, kind: input, shape index: {}]
  %s2 = inlined_call_operand.vmem [shape: bf16[32,256], index: 2, kind: input, shape index: {}]
  %s3 = inlined_call_operand.vmem [shape: bf16[192,32], index: 3, kind: input, shape index: {}]
  %s4 = inlined_call_operand.vmem [shape: bf16[32,96], index: 4, kind: input, shape index: {}]
  %s5 = inlined_call_operand.vmem [shape: f32[1,96], index: 5, kind: input, shape index: {}]
  %s6 = inlined_call_operand.vmem [shape: bf16[192,32], index: 6, kind: input, shape index: {}]
  %s7 = inlined_call_operand.vmem [shape: bf16[32,192], index: 7, kind: input, shape index: {}]
  %s8 = inlined_call_operand.vmem [shape: f32[3,192], index: 8, kind: input, shape index: {}]
  %s9 = inlined_call_operand.vmem [shape: f32[9,32], index: 9, kind: input, shape index: {}]
  %s10 = inlined_call_operand.vmem [shape: f32[16,16], index: 10, kind: input, shape index: {}]
  %s11 = inlined_call_operand.hbm [shape: f32[16,32], index: 11, kind: output, shape index: {}]
  %s12 = sld [smem:[#allocation0]]
  $region54: #{tpu_custom_call.1} parent=0
    _
  %s14 = ssub.s32 1, %s12
  %s15 = scalar_select 0, %s14, %s12
  $region1: #{tpu_custom_call.1} parent=0
    #allocation2 [shape = 'u8[8192]{0}', space=vmem, size = 0x2000, scoped, tag = 'output window, operand 0, single buffered']
    #allocation3 [shape = 's32[1]{0}', space=sflag, size = 0x4, scoped, tag = 'scoped memory for tpu_custom_call.1']
    %16 = vsyncpa [#allocation3], 0
    // Predicated region
    $region2: #{tpu_custom_call.1} parent=1 // pred_check
      _
    $region3: #{tpu_custom_call.1} parent=1 // pred_check_branch
      %18 = sbr.rel (0) target = $region5
    $region4: #{tpu_custom_call.1} parent=1 // pred_region
      _
    $region5: #{tpu_custom_call.1} parent=1 // pred_fallthru
      _
    // Predicated region
    $region6: #{tpu_custom_call.1} parent=1 // pred_check
      _
    $region7: #{tpu_custom_call.1} parent=1 // pred_check_branch
      %20 = sbr.rel (0) target = $region9
    $region8: #{tpu_custom_call.1} parent=1 // pred_region
      _
    $region9: #{tpu_custom_call.1} parent=1 // pred_fallthru
      _
    // Predicated region
    $region10: #{tpu_custom_call.1} parent=1 // pred_check
      _
    $region11: #{tpu_custom_call.1} parent=1 // pred_check_branch
      %22 = sbr.rel (0) target = $region13
    $region12: #{tpu_custom_call.1} parent=1 // pred_region
      _
    $region13: #{tpu_custom_call.1} parent=1 // pred_fallthru
      _
    // Predicated region
    $region14: #{tpu_custom_call.1} parent=1 // pred_check
      _
    $region15: #{tpu_custom_call.1} parent=1 // pred_check_branch
      %24 = sbr.rel (0) target = $region17
    $region16: #{tpu_custom_call.1} parent=1 // pred_region
      _
    $region17: #{tpu_custom_call.1} parent=1 // pred_fallthru
      _
    // Predicated region
    $region18: #{tpu_custom_call.1} parent=1 // pred_check
      _
    $region19: #{tpu_custom_call.1} parent=1 // pred_check_branch
      %26 = sbr.rel (0) target = $region21
    $region20: #{tpu_custom_call.1} parent=1 // pred_region
      _
    $region21: #{tpu_custom_call.1} parent=1 // pred_fallthru
      _
    // Predicated region
    $region22: #{tpu_custom_call.1} parent=1 // pred_check
      _
    $region23: #{tpu_custom_call.1} parent=1 // pred_check_branch
      %28 = sbr.rel (0) target = $region25
    $region24: #{tpu_custom_call.1} parent=1 // pred_region
      _
    $region25: #{tpu_custom_call.1} parent=1 // pred_fallthru
      _
    // Predicated region
    $region26: #{tpu_custom_call.1} parent=1 // pred_check
      _
    $region27: #{tpu_custom_call.1} parent=1 // pred_check_branch
      %30 = sbr.rel (0) target = $region29
    $region28: #{tpu_custom_call.1} parent=1 // pred_region
      _
    $region29: #{tpu_custom_call.1} parent=1 // pred_fallthru
      _
    // Predicated region
    $region30: #{tpu_custom_call.1} parent=1 // pred_check
      _
    $region31: #{tpu_custom_call.1} parent=1 // pred_check_branch
      %32 = sbr.rel (0) target = $region33
    $region32: #{tpu_custom_call.1} parent=1 // pred_region
      _
    $region33: #{tpu_custom_call.1} parent=1 // pred_fallthru
      _
    // Predicated region
    $region34: #{tpu_custom_call.1} parent=1 // pred_check
      _
    $region35: #{tpu_custom_call.1} parent=1 // pred_check_branch
      %34 = sbr.rel (0) target = $region37
    $region36: #{tpu_custom_call.1} parent=1 // pred_region
      _
    $region37: #{tpu_custom_call.1} parent=1 // pred_fallthru
      _
    // Predicated region
    $region38: #{tpu_custom_call.1} parent=1 // pred_check
      _
    $region39: #{tpu_custom_call.1} parent=1 // pred_check_branch
      %36 = sbr.rel (0) target = $region41
    $region40: #{tpu_custom_call.1} parent=1 // pred_region
      _
    $region41: #{tpu_custom_call.1} parent=1 // pred_fallthru
      _
    // Predicated region
    $region42: #{tpu_custom_call.1} parent=1 // pred_check
      _
    $region43: #{tpu_custom_call.1} parent=1 // pred_check_branch
      %38 = sbr.rel (0) target = $region45
    $region44: #{tpu_custom_call.1} parent=1 // pred_region
      _
    $region45: #{tpu_custom_call.1} parent=1 // pred_fallthru
      _
    %v40 = vld [vmem:[%s0] sm:$0xff]
    %v41 = vld [vmem:[%s0 + $0x8] sm:$0xff]
    %v42 = vld [vmem:[%s2] sm:$0xff]
    %v43 = vld [vmem:[%s2 + $0x8] sm:$0xff]
    %v44 = vld [vmem:[%s2 + $0x10] sm:$0xff]
    %v45 = vld [vmem:[%s2 + $0x18] sm:$0xff]
    %v46 = vpack.c.bf16 %v41, %v40
    %v51 = vunpack.c.l.b16 %v42
    %v52 = vunpack.c.h.b16 %v42
    %v53 = vunpack.c.l.b16 %v43
    %v54 = vunpack.c.h.b16 %v43
    %v55 = vunpack.c.l.b16 %v44
    %v56 = vunpack.c.h.b16 %v44
    %v57 = vunpack.c.l.b16 %v45
    %v58 = vunpack.c.h.b16 %v45
    %v59 = vpack.c.b16 %v53, %v51
    %v60 = vpack.c.b16 %v54, %v52
    %v61 = vpack.c.b16 %v57, %v55
    %v62 = vpack.c.b16 %v58, %v56
    %vm67 = vcmask 261120
    %v69 = vsel %vm67, %v46, 0
    %71 = vmatprep.subr.bf16.mxu0 %v60
    %72 = vmatpush1.bf16.msra.mxu0 %v59
    %73 = vmatprep.subr.bf16.mxu0 %v62
    %74 = vmatpush1.bf16.msra.mxu0 %v61
    %75 = vmatprep.subr.bf16.mxu0 0
    %76 = vmatpush1.bf16.msra.mxu0 0
    %77 = vmatprep.subr.bf16.mxu0 0
    %78 = vmatpush1.bf16.msra.mxu0 0
    %79 = vmatprep.subr.bf16.mxu0 0
    %80 = vmatpush1.bf16.msra.mxu0 0
    %81 = vmatprep.subr.bf16.mxu0 0
    %82 = vmatpush1.bf16.msra.mxu0 0
    %83 = vmatprep.subr.bf16.mxu0 0
    %84 = vmatpush1.bf16.msra.mxu0 0
    %85 = vmatprep.subr.bf16.mxu0 0
    %86 = vmatpush1.bf16.msra.mxu0 0
    %87 = vmatprep.subr.bf16.mxu0 0
    %88 = vmatpush1.bf16.msra.mxu0 0
    %89 = vmatprep.subr.bf16.mxu0 0
    %90 = vmatpush1.bf16.msra.mxu0 0
    %91 = vmatprep.subr.bf16.mxu0 0
    %92 = vmatpush1.bf16.msra.mxu0 0
    %93 = vmatprep.subr.bf16.mxu0 0
    %94 = vmatpush1.bf16.msra.mxu0 0
    %95 = vmatprep.subr.bf16.mxu0 0
    %96 = vmatpush1.bf16.msra.mxu0 0
    %97 = vmatprep.subr.bf16.mxu0 0
    %98 = vmatpush1.bf16.msra.mxu0 0
    %99 = vmatprep.subr.bf16.mxu0 0
    %100 = vmatpush1.bf16.msra.mxu0 0
    %101 = vmatprep.subr.bf16.mxu0 0
    %102 = vmatpush1.bf16.msra.mxu0 0
    %103 = vmatprep.mubr.bf16.mxu0 0
    %104 = vmatmul.mubr.bf16.gmra.mrb[0].mxu0 %v69
    %v105 = vpop.f32.mrb[0].mxu0
    %v106 = vadd.f32 0.0, %v105
    %v107 = vpop.f32.mrb[0].mxu0
    %v108 = vadd.f32 0.0, %v107
    %v109 = vpop.f32.mrb[0].mxu0
    %v110 = vadd.f32 0.0, %v109
    %v111 = vpop.f32.mrb[0].mxu0
    %v112 = vadd.f32 0.0, %v111
    %113 = vdwg.mxu0
    %v114 = vld [vmem:[%s8] ss:$4 sm:$0x3]
    %v116 = vlaneseq
    %v117 = vshrl.u32 %v116, 7
    %v118 = vsub.s32 0, %v117
    %v119 = vrot.slane %v114, %v118
    %v120 = vlaneseq
    %v121 = vshrl.u32 %v120, 7
    %v122 = vsub.s32 1, %v121
    %v123 = vrot.slane %v114, %v122
    %v126 = vadd.f32 %v106, %v119
    %v127 = vadd.f32 %v108, %v123
    %v128 = vadd.f32 %v110, %v119
    %v129 = vadd.f32 %v112, %v123
    %v130 = vld [vmem:[%s9] sm:$0x1]
    %v131 = vlaneseq
    %v132 = vshrl.u32 %v131, 7
    %v133 = vsub.s32 0, %v132
    %v134 = vrot.slane %v130, %v133
    %136 = vrot.lane.b32.xlu0 %v134, 64
    %v137 = vpop.permute.xlu0 %136
    %v139 = vadd.f32 %v108, %v137
    %v140 = vadd.f32 %v112, %v137
    %v141 = vmul.f32 %v139, 0.5
    %v142 = vmul.f32 %v140, 0.5
    %v143 = vmul.f32 %v139, 0.044715
    %v144 = vmul.f32 %v140, 0.044715
    %v145 = vmul.f32 %v143, %v139
    %v146 = vmul.f32 %v144, %v140
    %v147 = vmul.f32 %v145, %v139
    %v148 = vmul.f32 %v146, %v140
    %v149 = vadd.f32 %v139, %v147
    %v150 = vadd.f32 %v140, %v148
    %v151 = vmul.f32 %v149, 0.7978846
    %v152 = vmul.f32 %v150, 0.7978846
    %v153 = vtanh.pop %v151
    %v154 = vtanh.pop %v152
    %v155 = vadd.f32 %v153, 1.0
    %v156 = vadd.f32 %v154, 1.0
    %v157 = vmul.f32 %v141, %v155
    %v158 = vmul.f32 %v142, %v156
    %v159 = vld [vmem:[%s1] sm:$0xf]
    %v160 = vld [vmem:[%s1 + $0x4] sm:$0xf]
    %v161 = vld [vmem:[%s1 + $0x8] sm:$0xf]
    %v162 = vld [vmem:[%s1 + $0xc] sm:$0xf]
    %v163 = vpack.c.bf16 %v158, %v157
    %v164 = vld [vmem:[%s9 + $0x1] sm:$0x1]
    %v165 = vlaneseq
    %v166 = vshrl.u32 %v165, 7
    %v167 = vsub.s32 0, %v166
    %v168 = vrot.slane %v164, %v167
    %170 = vrot.lane.b32.xlu0 %v163, 64
    %v171 = vpop.permute.xlu0 %170
    %v176 = vunpack.c.l.b16 %v159
    %v177 = vunpack.c.l.b16 %v160
    %v178 = vunpack.c.l.b16 %v161
    %v179 = vunpack.c.l.b16 %v162
    %v180 = vpack.c.b16 %v177, %v176
    %v181 = vpack.c.b16 %v179, %v178
    %v185 = vsel %vm67, %v171, 0
    %187 = vmatprep.subr.bf16.mxu0 0
    %188 = vmatpush1.bf16.msra.mxu0 %v180
    %189 = vmatprep.subr.bf16.mxu0 0
    %190 = vmatpush1.bf16.msra.mxu0 %v181
    %191 = vmatprep.subr.bf16.mxu0 0
    %192 = vmatpush1.bf16.msra.mxu0 0
    %193 = vmatprep.subr.bf16.mxu0 0
    %194 = vmatpush1.bf16.msra.mxu0 0
    %195 = vmatprep.subr.bf16.mxu0 0
    %196 = vmatpush1.bf16.msra.mxu0 0
    %197 = vmatprep.subr.bf16.mxu0 0
    %198 = vmatpush1.bf16.msra.mxu0 0
    %199 = vmatprep.subr.bf16.mxu0 0
    %200 = vmatpush1.bf16.msra.mxu0 0
    %201 = vmatprep.subr.bf16.mxu0 0
    %202 = vmatpush1.bf16.msra.mxu0 0
    %203 = vmatprep.subr.bf16.mxu0 0
    %204 = vmatpush1.bf16.msra.mxu0 0
    %205 = vmatprep.subr.bf16.mxu0 0
    %206 = vmatpush1.bf16.msra.mxu0 0
    %207 = vmatprep.subr.bf16.mxu0 0
    %208 = vmatpush1.bf16.msra.mxu0 0
    %209 = vmatprep.subr.bf16.mxu0 0
    %210 = vmatpush1.bf16.msra.mxu0 0
    %211 = vmatprep.subr.bf16.mxu0 0
    %212 = vmatpush1.bf16.msra.mxu0 0
    %213 = vmatprep.subr.bf16.mxu0 0
    %214 = vmatpush1.bf16.msra.mxu0 0
    %215 = vmatprep.subr.bf16.mxu0 0
    %216 = vmatpush1.bf16.msra.mxu0 0
    %217 = vmatprep.subr.bf16.mxu0 0
    %218 = vmatpush1.bf16.msra.mxu0 0
    %219 = vmatprep.mubr.bf16.mxu0 0
    %220 = vmatmul.mubr.bf16.gmra.mrb[0].mxu0 %v185
    %v221 = vpop.f32.mrb[0].mxu0
    %v222 = vadd.f32 %v168, %v221
    %v223 = vpop.f32.mrb[0].mxu0
    %v224 = vpop.f32.mrb[0].mxu0
    %v225 = vadd.f32 %v168, %v224
    %v226 = vpop.f32.mrb[0].mxu0
    %227 = vdwg.mxu0
    %v228 = vsel %vm67, %v222, -inf
    %229 = vmax.xlane.f32.xlu0 %v228
    %v230 = vpop.xlane.xlu0 %229
    %v231 = vsel %vm67, %v225, -inf
    %232 = vmax.xlane.f32.xlu0 %v231
    %v233 = vpop.xlane.xlu0 %232
    %v234 = vsub.f32 %v222, %v230
    %v235 = vsub.f32 %v225, %v233
    %v236 = vmul.f32 %v234, 1.442695
    %v237 = vpow.pop %v236
    %v238 = vmul.f32 %v235, 1.442695
    %v239 = vpow.pop %v238
    %v240 = vsel %vm67, %v237, 0.0
    %241 = vadd.xlane.f32.xlu0 %v240
    %v242 = vpop.xlane.xlu0 %241
    %v243 = vsel %vm67, %v239, 0.0
    %244 = vadd.xlane.f32.xlu0 %v243
    %v245 = vpop.xlane.xlu0 %244
    %v246 = vrcp.pop %v242
    %v247 = vrcp.pop %v245
    %v248 = vmul.f32 %v237, %v246
    %v249 = vmul.f32 %v239, %v247
    %v250 = vld [vmem:[%s6] sm:$0xf]
    %v251 = vld [vmem:[%s6 + $0x4] sm:$0xf]
    %v252 = vld [vmem:[%s6 + $0x8] sm:$0xf]
    %v253 = vld [vmem:[%s6 + $0xc] sm:$0xf]
    %v254 = vld [vmem:[%s6 + $0x10] sm:$0xf]
    %v255 = vld [vmem:[%s6 + $0x14] sm:$0xf]
    %v256 = vld [vmem:[%s6 + $0x18] sm:$0xf]
    %v257 = vld [vmem:[%s6 + $0x1c] sm:$0xf]
    %v258 = vld [vmem:[%s6 + $0x20] sm:$0xf]
    %v259 = vld [vmem:[%s6 + $0x24] sm:$0xf]
    %v260 = vld [vmem:[%s6 + $0x28] sm:$0xf]
    %v261 = vld [vmem:[%s6 + $0x2c] sm:$0xf]
    %v262 = vld [vmem:[%s6 + $0x30] sm:$0xf]
    %v263 = vld [vmem:[%s6 + $0x34] sm:$0xf]
    %v264 = vld [vmem:[%s6 + $0x38] sm:$0xf]
    %v265 = vld [vmem:[%s6 + $0x3c] sm:$0xf]
    %v266 = vld [vmem:[%s6 + $0x40] sm:$0xf]
    %v267 = vld [vmem:[%s6 + $0x44] sm:$0xf]
    %v268 = vld [vmem:[%s6 + $0x48] sm:$0xf]
    %v269 = vld [vmem:[%s6 + $0x4c] sm:$0xf]
    %v270 = vld [vmem:[%s6 + $0x50] sm:$0xf]
    %v271 = vld [vmem:[%s6 + $0x54] sm:$0xf]
    %v272 = vld [vmem:[%s6 + $0x58] sm:$0xf]
    %v273 = vld [vmem:[%s6 + $0x5c] sm:$0xf]
    %v274 = vpack.c.bf16 %v128, %v126
    %v275 = vpack.c.bf16 %v129, %v127
    %v300 = vunpack.c.l.b16 %v250
    %v301 = vunpack.c.l.b16 %v251
    %v302 = vunpack.c.l.b16 %v252
    %v303 = vunpack.c.l.b16 %v253
    %v304 = vunpack.c.l.b16 %v254
    %v305 = vunpack.c.l.b16 %v255
    %v306 = vunpack.c.l.b16 %v256
    %v307 = vunpack.c.l.b16 %v257
    %v308 = vunpack.c.l.b16 %v258
    %v309 = vunpack.c.l.b16 %v259
    %v310 = vunpack.c.l.b16 %v260
    %v311 = vunpack.c.l.b16 %v261
    %v312 = vunpack.c.l.b16 %v262
    %v313 = vunpack.c.l.b16 %v263
    %v314 = vunpack.c.l.b16 %v264
    %v315 = vunpack.c.l.b16 %v265
    %v316 = vunpack.c.l.b16 %v266
    %v317 = vunpack.c.l.b16 %v267
    %v318 = vunpack.c.l.b16 %v268
    %v319 = vunpack.c.l.b16 %v269
    %v320 = vunpack.c.l.b16 %v270
    %v321 = vunpack.c.l.b16 %v271
    %v322 = vunpack.c.l.b16 %v272
    %v323 = vunpack.c.l.b16 %v273
    %v324 = vpack.c.b16 %v301, %v300
    %v325 = vpack.c.b16 %v303, %v302
    %v326 = vpack.c.b16 %v305, %v304
    %v327 = vpack.c.b16 %v307, %v306
    %v328 = vpack.c.b16 %v309, %v308
    %v329 = vpack.c.b16 %v311, %v310
    %v330 = vpack.c.b16 %v313, %v312
    %v331 = vpack.c.b16 %v315, %v314
    %v332 = vpack.c.b16 %v317, %v316
    %v333 = vpack.c.b16 %v319, %v318
    %v334 = vpack.c.b16 %v321, %v320
    %v335 = vpack.c.b16 %v323, %v322
    %vm348 = vcmask 523264
    %v350 = vsel %vm348, %v275, 0
    %352 = vmatprep.subr.bf16.mxu0 0
    %353 = vmatpush1.bf16.msra.mxu0 %v324
    %354 = vmatprep.subr.bf16.mxu0 0
    %355 = vmatpush1.bf16.msra.mxu0 %v325
    %356 = vmatprep.subr.bf16.mxu0 0
    %357 = vmatpush1.bf16.msra.mxu0 %v326
    %358 = vmatprep.subr.bf16.mxu0 0
    %359 = vmatpush1.bf16.msra.mxu0 %v327
    %360 = vmatprep.subr.bf16.mxu0 0
    %361 = vmatpush1.bf16.msra.mxu0 %v328
    %362 = vmatprep.subr.bf16.mxu0 0
    %363 = vmatpush1.bf16.msra.mxu0 %v329
    %364 = vmatprep.subr.bf16.mxu0 0
    %365 = vmatpush1.bf16.msra.mxu0 %v330
    %366 = vmatprep.subr.bf16.mxu0 0
    %367 = vmatpush1.bf16.msra.mxu0 %v331
    %368 = vmatprep.subr.bf16.mxu0 0
    %369 = vmatpush1.bf16.msra.mxu0 %v332
    %370 = vmatprep.subr.bf16.mxu0 0
    %371 = vmatpush1.bf16.msra.mxu0 %v333
    %372 = vmatprep.subr.bf16.mxu0 0
    %373 = vmatpush1.bf16.msra.mxu0 %v334
    %374 = vmatprep.subr.bf16.mxu0 0
    %375 = vmatpush1.bf16.msra.mxu0 %v335
    %376 = vmatprep.subr.bf16.mxu0 0
    %377 = vmatpush1.bf16.msra.mxu0 0
    %378 = vmatprep.subr.bf16.mxu0 0
    %379 = vmatpush1.bf16.msra.mxu0 0
    %380 = vmatprep.subr.bf16.mxu0 0
    %381 = vmatpush1.bf16.msra.mxu0 0
    %382 = vmatprep.subr.bf16.mxu0 0
    %383 = vmatpush1.bf16.msra.mxu0 0
    %384 = vmatprep.mubr.bf16.mxu0 %v350
    %385 = vmatmul.mubr.bf16.gmra.mrb[0].mxu0 %v274
    %v386 = vpop.f32.mrb[0].mxu0
    %v387 = vadd.f32 0.0, %v386
    %v388 = vpop.f32.mrb[0].mxu0
    %v389 = vpop.f32.mrb[0].mxu0
    %v390 = vadd.f32 0.0, %v389
    %v391 = vpop.f32.mrb[0].mxu0
    %392 = vdwg.mxu0
    %v393 = vmul.f32 %v126, %v126
    %v394 = vmul.f32 %v127, %v127
    %v395 = vmul.f32 %v128, %v128
    %v396 = vmul.f32 %v129, %v129
    %v397 = vpack.c.bf16 %v395, %v393
    %v398 = vpack.c.bf16 %v396, %v394
    %v400 = vsel %vm348, %v398, 0
    %402 = vmatprep.subr.bf16.mxu0 0
    %403 = vmatpush1.bf16.msra.mxu0 %v324
    %404 = vmatprep.subr.bf16.mxu0 0
    %405 = vmatpush1.bf16.msra.mxu0 %v325
    %406 = vmatprep.subr.bf16.mxu0 0
    %407 = vmatpush1.bf16.msra.mxu0 %v326
    %408 = vmatprep.subr.bf16.mxu0 0
    %409 = vmatpush1.bf16.msra.mxu0 %v327
    %410 = vmatprep.subr.bf16.mxu0 0
    %411 = vmatpush1.bf16.msra.mxu0 %v328
    %412 = vmatprep.subr.bf16.mxu0 0
    %413 = vmatpush1.bf16.msra.mxu0 %v329
    %414 = vmatprep.subr.bf16.mxu0 0
    %415 = vmatpush1.bf16.msra.mxu0 %v330
    %416 = vmatprep.subr.bf16.mxu0 0
    %417 = vmatpush1.bf16.msra.mxu0 %v331
    %418 = vmatprep.subr.bf16.mxu0 0
    %419 = vmatpush1.bf16.msra.mxu0 %v332
    %420 = vmatprep.subr.bf16.mxu0 0
    %421 = vmatpush1.bf16.msra.mxu0 %v333
    %422 = vmatprep.subr.bf16.mxu0 0
    %423 = vmatpush1.bf16.msra.mxu0 %v334
    %424 = vmatprep.subr.bf16.mxu0 0
    %425 = vmatpush1.bf16.msra.mxu0 %v335
    %426 = vmatprep.subr.bf16.mxu0 0
    %427 = vmatpush1.bf16.msra.mxu0 0
    %428 = vmatprep.subr.bf16.mxu0 0
    %429 = vmatpush1.bf16.msra.mxu0 0
    %430 = vmatprep.subr.bf16.mxu0 0
    %431 = vmatpush1.bf16.msra.mxu0 0
    %432 = vmatprep.subr.bf16.mxu0 0
    %433 = vmatpush1.bf16.msra.mxu0 0
    %434 = vmatprep.mubr.bf16.mxu0 %v400
    %435 = vmatmul.mubr.bf16.gmra.mrb[0].mxu0 %v397
    %v436 = vpop.f32.mrb[0].mxu0
    %v437 = vadd.f32 0.0, %v436
    %v438 = vpop.f32.mrb[0].mxu0
    %v439 = vpop.f32.mrb[0].mxu0
    %v440 = vadd.f32 0.0, %v439
    %v441 = vpop.f32.mrb[0].mxu0
    %442 = vdwg.mxu0
    %v443 = vmul.f32 %v387, %v387
    %v444 = vmul.f32 %v390, %v390
    %v445 = vsub.f32 %v437, %v443
    %v446 = vsub.f32 %v440, %v444
    %v447 = vadd.f32 %v445, 1e-05
    %v448 = vadd.f32 %v446, 1e-05
    %v449 = vrsqrt.pop %v447
    %v450 = vrsqrt.pop %v448
    %v451 = vld [vmem:[%s7] sm:$0xff]
    %v452 = vld [vmem:[%s7 + $0x8] sm:$0xff]
    %v453 = vld [vmem:[%s7 + $0x10] sm:$0xff]
    %v454 = vld [vmem:[%s7 + $0x18] sm:$0xff]
    %v455 = vpack.c.bf16 %v390, %v387
    %v460 = vunpack.c.l.b16 %v451
    %v461 = vunpack.c.h.b16 %v451
    %v462 = vunpack.c.l.b16 %v452
    %v463 = vunpack.c.h.b16 %v452
    %v464 = vunpack.c.l.b16 %v453
    %v465 = vunpack.c.h.b16 %v453
    %v466 = vunpack.c.l.b16 %v454
    %v467 = vunpack.c.h.b16 %v454
    %v468 = vpack.c.b16 %v462, %v460
    %v469 = vpack.c.b16 %v463, %v461
    %v470 = vpack.c.b16 %v466, %v464
    %v471 = vpack.c.b16 %v467, %v465
    %v477 = vsel %vm67, %v455, 0
    %479 = vmatprep.subr.bf16.mxu0 %v469
    %480 = vmatpush1.bf16.msra.mxu0 %v468
    %481 = vmatprep.subr.bf16.mxu0 %v471
    %482 = vmatpush1.bf16.msra.mxu0 %v470
    %483 = vmatprep.subr.bf16.mxu0 0
    %484 = vmatpush1.bf16.msra.mxu0 0
    %485 = vmatprep.subr.bf16.mxu0 0
    %486 = vmatpush1.bf16.msra.mxu0 0
    %487 = vmatprep.subr.bf16.mxu0 0
    %488 = vmatpush1.bf16.msra.mxu0 0
    %489 = vmatprep.subr.bf16.mxu0 0
    %490 = vmatpush1.bf16.msra.mxu0 0
    %491 = vmatprep.subr.bf16.mxu0 0
    %492 = vmatpush1.bf16.msra.mxu0 0
    %493 = vmatprep.subr.bf16.mxu0 0
    %494 = vmatpush1.bf16.msra.mxu0 0
    %495 = vmatprep.subr.bf16.mxu0 0
    %496 = vmatpush1.bf16.msra.mxu0 0
    %497 = vmatprep.subr.bf16.mxu0 0
    %498 = vmatpush1.bf16.msra.mxu0 0
    %499 = vmatprep.subr.bf16.mxu0 0
    %500 = vmatpush1.bf16.msra.mxu0 0
    %501 = vmatprep.subr.bf16.mxu0 0
    %502 = vmatpush1.bf16.msra.mxu0 0
    %503 = vmatprep.subr.bf16.mxu0 0
    %504 = vmatpush1.bf16.msra.mxu0 0
    %505 = vmatprep.subr.bf16.mxu0 0
    %506 = vmatpush1.bf16.msra.mxu0 0
    %507 = vmatprep.subr.bf16.mxu0 0
    %508 = vmatpush1.bf16.msra.mxu0 0
    %509 = vmatprep.subr.bf16.mxu0 0
    %510 = vmatpush1.bf16.msra.mxu0 0
    %511 = vmatprep.mubr.bf16.mxu0 0
    %512 = vmatmul.mubr.bf16.gmra.mrb[0].mxu0 %v477
    %v513 = vpop.f32.mrb[0].mxu0
    %v514 = vadd.f32 0.0, %v513
    %v515 = vpop.f32.mrb[0].mxu0
    %v516 = vadd.f32 0.0, %v515
    %v517 = vpop.f32.mrb[0].mxu0
    %v518 = vadd.f32 0.0, %v517
    %v519 = vpop.f32.mrb[0].mxu0
    %v520 = vadd.f32 0.0, %v519
    %521 = vdwg.mxu0
    %v522 = vsub.f32 %v126, %v514
    %v523 = vsub.f32 %v127, %v516
    %v524 = vsub.f32 %v128, %v518
    %v525 = vsub.f32 %v129, %v520
    %v526 = vpack.c.bf16 %v450, %v449
    %v528 = vsel %vm67, %v526, 0
    %530 = vmatprep.subr.bf16.mxu0 %v469
    %531 = vmatpush1.bf16.msra.mxu0 %v468
    %532 = vmatprep.subr.bf16.mxu0 %v471
    %533 = vmatpush1.bf16.msra.mxu0 %v470
    %534 = vmatprep.subr.bf16.mxu0 0
    %535 = vmatpush1.bf16.msra.mxu0 0
    %536 = vmatprep.subr.bf16.mxu0 0
    %537 = vmatpush1.bf16.msra.mxu0 0
    %538 = vmatprep.subr.bf16.mxu0 0
    %539 = vmatpush1.bf16.msra.mxu0 0
    %540 = vmatprep.subr.bf16.mxu0 0
    %541 = vmatpush1.bf16.msra.mxu0 0
    %542 = vmatprep.subr.bf16.mxu0 0
    %543 = vmatpush1.bf16.msra.mxu0 0
    %544 = vmatprep.subr.bf16.mxu0 0
    %545 = vmatpush1.bf16.msra.mxu0 0
    %546 = vmatprep.subr.bf16.mxu0 0
    %547 = vmatpush1.bf16.msra.mxu0 0
    %548 = vmatprep.subr.bf16.mxu0 0
    %549 = vmatpush1.bf16.msra.mxu0 0
    %550 = vmatprep.subr.bf16.mxu0 0
    %551 = vmatpush1.bf16.msra.mxu0 0
    %552 = vmatprep.subr.bf16.mxu0 0
    %553 = vmatpush1.bf16.msra.mxu0 0
    %554 = vmatprep.subr.bf16.mxu0 0
    %555 = vmatpush1.bf16.msra.mxu0 0
    %556 = vmatprep.subr.bf16.mxu0 0
    %557 = vmatpush1.bf16.msra.mxu0 0
    %558 = vmatprep.subr.bf16.mxu0 0
    %559 = vmatpush1.bf16.msra.mxu0 0
    %560 = vmatprep.subr.bf16.mxu0 0
    %561 = vmatpush1.bf16.msra.mxu0 0
    %562 = vmatprep.mubr.bf16.mxu0 0
    %563 = vmatmul.mubr.bf16.gmra.mrb[0].mxu0 %v528
    %v564 = vpop.f32.mrb[0].mxu0
    %v565 = vadd.f32 0.0, %v564
    %v566 = vpop.f32.mrb[0].mxu0
    %v567 = vadd.f32 0.0, %v566
    %v568 = vpop.f32.mrb[0].mxu0
    %v569 = vadd.f32 0.0, %v568
    %v570 = vpop.f32.mrb[0].mxu0
    %v571 = vadd.f32 0.0, %v570
    %572 = vdwg.mxu0
    %v573 = vmul.f32 %v522, %v565
    %v574 = vmul.f32 %v523, %v567
    %v575 = vmul.f32 %v524, %v569
    %v576 = vmul.f32 %v525, %v571
    %s577 = scalar_lea.vmem %s8, 1
    %v578 = vld [vmem:[%s577] ss:$4 sm:$0x3]
    %v580 = vlaneseq
    %v581 = vshrl.u32 %v580, 7
    %v582 = vsub.s32 0, %v581
    %v583 = vrot.slane %v578, %v582
    %v584 = vlaneseq
    %v585 = vshrl.u32 %v584, 7
    %v586 = vsub.s32 1, %v585
    %v587 = vrot.slane %v578, %v586
    %v590 = vmul.f32 %v573, %v583
    %v591 = vmul.f32 %v574, %v587
    %v592 = vmul.f32 %v575, %v583
    %v593 = vmul.f32 %v576, %v587
    %s594 = scalar_lea.vmem %s8, 2
    %v595 = vld [vmem:[%s594] ss:$4 sm:$0x3]
    %v597 = vlaneseq
    %v598 = vshrl.u32 %v597, 7
    %v599 = vsub.s32 0, %v598
    %v600 = vrot.slane %v595, %v599
    %v601 = vlaneseq
    %v602 = vshrl.u32 %v601, 7
    %v603 = vsub.s32 1, %v602
    %v604 = vrot.slane %v595, %v603
    %v607 = vadd.f32 %v590, %v600
    %v608 = vadd.f32 %v591, %v604
    %v609 = vadd.f32 %v592, %v600
    %v610 = vadd.f32 %v593, %v604
    %v611 = vmul.f32 %v607, 0.5
    %v612 = vmul.f32 %v608, 0.5
    %v613 = vmul.f32 %v609, 0.5
    %v614 = vmul.f32 %v610, 0.5
    %v615 = vmul.f32 %v607, 0.044715
    %v616 = vmul.f32 %v608, 0.044715
    %v617 = vmul.f32 %v609, 0.044715
    %v618 = vmul.f32 %v610, 0.044715
    %v619 = vmul.f32 %v615, %v607
    %v620 = vmul.f32 %v616, %v608
    %v621 = vmul.f32 %v617, %v609
    %v622 = vmul.f32 %v618, %v610
    %v623 = vmul.f32 %v619, %v607
    %v624 = vmul.f32 %v620, %v608
    %v625 = vmul.f32 %v621, %v609
    %v626 = vmul.f32 %v622, %v610
    %v627 = vadd.f32 %v607, %v623
    %v628 = vadd.f32 %v608, %v624
    %v629 = vadd.f32 %v609, %v625
    %v630 = vadd.f32 %v610, %v626
    %v631 = vmul.f32 %v627, 0.7978846
    %v632 = vmul.f32 %v628, 0.7978846
    %v633 = vmul.f32 %v629, 0.7978846
    %v634 = vmul.f32 %v630, 0.7978846
    %v635 = vtanh.pop %v631
    %v636 = vtanh.pop %v632
    %v637 = vtanh.pop %v633
    %v638 = vtanh.pop %v634
    %v639 = vadd.f32 %v635, 1.0
    %v640 = vadd.f32 %v636, 1.0
    %v641 = vadd.f32 %v637, 1.0
    %v642 = vadd.f32 %v638, 1.0
    %v643 = vmul.f32 %v611, %v639
    %v644 = vmul.f32 %v612, %v640
    %v645 = vmul.f32 %v613, %v641
    %v646 = vmul.f32 %v614, %v642
    %v647 = vpack.c.bf16 %v249, %v248
    %v649 = vsel %vm67, %v647, 0
    %651 = vmatprep.subr.bf16.mxu0 %v469
    %652 = vmatpush1.bf16.msra.mxu0 %v468
    %653 = vmatprep.subr.bf16.mxu0 %v471
    %654 = vmatpush1.bf16.msra.mxu0 %v470
    %655 = vmatprep.subr.bf16.mxu0 0
    %656 = vmatpush1.bf16.msra.mxu0 0
    %657 = vmatprep.subr.bf16.mxu0 0
    %658 = vmatpush1.bf16.msra.mxu0 0
    %659 = vmatprep.subr.bf16.mxu0 0
    %660 = vmatpush1.bf16.msra.mxu0 0
    %661 = vmatprep.subr.bf16.mxu0 0
    %662 = vmatpush1.bf16.msra.mxu0 0
    %663 = vmatprep.subr.bf16.mxu0 0
    %664 = vmatpush1.bf16.msra.mxu0 0
    %665 = vmatprep.subr.bf16.mxu0 0
    %666 = vmatpush1.bf16.msra.mxu0 0
    %667 = vmatprep.subr.bf16.mxu0 0
    %668 = vmatpush1.bf16.msra.mxu0 0
    %669 = vmatprep.subr.bf16.mxu0 0
    %670 = vmatpush1.bf16.msra.mxu0 0
    %671 = vmatprep.subr.bf16.mxu0 0
    %672 = vmatpush1.bf16.msra.mxu0 0
    %673 = vmatprep.subr.bf16.mxu0 0
    %674 = vmatpush1.bf16.msra.mxu0 0
    %675 = vmatprep.subr.bf16.mxu0 0
    %676 = vmatpush1.bf16.msra.mxu0 0
    %677 = vmatprep.subr.bf16.mxu0 0
    %678 = vmatpush1.bf16.msra.mxu0 0
    %679 = vmatprep.subr.bf16.mxu0 0
    %680 = vmatpush1.bf16.msra.mxu0 0
    %681 = vmatprep.subr.bf16.mxu0 0
    %682 = vmatpush1.bf16.msra.mxu0 0
    %683 = vmatprep.mubr.bf16.mxu0 0
    %684 = vmatmul.mubr.bf16.gmra.mrb[0].mxu0 %v649
    %v685 = vpop.f32.mrb[0].mxu0
    %v686 = vadd.f32 0.0, %v685
    %v687 = vpop.f32.mrb[0].mxu0
    %v688 = vadd.f32 0.0, %v687
    %v689 = vpop.f32.mrb[0].mxu0
    %v690 = vadd.f32 0.0, %v689
    %v691 = vpop.f32.mrb[0].mxu0
    %v692 = vadd.f32 0.0, %v691
    %693 = vdwg.mxu0
    %v694 = vmul.f32 %v643, %v686
    %v695 = vmul.f32 %v644, %v688
    %v696 = vmul.f32 %v645, %v690
    %v697 = vmul.f32 %v646, %v692
    %v698 = vld [vmem:[%s3] sm:$0xf]
    %v699 = vld [vmem:[%s3 + $0x4] sm:$0xf]
    %v700 = vld [vmem:[%s3 + $0x8] sm:$0xf]
    %v701 = vld [vmem:[%s3 + $0xc] sm:$0xf]
    %v702 = vld [vmem:[%s3 + $0x10] sm:$0xf]
    %v703 = vld [vmem:[%s3 + $0x14] sm:$0xf]
    %v704 = vld [vmem:[%s3 + $0x18] sm:$0xf]
    %v705 = vld [vmem:[%s3 + $0x1c] sm:$0xf]
    %v706 = vld [vmem:[%s3 + $0x20] sm:$0xf]
    %v707 = vld [vmem:[%s3 + $0x24] sm:$0xf]
    %v708 = vld [vmem:[%s3 + $0x28] sm:$0xf]
    %v709 = vld [vmem:[%s3 + $0x2c] sm:$0xf]
    %v710 = vld [vmem:[%s3 + $0x30] sm:$0xf]
    %v711 = vld [vmem:[%s3 + $0x34] sm:$0xf]
    %v712 = vld [vmem:[%s3 + $0x38] sm:$0xf]
    %v713 = vld [vmem:[%s3 + $0x3c] sm:$0xf]
    %v714 = vld [vmem:[%s3 + $0x40] sm:$0xf]
    %v715 = vld [vmem:[%s3 + $0x44] sm:$0xf]
    %v716 = vld [vmem:[%s3 + $0x48] sm:$0xf]
    %v717 = vld [vmem:[%s3 + $0x4c] sm:$0xf]
    %v718 = vld [vmem:[%s3 + $0x50] sm:$0xf]
    %v719 = vld [vmem:[%s3 + $0x54] sm:$0xf]
    %v720 = vld [vmem:[%s3 + $0x58] sm:$0xf]
    %v721 = vld [vmem:[%s3 + $0x5c] sm:$0xf]
    %v722 = vpack.c.bf16 %v696, %v694
    %v723 = vpack.c.bf16 %v697, %v695
    %v748 = vunpack.c.l.b16 %v698
    %v749 = vunpack.c.l.b16 %v699
    %v750 = vunpack.c.l.b16 %v700
    %v751 = vunpack.c.l.b16 %v701
    %v752 = vunpack.c.l.b16 %v702
    %v753 = vunpack.c.l.b16 %v703
    %v754 = vunpack.c.l.b16 %v704
    %v755 = vunpack.c.l.b16 %v705
    %v756 = vunpack.c.l.b16 %v706
    %v757 = vunpack.c.l.b16 %v707
    %v758 = vunpack.c.l.b16 %v708
    %v759 = vunpack.c.l.b16 %v709
    %v760 = vunpack.c.l.b16 %v710
    %v761 = vunpack.c.l.b16 %v711
    %v762 = vunpack.c.l.b16 %v712
    %v763 = vunpack.c.l.b16 %v713
    %v764 = vunpack.c.l.b16 %v714
    %v765 = vunpack.c.l.b16 %v715
    %v766 = vunpack.c.l.b16 %v716
    %v767 = vunpack.c.l.b16 %v717
    %v768 = vunpack.c.l.b16 %v718
    %v769 = vunpack.c.l.b16 %v719
    %v770 = vunpack.c.l.b16 %v720
    %v771 = vunpack.c.l.b16 %v721
    %v772 = vpack.c.b16 %v749, %v748
    %v773 = vpack.c.b16 %v751, %v750
    %v774 = vpack.c.b16 %v753, %v752
    %v775 = vpack.c.b16 %v755, %v754
    %v776 = vpack.c.b16 %v757, %v756
    %v777 = vpack.c.b16 %v759, %v758
    %v778 = vpack.c.b16 %v761, %v760
    %v779 = vpack.c.b16 %v763, %v762
    %v780 = vpack.c.b16 %v765, %v764
    %v781 = vpack.c.b16 %v767, %v766
    %v782 = vpack.c.b16 %v769, %v768
    %v783 = vpack.c.b16 %v771, %v770
    %v797 = vsel %vm348, %v723, 0
    %799 = vmatprep.subr.bf16.mxu0 0
    %800 = vmatpush1.bf16.msra.mxu0 %v772
    %801 = vmatprep.subr.bf16.mxu0 0
    %802 = vmatpush1.bf16.msra.mxu0 %v773
    %803 = vmatprep.subr.bf16.mxu0 0
    %804 = vmatpush1.bf16.msra.mxu0 %v774
    %805 = vmatprep.subr.bf16.mxu0 0
    %806 = vmatpush1.bf16.msra.mxu0 %v775
    %807 = vmatprep.subr.bf16.mxu0 0
    %808 = vmatpush1.bf16.msra.mxu0 %v776
    %809 = vmatprep.subr.bf16.mxu0 0
    %810 = vmatpush1.bf16.msra.mxu0 %v777
    %811 = vmatprep.subr.bf16.mxu0 0
    %812 = vmatpush1.bf16.msra.mxu0 %v778
    %813 = vmatprep.subr.bf16.mxu0 0
    %814 = vmatpush1.bf16.msra.mxu0 %v779
    %815 = vmatprep.subr.bf16.mxu0 0
    %816 = vmatpush1.bf16.msra.mxu0 %v780
    %817 = vmatprep.subr.bf16.mxu0 0
    %818 = vmatpush1.bf16.msra.mxu0 %v781
    %819 = vmatprep.subr.bf16.mxu0 0
    %820 = vmatpush1.bf16.msra.mxu0 %v782
    %821 = vmatprep.subr.bf16.mxu0 0
    %822 = vmatpush1.bf16.msra.mxu0 %v783
    %823 = vmatprep.subr.bf16.mxu0 0
    %824 = vmatpush1.bf16.msra.mxu0 0
    %825 = vmatprep.subr.bf16.mxu0 0
    %826 = vmatpush1.bf16.msra.mxu0 0
    %827 = vmatprep.subr.bf16.mxu0 0
    %828 = vmatpush1.bf16.msra.mxu0 0
    %829 = vmatprep.subr.bf16.mxu0 0
    %830 = vmatpush1.bf16.msra.mxu0 0
    %831 = vmatprep.mubr.bf16.mxu0 %v797
    %832 = vmatmul.mubr.bf16.gmra.mrb[0].mxu0 %v722
    %v833 = vpop.f32.mrb[0].mxu0
    %v834 = vadd.f32 0.0, %v833
    %v835 = vpop.f32.mrb[0].mxu0
    %v836 = vpop.f32.mrb[0].mxu0
    %v837 = vadd.f32 0.0, %v836
    %v838 = vpop.f32.mrb[0].mxu0
    %839 = vdwg.mxu0
    %v840 = vadd.f32 %v40, %v834
    %v841 = vadd.f32 %v41, %v837
    %s842 = scalar_lea.vmem %s1, 64
    %v843 = vld [vmem:[%s842] sm:$0xf]
    %v844 = vld [vmem:[%s842 + $0x4] sm:$0xf]
    %v845 = vld [vmem:[%s842 + $0x8] sm:$0xf]
    %v846 = vld [vmem:[%s842 + $0xc] sm:$0xf]
    %v851 = vunpack.c.l.b16 %v843
    %v852 = vunpack.c.l.b16 %v844
    %v853 = vunpack.c.l.b16 %v845
    %v854 = vunpack.c.l.b16 %v846
    %v855 = vpack.c.b16 %v852, %v851
    %v856 = vpack.c.b16 %v854, %v853
    %859 = vmatprep.subr.bf16.mxu0 0
    %860 = vmatpush1.bf16.msra.mxu0 %v855
    %861 = vmatprep.subr.bf16.mxu0 0
    %862 = vmatpush1.bf16.msra.mxu0 %v856
    %863 = vmatprep.subr.bf16.mxu0 0
    %864 = vmatpush1.bf16.msra.mxu0 0
    %865 = vmatprep.subr.bf16.mxu0 0
    %866 = vmatpush1.bf16.msra.mxu0 0
    %867 = vmatprep.subr.bf16.mxu0 0
    %868 = vmatpush1.bf16.msra.mxu0 0
    %869 = vmatprep.subr.bf16.mxu0 0
    %870 = vmatpush1.bf16.msra.mxu0 0
    %871 = vmatprep.subr.bf16.mxu0 0
    %872 = vmatpush1.bf16.msra.mxu0 0
    %873 = vmatprep.subr.bf16.mxu0 0
    %874 = vmatpush1.bf16.msra.mxu0 0
    %875 = vmatprep.subr.bf16.mxu0 0
    %876 = vmatpush1.bf16.msra.mxu0 0
    %877 = vmatprep.subr.bf16.mxu0 0
    %878 = vmatpush1.bf16.msra.mxu0 0
    %879 = vmatprep.subr.bf16.mxu0 0
    %880 = vmatpush1.bf16.msra.mxu0 0
    %881 = vmatprep.subr.bf16.mxu0 0
    %882 = vmatpush1.bf16.msra.mxu0 0
    %883 = vmatprep.subr.bf16.mxu0 0
    %884 = vmatpush1.bf16.msra.mxu0 0
    %885 = vmatprep.subr.bf16.mxu0 0
    %886 = vmatpush1.bf16.msra.mxu0 0
    %887 = vmatprep.subr.bf16.mxu0 0
    %888 = vmatpush1.bf16.msra.mxu0 0
    %889 = vmatprep.subr.bf16.mxu0 0
    %890 = vmatpush1.bf16.msra.mxu0 0
    %891 = vmatprep.mubr.bf16.mxu0 0
    %892 = vmatmul.mubr.bf16.gmra.mrb[0].mxu0 %v649
    %v893 = vpop.f32.mrb[0].mxu0
    %v894 = vadd.f32 0.0, %v893
    %v895 = vpop.f32.mrb[0].mxu0
    %v896 = vpop.f32.mrb[0].mxu0
    %v897 = vadd.f32 0.0, %v896
    %v898 = vpop.f32.mrb[0].mxu0
    %899 = vdwg.mxu0
    %v900 = vadd.f32 %v840, %v894
    %v901 = vadd.f32 %v841, %v897
    %v902 = vld [vmem:[%s10] sm:$0xff]
    %v903 = vld [vmem:[%s10 + $0x8] sm:$0xff]
    %s904 = scalar_lea.vmem %s1, 48
    %v905 = vld [vmem:[%s904] sm:$0xf]
    %v906 = vld [vmem:[%s904 + $0x4] sm:$0xf]
    %v907 = vld [vmem:[%s904 + $0x8] sm:$0xf]
    %v908 = vld [vmem:[%s904 + $0xc] sm:$0xf]
    %v909 = vld [vmem:[%s4] sm:$0xf]
    %v910 = vld [vmem:[%s4 + $0x4] sm:$0xf]
    %v911 = vld [vmem:[%s4 + $0x8] sm:$0xf]
    %v912 = vld [vmem:[%s4 + $0xc] sm:$0xf]
    %v913 = vpack.c.bf16 %v901, %v900
    %v914 = vld [vmem:[%s5] sm:$0x1]
    %v916 = vlaneseq
    %v917 = vshrl.u32 %v916, 7
    %v918 = vsub.s32 0, %v917
    %v919 = vrot.slane %v914, %v918
    %v925 = vunpack.c.l.b16 %v909
    %v926 = vunpack.c.l.b16 %v910
    %v927 = vunpack.c.l.b16 %v911
    %v928 = vunpack.c.l.b16 %v912
    %v929 = vpack.c.b16 %v926, %v925
    %v930 = vpack.c.b16 %v928, %v927
    %v934 = vsel %vm67, %v913, 0
    %936 = vmatprep.subr.bf16.mxu0 0
    %937 = vmatpush1.bf16.msra.mxu0 %v929
    %938 = vmatprep.subr.bf16.mxu0 0
    %939 = vmatpush1.bf16.msra.mxu0 %v930
    %940 = vmatprep.subr.bf16.mxu0 0
    %941 = vmatpush1.bf16.msra.mxu0 0
    %942 = vmatprep.subr.bf16.mxu0 0
    %943 = vmatpush1.bf16.msra.mxu0 0
    %944 = vmatprep.subr.bf16.mxu0 0
    %945 = vmatpush1.bf16.msra.mxu0 0
    %946 = vmatprep.subr.bf16.mxu0 0
    %947 = vmatpush1.bf16.msra.mxu0 0
    %948 = vmatprep.subr.bf16.mxu0 0
    %949 = vmatpush1.bf16.msra.mxu0 0
    %950 = vmatprep.subr.bf16.mxu0 0
    %951 = vmatpush1.bf16.msra.mxu0 0
    %952 = vmatprep.subr.bf16.mxu0 0
    %953 = vmatpush1.bf16.msra.mxu0 0
    %954 = vmatprep.subr.bf16.mxu0 0
    %955 = vmatpush1.bf16.msra.mxu0 0
    %956 = vmatprep.subr.bf16.mxu0 0
    %957 = vmatpush1.bf16.msra.mxu0 0
    %958 = vmatprep.subr.bf16.mxu0 0
    %959 = vmatpush1.bf16.msra.mxu0 0
    %960 = vmatprep.subr.bf16.mxu0 0
    %961 = vmatpush1.bf16.msra.mxu0 0
    %962 = vmatprep.subr.bf16.mxu0 0
    %963 = vmatpush1.bf16.msra.mxu0 0
    %964 = vmatprep.subr.bf16.mxu0 0
    %965 = vmatpush1.bf16.msra.mxu0 0
    %966 = vmatprep.subr.bf16.mxu0 0
    %967 = vmatpush1.bf16.msra.mxu0 0
    %968 = vmatprep.mubr.bf16.mxu0 0
    %969 = vmatmul.mubr.bf16.gmra.mrb[0].mxu0 %v934
    %v970 = vpop.f32.mrb[0].mxu0
    %v971 = vadd.f32 %v919, %v970
    %v972 = vpop.f32.mrb[0].mxu0
    %v973 = vpop.f32.mrb[0].mxu0
    %v974 = vadd.f32 %v919, %v973
    %v975 = vpop.f32.mrb[0].mxu0
    %976 = vdwg.mxu0
    %v977 = vpack.c.bf16 %v974, %v971
    %979 = vrot.lane.b32.xlu0 %v977, 96
    %v980 = vpop.permute.xlu0 %979
    %vm981 = vcmask 64512
    %v983 = vsel %vm981, %v977, 0
    %v986 = vsel %vm981, %v980, 0
    %988 = vmatprep.subr.bf16.mxu0 0
    %989 = vmatpush1.bf16.xpose.msra.mxu0 %v986
    %990 = vmatprep.subr.bf16.mxu0 0
    %991 = vmatpush1.bf16.xpose.msra.mxu0 0
    %992 = vmatprep.subr.bf16.mxu0 0
    %993 = vmatpush1.bf16.xpose.msra.mxu0 0
    %994 = vmatprep.subr.bf16.mxu0 0
    %995 = vmatpush1.bf16.xpose.msra.mxu0 0
    %996 = vmatprep.subr.bf16.mxu0 0
    %997 = vmatpush1.bf16.xpose.msra.mxu0 0
    %998 = vmatprep.subr.bf16.mxu0 0
    %999 = vmatpush1.bf16.xpose.msra.mxu0 0
    %1000 = vmatprep.subr.bf16.mxu0 0
    %1001 = vmatpush1.bf16.xpose.msra.mxu0 0
    %1002 = vmatprep.subr.bf16.mxu0 0
    %1003 = vmatpush1.bf16.xpose.msra.mxu0 0
    %1004 = vmatprep.subr.bf16.mxu0 0
    %1005 = vmatpush1.bf16.xpose.msra.mxu0 0
    %1006 = vmatprep.subr.bf16.mxu0 0
    %1007 = vmatpush1.bf16.xpose.msra.mxu0 0
    %1008 = vmatprep.subr.bf16.mxu0 0
    %1009 = vmatpush1.bf16.xpose.msra.mxu0 0
    %1010 = vmatprep.subr.bf16.mxu0 0
    %1011 = vmatpush1.bf16.xpose.msra.mxu0 0
    %1012 = vmatprep.subr.bf16.mxu0 0
    %1013 = vmatpush1.bf16.xpose.msra.mxu0 0
    %1014 = vmatprep.subr.bf16.mxu0 0
    %1015 = vmatpush1.bf16.xpose.msra.mxu0 0
    %1016 = vmatprep.subr.bf16.mxu0 0
    %1017 = vmatpush1.bf16.xpose.msra.mxu0 0
    %1018 = vmatprep.subr.bf16.mxu0 0
    %1019 = vmatpush1.bf16.xpose.msra.mxu0 0
    %1020 = vmatprep.mubr.bf16.mxu0 0
    %1021 = vmatmul.mubr.bf16.gmra.mrb[0].mxu0 %v983
    %v1022 = vpop.f32.mrb[0].mxu0
    %v1023 = vadd.f32 %v902, %v1022
    %v1024 = vpop.f32.mrb[0].mxu0
    %v1025 = vpop.f32.mrb[0].mxu0
    %v1026 = vadd.f32 %v903, %v1025
    %v1027 = vpop.f32.mrb[0].mxu0
    %1028 = vdwg.mxu0
    %vm1029 = vcmask 130048
    %v1030 = vsel %vm1029, %v1023, -inf
    %1031 = vmax.xlane.f32.xlu0 %v1030
    %v1032 = vpop.xlane.xlu0 %1031
    %v1033 = vsel %vm1029, %v1026, -inf
    %1034 = vmax.xlane.f32.xlu0 %v1033
    %v1035 = vpop.xlane.xlu0 %1034
    %v1036 = vsub.f32 %v1023, %v1032
    %v1037 = vsub.f32 %v1026, %v1035
    %v1038 = vmul.f32 %v1036, 1.442695
    %v1039 = vpow.pop %v1038
    %v1040 = vmul.f32 %v1037, 1.442695
    %v1041 = vpow.pop %v1040
    %v1042 = vsel %vm1029, %v1039, 0.0
    %1043 = vadd.xlane.f32.xlu0 %v1042
    %v1044 = vpop.xlane.xlu0 %1043
    %v1045 = vsel %vm1029, %v1041, 0.0
    %1046 = vadd.xlane.f32.xlu0 %v1045
    %v1047 = vpop.xlane.xlu0 %1046
    %v1048 = vrcp.pop %v1044
    %v1049 = vrcp.pop %v1047
    %v1050 = vmul.f32 %v1039, %v1048
    %v1051 = vmul.f32 %v1041, %v1049
    %v1052 = vpack.c.bf16 %v1051, %v1050
    %1053 = vrot.lane.b32.xlu0 %v977, 64
    %v1054 = vpop.permute.xlu0 %1053
    %v1057 = vsel %vm1029, %v1052, 0
    %1059 = vmatprep.subr.bf16.mxu0 0
    %1060 = vmatpush1.bf16.msra.mxu0 %v1054
    %1061 = vmatprep.subr.bf16.mxu0 0
    %1062 = vmatpush1.bf16.msra.mxu0 0
    %1063 = vmatprep.subr.bf16.mxu0 0
    %1064 = vmatpush1.bf16.msra.mxu0 0
    %1065 = vmatprep.subr.bf16.mxu0 0
    %1066 = vmatpush1.bf16.msra.mxu0 0
    %1067 = vmatprep.subr.bf16.mxu0 0
    %1068 = vmatpush1.bf16.msra.mxu0 0
    %1069 = vmatprep.subr.bf16.mxu0 0
    %1070 = vmatpush1.bf16.msra.mxu0 0
    %1071 = vmatprep.subr.bf16.mxu0 0
    %1072 = vmatpush1.bf16.msra.mxu0 0
    %1073 = vmatprep.subr.bf16.mxu0 0
    %1074 = vmatpush1.bf16.msra.mxu0 0
    %1075 = vmatprep.subr.bf16.mxu0 0
    %1076 = vmatpush1.bf16.msra.mxu0 0
    %1077 = vmatprep.subr.bf16.mxu0 0
    %1078 = vmatpush1.bf16.msra.mxu0 0
    %1079 = vmatprep.subr.bf16.mxu0 0
    %1080 = vmatpush1.bf16.msra.mxu0 0
    %1081 = vmatprep.subr.bf16.mxu0 0
    %1082 = vmatpush1.bf16.msra.mxu0 0
    %1083 = vmatprep.subr.bf16.mxu0 0
    %1084 = vmatpush1.bf16.msra.mxu0 0
    %1085 = vmatprep.subr.bf16.mxu0 0
    %1086 = vmatpush1.bf16.msra.mxu0 0
    %1087 = vmatprep.subr.bf16.mxu0 0
    %1088 = vmatpush1.bf16.msra.mxu0 0
    %1089 = vmatprep.subr.bf16.mxu0 0
    %1090 = vmatpush1.bf16.msra.mxu0 0
    %1091 = vmatprep.mubr.bf16.mxu0 0
    %1092 = vmatmul.mubr.bf16.gmra.mrb[0].mxu0 %v1057
    %v1093 = vpop.f32.mrb[0].mxu0
    %v1094 = vadd.f32 0.0, %v1093
    %v1095 = vpop.f32.mrb[0].mxu0
    %v1096 = vpop.f32.mrb[0].mxu0
    %v1097 = vadd.f32 0.0, %v1096
    %v1098 = vpop.f32.mrb[0].mxu0
    %1099 = vdwg.mxu0
    %v1100 = vpack.c.bf16 %v1097, %v1094
    %1101 = vrot.lane.b32.xlu0 %v977, 120
    %v1102 = vpop.permute.xlu0 %1101
    %1103 = vrot.lane.b32.xlu0 %v977, 88
    %v1104 = vpop.permute.xlu0 %1103
    %v1106 = vsel %vm981, %v1102, 0
    %v1109 = vsel %vm981, %v1104, 0
    %1111 = vmatprep.subr.bf16.mxu0 0
    %1112 = vmatpush1.bf16.xpose.msra.mxu0 %v1109
    %1113 = vmatprep.subr.bf16.mxu0 0
    %1114 = vmatpush1.bf16.xpose.msra.mxu0 0
    %1115 = vmatprep.subr.bf16.mxu0 0
    %1116 = vmatpush1.bf16.xpose.msra.mxu0 0
    %1117 = vmatprep.subr.bf16.mxu0 0
    %1118 = vmatpush1.bf16.xpose.msra.mxu0 0
    %1119 = vmatprep.subr.bf16.mxu0 0
    %1120 = vmatpush1.bf16.xpose.msra.mxu0 0
    %1121 = vmatprep.subr.bf16.mxu0 0
    %1122 = vmatpush1.bf16.xpose.msra.mxu0 0
    %1123 = vmatprep.subr.bf16.mxu0 0
    %1124 = vmatpush1.bf16.xpose.msra.mxu0 0
    %1125 = vmatprep.subr.bf16.mxu0 0
    %1126 = vmatpush1.bf16.xpose.msra.mxu0 0
    %1127 = vmatprep.subr.bf16.mxu0 0
    %1128 = vmatpush1.bf16.xpose.msra.mxu0 0
    %1129 = vmatprep.subr.bf16.mxu0 0
    %1130 = vmatpush1.bf16.xpose.msra.mxu0 0
    %1131 = vmatprep.subr.bf16.mxu0 0
    %1132 = vmatpush1.bf16.xpose.msra.mxu0 0
    %1133 = vmatprep.subr.bf16.mxu0 0
    %1134 = vmatpush1.bf16.xpose.msra.mxu0 0
    %1135 = vmatprep.subr.bf16.mxu0 0
    %1136 = vmatpush1.bf16.xpose.msra.mxu0 0
    %1137 = vmatprep.subr.bf16.mxu0 0
    %1138 = vmatpush1.bf16.xpose.msra.mxu0 0
    %1139 = vmatprep.subr.bf16.mxu0 0
    %1140 = vmatpush1.bf16.xpose.msra.mxu0 0
    %1141 = vmatprep.subr.bf16.mxu0 0
    %1142 = vmatpush1.bf16.xpose.msra.mxu0 0
    %1143 = vmatprep.mubr.bf16.mxu0 0
    %1144 = vmatmul.mubr.bf16.gmra.mrb[0].mxu0 %v1106
    %v1145 = vpop.f32.mrb[0].mxu0
    %v1146 = vadd.f32 %v902, %v1145
    %v1147 = vpop.f32.mrb[0].mxu0
    %v1148 = vpop.f32.mrb[0].mxu0
    %v1149 = vadd.f32 %v903, %v1148
    %v1150 = vpop.f32.mrb[0].mxu0
    %1151 = vdwg.mxu0
    %v1152 = vsel %vm1029, %v1146, -inf
    %1153 = vmax.xlane.f32.xlu0 %v1152
    %v1154 = vpop.xlane.xlu0 %1153
    %v1155 = vsel %vm1029, %v1149, -inf
    %1156 = vmax.xlane.f32.xlu0 %v1155
    %v1157 = vpop.xlane.xlu0 %1156
    %v1158 = vsub.f32 %v1146, %v1154
    %v1159 = vsub.f32 %v1149, %v1157
    %v1160 = vmul.f32 %v1158, 1.442695
    %v1161 = vpow.pop %v1160
    %v1162 = vmul.f32 %v1159, 1.442695
    %v1163 = vpow.pop %v1162
    %v1164 = vsel %vm1029, %v1161, 0.0
    %1165 = vadd.xlane.f32.xlu0 %v1164
    %v1166 = vpop.xlane.xlu0 %1165
    %v1167 = vsel %vm1029, %v1163, 0.0
    %1168 = vadd.xlane.f32.xlu0 %v1167
    %v1169 = vpop.xlane.xlu0 %1168
    %v1170 = vrcp.pop %v1166
    %v1171 = vrcp.pop %v1169
    %v1172 = vmul.f32 %v1161, %v1170
    %v1173 = vmul.f32 %v1163, %v1171
    %v1174 = vpack.c.bf16 %v1173, %v1172
    %1175 = vrot.lane.b32.xlu0 %v977, 56
    %v1176 = vpop.permute.xlu0 %1175
    %v1179 = vsel %vm1029, %v1174, 0
    %1181 = vmatprep.subr.bf16.mxu0 0
    %1182 = vmatpush1.bf16.msra.mxu0 %v1176
    %1183 = vmatprep.subr.bf16.mxu0 0
    %1184 = vmatpush1.bf16.msra.mxu0 0
    %1185 = vmatprep.subr.bf16.mxu0 0
    %1186 = vmatpush1.bf16.msra.mxu0 0
    %1187 = vmatprep.subr.bf16.mxu0 0
    %1188 = vmatpush1.bf16.msra.mxu0 0
    %1189 = vmatprep.subr.bf16.mxu0 0
    %1190 = vmatpush1.bf16.msra.mxu0 0
    %1191 = vmatprep.subr.bf16.mxu0 0
    %1192 = vmatpush1.bf16.msra.mxu0 0
    %1193 = vmatprep.subr.bf16.mxu0 0
    %1194 = vmatpush1.bf16.msra.mxu0 0
    %1195 = vmatprep.subr.bf16.mxu0 0
    %1196 = vmatpush1.bf16.msra.mxu0 0
    %1197 = vmatprep.subr.bf16.mxu0 0
    %1198 = vmatpush1.bf16.msra.mxu0 0
    %1199 = vmatprep.subr.bf16.mxu0 0
    %1200 = vmatpush1.bf16.msra.mxu0 0
    %1201 = vmatprep.subr.bf16.mxu0 0
    %1202 = vmatpush1.bf16.msra.mxu0 0
    %1203 = vmatprep.subr.bf16.mxu0 0
    %1204 = vmatpush1.bf16.msra.mxu0 0
    %1205 = vmatprep.subr.bf16.mxu0 0
    %1206 = vmatpush1.bf16.msra.mxu0 0
    %1207 = vmatprep.subr.bf16.mxu0 0
    %1208 = vmatpush1.bf16.msra.mxu0 0
    %1209 = vmatprep.subr.bf16.mxu0 0
    %1210 = vmatpush1.bf16.msra.mxu0 0
    %1211 = vmatprep.subr.bf16.mxu0 0
    %1212 = vmatpush1.bf16.msra.mxu0 0
    %1213 = vmatprep.mubr.bf16.mxu0 0
    %1214 = vmatmul.mubr.bf16.gmra.mrb[0].mxu0 %v1179
    %v1215 = vpop.f32.mrb[0].mxu0
    %v1216 = vadd.f32 0.0, %v1215
    %v1217 = vpop.f32.mrb[0].mxu0
    %v1218 = vpop.f32.mrb[0].mxu0
    %v1219 = vadd.f32 0.0, %v1218
    %v1220 = vpop.f32.mrb[0].mxu0
    %1221 = vdwg.mxu0
    %v1222 = vpack.c.bf16 %v1219, %v1216
    %v1224 = vsel %vm981, %v1222, 0
    %vm1226 = vcmask 1043456
    %v1228 = vsel %vm1226, %v906, 0
    %1230 = vmatprep.subr.bf16.mxu0 0
    %1231 = vmatpush1.bf16.msra.mxu0 %v1228
    %1232 = vmatprep.subr.bf16.mxu0 0
    %1233 = vmatpush1.bf16.msra.mxu0 0
    %1234 = vmatprep.subr.bf16.mxu0 0
    %1235 = vmatpush1.bf16.msra.mxu0 0
    %1236 = vmatprep.subr.bf16.mxu0 0
    %1237 = vmatpush1.bf16.msra.mxu0 0
    %1238 = vmatprep.subr.bf16.mxu0 0
    %1239 = vmatpush1.bf16.msra.mxu0 0
    %1240 = vmatprep.subr.bf16.mxu0 0
    %1241 = vmatpush1.bf16.msra.mxu0 0
    %1242 = vmatprep.subr.bf16.mxu0 0
    %1243 = vmatpush1.bf16.msra.mxu0 0
    %1244 = vmatprep.subr.bf16.mxu0 0
    %1245 = vmatpush1.bf16.msra.mxu0 0
    %1246 = vmatprep.subr.bf16.mxu0 0
    %1247 = vmatpush1.bf16.msra.mxu0 0
    %1248 = vmatprep.subr.bf16.mxu0 0
    %1249 = vmatpush1.bf16.msra.mxu0 0
    %1250 = vmatprep.subr.bf16.mxu0 0
    %1251 = vmatpush1.bf16.msra.mxu0 0
    %1252 = vmatprep.subr.bf16.mxu0 0
    %1253 = vmatpush1.bf16.msra.mxu0 0
    %1254 = vmatprep.subr.bf16.mxu0 0
    %1255 = vmatpush1.bf16.msra.mxu0 0
    %1256 = vmatprep.subr.bf16.mxu0 0
    %1257 = vmatpush1.bf16.msra.mxu0 0
    %1258 = vmatprep.subr.bf16.mxu0 0
    %1259 = vmatpush1.bf16.msra.mxu0 0
    %1260 = vmatprep.subr.bf16.mxu0 0
    %1261 = vmatpush1.bf16.msra.mxu0 0
    %1262 = vmatprep.mubr.bf16.mxu0 0
    %1263 = vmatmul.mubr.bf16.gmra.mrb[0].mxu0 %v1224
    %v1264 = vpop.f32.mrb[0].mxu0
    %v1265 = vadd.f32 0.0, %v1264
    %v1266 = vpop.f32.mrb[0].mxu0
    %v1267 = vpop.f32.mrb[0].mxu0
    %v1268 = vadd.f32 0.0, %v1267
    %v1269 = vpop.f32.mrb[0].mxu0
    %1270 = vdwg.mxu0
    %v1272 = vsel %vm981, %v1100, 0
    %v1275 = vsel %vm1226, %v905, 0
    %1277 = vmatprep.subr.bf16.mxu0 0
    %1278 = vmatpush1.bf16.msra.mxu0 %v1275
    %1279 = vmatprep.subr.bf16.mxu0 0
    %1280 = vmatpush1.bf16.msra.mxu0 0
    %1281 = vmatprep.subr.bf16.mxu0 0
    %1282 = vmatpush1.bf16.msra.mxu0 0
    %1283 = vmatprep.subr.bf16.mxu0 0
    %1284 = vmatpush1.bf16.msra.mxu0 0
    %1285 = vmatprep.subr.bf16.mxu0 0
    %1286 = vmatpush1.bf16.msra.mxu0 0
    %1287 = vmatprep.subr.bf16.mxu0 0
    %1288 = vmatpush1.bf16.msra.mxu0 0
    %1289 = vmatprep.subr.bf16.mxu0 0
    %1290 = vmatpush1.bf16.msra.mxu0 0
    %1291 = vmatprep.subr.bf16.mxu0 0
    %1292 = vmatpush1.bf16.msra.mxu0 0
    %1293 = vmatprep.subr.bf16.mxu0 0
    %1294 = vmatpush1.bf16.msra.mxu0 0
    %1295 = vmatprep.subr.bf16.mxu0 0
    %1296 = vmatpush1.bf16.msra.mxu0 0
    %1297 = vmatprep.subr.bf16.mxu0 0
    %1298 = vmatpush1.bf16.msra.mxu0 0
    %1299 = vmatprep.subr.bf16.mxu0 0
    %1300 = vmatpush1.bf16.msra.mxu0 0
    %1301 = vmatprep.subr.bf16.mxu0 0
    %1302 = vmatpush1.bf16.msra.mxu0 0
    %1303 = vmatprep.subr.bf16.mxu0 0
    %1304 = vmatpush1.bf16.msra.mxu0 0
    %1305 = vmatprep.subr.bf16.mxu0 0
    %1306 = vmatpush1.bf16.msra.mxu0 0
    %1307 = vmatprep.subr.bf16.mxu0 0
    %1308 = vmatpush1.bf16.msra.mxu0 0
    %1309 = vmatprep.mubr.bf16.mxu0 0
    %1310 = vmatmul.mubr.bf16.gmra.mrb[0].mxu0 %v1272
    %v1311 = vpop.f32.mrb[0].mxu0
    %v1312 = vadd.f32 %v1265, %v1311
    %v1313 = vpop.f32.mrb[0].mxu0
    %v1314 = vpop.f32.mrb[0].mxu0
    %v1315 = vadd.f32 %v1268, %v1314
    %v1316 = vpop.f32.mrb[0].mxu0
    %1317 = vdwg.mxu0
    %1318 = vrot.lane.b32.xlu0 %v977, 112
    %v1319 = vpop.permute.xlu0 %1318
    %1320 = vrot.lane.b32.xlu0 %v977, 80
    %v1321 = vpop.permute.xlu0 %1320
    %v1323 = vsel %vm981, %v1319, 0
    %v1326 = vsel %vm981, %v1321, 0
    %1328 = vmatprep.subr.bf16.mxu0 0
    %1329 = vmatpush1.bf16.xpose.msra.mxu0 %v1326
    %1330 = vmatprep.subr.bf16.mxu0 0
    %1331 = vmatpush1.bf16.xpose.msra.mxu0 0
    %1332 = vmatprep.subr.bf16.mxu0 0
    %1333 = vmatpush1.bf16.xpose.msra.mxu0 0
    %1334 = vmatprep.subr.bf16.mxu0 0
    %1335 = vmatpush1.bf16.xpose.msra.mxu0 0
    %1336 = vmatprep.subr.bf16.mxu0 0
    %1337 = vmatpush1.bf16.xpose.msra.mxu0 0
    %1338 = vmatprep.subr.bf16.mxu0 0
    %1339 = vmatpush1.bf16.xpose.msra.mxu0 0
    %1340 = vmatprep.subr.bf16.mxu0 0
    %1341 = vmatpush1.bf16.xpose.msra.mxu0 0
    %1342 = vmatprep.subr.bf16.mxu0 0
    %1343 = vmatpush1.bf16.xpose.msra.mxu0 0
    %1344 = vmatprep.subr.bf16.mxu0 0
    %1345 = vmatpush1.bf16.xpose.msra.mxu0 0
    %1346 = vmatprep.subr.bf16.mxu0 0
    %1347 = vmatpush1.bf16.xpose.msra.mxu0 0
    %1348 = vmatprep.subr.bf16.mxu0 0
    %1349 = vmatpush1.bf16.xpose.msra.mxu0 0
    %1350 = vmatprep.subr.bf16.mxu0 0
    %1351 = vmatpush1.bf16.xpose.msra.mxu0 0
    %1352 = vmatprep.subr.bf16.mxu0 0
    %1353 = vmatpush1.bf16.xpose.msra.mxu0 0
    %1354 = vmatprep.subr.bf16.mxu0 0
    %1355 = vmatpush1.bf16.xpose.msra.mxu0 0
    %1356 = vmatprep.subr.bf16.mxu0 0
    %1357 = vmatpush1.bf16.xpose.msra.mxu0 0
    %1358 = vmatprep.subr.bf16.mxu0 0
    %1359 = vmatpush1.bf16.xpose.msra.mxu0 0
    %1360 = vmatprep.mubr.bf16.mxu0 0
    %1361 = vmatmul.mubr.bf16.gmra.mrb[0].mxu0 %v1323
    %v1362 = vpop.f32.mrb[0].mxu0
    %v1363 = vadd.f32 %v902, %v1362
    %v1364 = vpop.f32.mrb[0].mxu0
    %v1365 = vpop.f32.mrb[0].mxu0
    %v1366 = vadd.f32 %v903, %v1365
    %v1367 = vpop.f32.mrb[0].mxu0
    %1368 = vdwg.mxu0
    %v1369 = vsel %vm1029, %v1363, -inf
    %1370 = vmax.xlane.f32.xlu0 %v1369
    %v1371 = vpop.xlane.xlu0 %1370
    %v1372 = vsel %vm1029, %v1366, -inf
    %1373 = vmax.xlane.f32.xlu0 %v1372
    %v1374 = vpop.xlane.xlu0 %1373
    %v1375 = vsub.f32 %v1363, %v1371
    %v1376 = vsub.f32 %v1366, %v1374
    %v1377 = vmul.f32 %v1375, 1.442695
    %v1378 = vpow.pop %v1377
    %v1379 = vmul.f32 %v1376, 1.442695
    %v1380 = vpow.pop %v1379
    %v1381 = vsel %vm1029, %v1378, 0.0
    %1382 = vadd.xlane.f32.xlu0 %v1381
    %v1383 = vpop.xlane.xlu0 %1382
    %v1384 = vsel %vm1029, %v1380, 0.0
    %1385 = vadd.xlane.f32.xlu0 %v1384
    %v1386 = vpop.xlane.xlu0 %1385
    %v1387 = vrcp.pop %v1383
    %v1388 = vrcp.pop %v1386
    %v1389 = vmul.f32 %v1378, %v1387
    %v1390 = vmul.f32 %v1380, %v1388
    %v1391 = vpack.c.bf16 %v1390, %v1389
    %1392 = vrot.lane.b32.xlu0 %v977, 48
    %v1393 = vpop.permute.xlu0 %1392
    %v1396 = vsel %vm1029, %v1391, 0
    %1398 = vmatprep.subr.bf16.mxu0 0
    %1399 = vmatpush1.bf16.msra.mxu0 %v1393
    %1400 = vmatprep.subr.bf16.mxu0 0
    %1401 = vmatpush1.bf16.msra.mxu0 0
    %1402 = vmatprep.subr.bf16.mxu0 0
    %1403 = vmatpush1.bf16.msra.mxu0 0
    %1404 = vmatprep.subr.bf16.mxu0 0
    %1405 = vmatpush1.bf16.msra.mxu0 0
    %1406 = vmatprep.subr.bf16.mxu0 0
    %1407 = vmatpush1.bf16.msra.mxu0 0
    %1408 = vmatprep.subr.bf16.mxu0 0
    %1409 = vmatpush1.bf16.msra.mxu0 0
    %1410 = vmatprep.subr.bf16.mxu0 0
    %1411 = vmatpush1.bf16.msra.mxu0 0
    %1412 = vmatprep.subr.bf16.mxu0 0
    %1413 = vmatpush1.bf16.msra.mxu0 0
    %1414 = vmatprep.subr.bf16.mxu0 0
    %1415 = vmatpush1.bf16.msra.mxu0 0
    %1416 = vmatprep.subr.bf16.mxu0 0
    %1417 = vmatpush1.bf16.msra.mxu0 0
    %1418 = vmatprep.subr.bf16.mxu0 0
    %1419 = vmatpush1.bf16.msra.mxu0 0
    %1420 = vmatprep.subr.bf16.mxu0 0
    %1421 = vmatpush1.bf16.msra.mxu0 0
    %1422 = vmatprep.subr.bf16.mxu0 0
    %1423 = vmatpush1.bf16.msra.mxu0 0
    %1424 = vmatprep.subr.bf16.mxu0 0
    %1425 = vmatpush1.bf16.msra.mxu0 0
    %1426 = vmatprep.subr.bf16.mxu0 0
    %1427 = vmatpush1.bf16.msra.mxu0 0
    %1428 = vmatprep.subr.bf16.mxu0 0
    %1429 = vmatpush1.bf16.msra.mxu0 0
    %1430 = vmatprep.mubr.bf16.mxu0 0
    %1431 = vmatmul.mubr.bf16.gmra.mrb[0].mxu0 %v1396
    %v1432 = vpop.f32.mrb[0].mxu0
    %v1433 = vadd.f32 0.0, %v1432
    %v1434 = vpop.f32.mrb[0].mxu0
    %v1435 = vpop.f32.mrb[0].mxu0
    %v1436 = vadd.f32 0.0, %v1435
    %v1437 = vpop.f32.mrb[0].mxu0
    %1438 = vdwg.mxu0
    %v1439 = vpack.c.bf16 %v1436, %v1433
    %v1441 = vsel %vm981, %v1439, 0
    %v1444 = vsel %vm1226, %v907, 0
    %1446 = vmatprep.subr.bf16.mxu0 0
    %1447 = vmatpush1.bf16.msra.mxu0 %v1444
    %1448 = vmatprep.subr.bf16.mxu0 0
    %1449 = vmatpush1.bf16.msra.mxu0 0
    %1450 = vmatprep.subr.bf16.mxu0 0
    %1451 = vmatpush1.bf16.msra.mxu0 0
    %1452 = vmatprep.subr.bf16.mxu0 0
    %1453 = vmatpush1.bf16.msra.mxu0 0
    %1454 = vmatprep.subr.bf16.mxu0 0
    %1455 = vmatpush1.bf16.msra.mxu0 0
    %1456 = vmatprep.subr.bf16.mxu0 0
    %1457 = vmatpush1.bf16.msra.mxu0 0
    %1458 = vmatprep.subr.bf16.mxu0 0
    %1459 = vmatpush1.bf16.msra.mxu0 0
    %1460 = vmatprep.subr.bf16.mxu0 0
    %1461 = vmatpush1.bf16.msra.mxu0 0
    %1462 = vmatprep.subr.bf16.mxu0 0
    %1463 = vmatpush1.bf16.msra.mxu0 0
    %1464 = vmatprep.subr.bf16.mxu0 0
    %1465 = vmatpush1.bf16.msra.mxu0 0
    %1466 = vmatprep.subr.bf16.mxu0 0
    %1467 = vmatpush1.bf16.msra.mxu0 0
    %1468 = vmatprep.subr.bf16.mxu0 0
    %1469 = vmatpush1.bf16.msra.mxu0 0
    %1470 = vmatprep.subr.bf16.mxu0 0
    %1471 = vmatpush1.bf16.msra.mxu0 0
    %1472 = vmatprep.subr.bf16.mxu0 0
    %1473 = vmatpush1.bf16.msra.mxu0 0
    %1474 = vmatprep.subr.bf16.mxu0 0
    %1475 = vmatpush1.bf16.msra.mxu0 0
    %1476 = vmatprep.subr.bf16.mxu0 0
    %1477 = vmatpush1.bf16.msra.mxu0 0
    %1478 = vmatprep.mubr.bf16.mxu0 0
    %1479 = vmatmul.mubr.bf16.gmra.mrb[0].mxu0 %v1441
    %v1480 = vpop.f32.mrb[0].mxu0
    %v1481 = vadd.f32 0.0, %v1480
    %v1482 = vpop.f32.mrb[0].mxu0
    %v1483 = vpop.f32.mrb[0].mxu0
    %v1484 = vadd.f32 0.0, %v1483
    %v1485 = vpop.f32.mrb[0].mxu0
    %1486 = vdwg.mxu0
    %v1487 = vadd.f32 %v1312, %v1481
    %v1488 = vadd.f32 %v1315, %v1484
    %1489 = vrot.lane.b32.xlu0 %v977, 104
    %v1490 = vpop.permute.xlu0 %1489
    %1491 = vrot.lane.b32.xlu0 %v977, 72
    %v1492 = vpop.permute.xlu0 %1491
    %v1494 = vsel %vm981, %v1490, 0
    %v1497 = vsel %vm981, %v1492, 0
    %1499 = vmatprep.subr.bf16.mxu0 0
    %1500 = vmatpush1.bf16.xpose.msra.mxu0 %v1497
    %1501 = vmatprep.subr.bf16.mxu0 0
    %1502 = vmatpush1.bf16.xpose.msra.mxu0 0
    %1503 = vmatprep.subr.bf16.mxu0 0
    %1504 = vmatpush1.bf16.xpose.msra.mxu0 0
    %1505 = vmatprep.subr.bf16.mxu0 0
    %1506 = vmatpush1.bf16.xpose.msra.mxu0 0
    %1507 = vmatprep.subr.bf16.mxu0 0
    %1508 = vmatpush1.bf16.xpose.msra.mxu0 0
    %1509 = vmatprep.subr.bf16.mxu0 0
    %1510 = vmatpush1.bf16.xpose.msra.mxu0 0
    %1511 = vmatprep.subr.bf16.mxu0 0
    %1512 = vmatpush1.bf16.xpose.msra.mxu0 0
    %1513 = vmatprep.subr.bf16.mxu0 0
    %1514 = vmatpush1.bf16.xpose.msra.mxu0 0
    %1515 = vmatprep.subr.bf16.mxu0 0
    %1516 = vmatpush1.bf16.xpose.msra.mxu0 0
    %1517 = vmatprep.subr.bf16.mxu0 0
    %1518 = vmatpush1.bf16.xpose.msra.mxu0 0
    %1519 = vmatprep.subr.bf16.mxu0 0
    %1520 = vmatpush1.bf16.xpose.msra.mxu0 0
    %1521 = vmatprep.subr.bf16.mxu0 0
    %1522 = vmatpush1.bf16.xpose.msra.mxu0 0
    %1523 = vmatprep.subr.bf16.mxu0 0
    %1524 = vmatpush1.bf16.xpose.msra.mxu0 0
    %1525 = vmatprep.subr.bf16.mxu0 0
    %1526 = vmatpush1.bf16.xpose.msra.mxu0 0
    %1527 = vmatprep.subr.bf16.mxu0 0
    %1528 = vmatpush1.bf16.xpose.msra.mxu0 0
    %1529 = vmatprep.subr.bf16.mxu0 0
    %1530 = vmatpush1.bf16.xpose.msra.mxu0 0
    %1531 = vmatprep.mubr.bf16.mxu0 0
    %1532 = vmatmul.mubr.bf16.gmra.mrb[0].mxu0 %v1494
    %v1533 = vpop.f32.mrb[0].mxu0
    %v1534 = vadd.f32 %v902, %v1533
    %v1535 = vpop.f32.mrb[0].mxu0
    %v1536 = vpop.f32.mrb[0].mxu0
    %v1537 = vadd.f32 %v903, %v1536
    %v1538 = vpop.f32.mrb[0].mxu0
    %1539 = vdwg.mxu0
    %v1540 = vsel %vm1029, %v1534, -inf
    %1541 = vmax.xlane.f32.xlu0 %v1540
    %v1542 = vpop.xlane.xlu0 %1541
    %v1543 = vsel %vm1029, %v1537, -inf
    %1544 = vmax.xlane.f32.xlu0 %v1543
    %v1545 = vpop.xlane.xlu0 %1544
    %v1546 = vsub.f32 %v1534, %v1542
    %v1547 = vsub.f32 %v1537, %v1545
    %v1548 = vmul.f32 %v1546, 1.442695
    %v1549 = vpow.pop %v1548
    %v1550 = vmul.f32 %v1547, 1.442695
    %v1551 = vpow.pop %v1550
    %v1552 = vsel %vm1029, %v1549, 0.0
    %1553 = vadd.xlane.f32.xlu0 %v1552
    %v1554 = vpop.xlane.xlu0 %1553
    %v1555 = vsel %vm1029, %v1551, 0.0
    %1556 = vadd.xlane.f32.xlu0 %v1555
    %v1557 = vpop.xlane.xlu0 %1556
    %v1558 = vrcp.pop %v1554
    %v1559 = vrcp.pop %v1557
    %v1560 = vmul.f32 %v1549, %v1558
    %v1561 = vmul.f32 %v1551, %v1559
    %v1562 = vpack.c.bf16 %v1561, %v1560
    %1563 = vrot.lane.b32.xlu0 %v977, 40
    %v1564 = vpop.permute.xlu0 %1563
    %v1567 = vsel %vm1029, %v1562, 0
    %1569 = vmatprep.subr.bf16.mxu0 0
    %1570 = vmatpush1.bf16.msra.mxu0 %v1564
    %1571 = vmatprep.subr.bf16.mxu0 0
    %1572 = vmatpush1.bf16.msra.mxu0 0
    %1573 = vmatprep.subr.bf16.mxu0 0
    %1574 = vmatpush1.bf16.msra.mxu0 0
    %1575 = vmatprep.subr.bf16.mxu0 0
    %1576 = vmatpush1.bf16.msra.mxu0 0
    %1577 = vmatprep.subr.bf16.mxu0 0
    %1578 = vmatpush1.bf16.msra.mxu0 0
    %1579 = vmatprep.subr.bf16.mxu0 0
    %1580 = vmatpush1.bf16.msra.mxu0 0
    %1581 = vmatprep.subr.bf16.mxu0 0
    %1582 = vmatpush1.bf16.msra.mxu0 0
    %1583 = vmatprep.subr.bf16.mxu0 0
    %1584 = vmatpush1.bf16.msra.mxu0 0
    %1585 = vmatprep.subr.bf16.mxu0 0
    %1586 = vmatpush1.bf16.msra.mxu0 0
    %1587 = vmatprep.subr.bf16.mxu0 0
    %1588 = vmatpush1.bf16.msra.mxu0 0
    %1589 = vmatprep.subr.bf16.mxu0 0
    %1590 = vmatpush1.bf16.msra.mxu0 0
    %1591 = vmatprep.subr.bf16.mxu0 0
    %1592 = vmatpush1.bf16.msra.mxu0 0
    %1593 = vmatprep.subr.bf16.mxu0 0
    %1594 = vmatpush1.bf16.msra.mxu0 0
    %1595 = vmatprep.subr.bf16.mxu0 0
    %1596 = vmatpush1.bf16.msra.mxu0 0
    %1597 = vmatprep.subr.bf16.mxu0 0
    %1598 = vmatpush1.bf16.msra.mxu0 0
    %1599 = vmatprep.subr.bf16.mxu0 0
    %1600 = vmatpush1.bf16.msra.mxu0 0
    %1601 = vmatprep.mubr.bf16.mxu0 0
    %1602 = vmatmul.mubr.bf16.gmra.mrb[0].mxu0 %v1567
    %v1603 = vpop.f32.mrb[0].mxu0
    %v1604 = vadd.f32 0.0, %v1603
    %v1605 = vpop.f32.mrb[0].mxu0
    %v1606 = vpop.f32.mrb[0].mxu0
    %v1607 = vadd.f32 0.0, %v1606
    %v1608 = vpop.f32.mrb[0].mxu0
    %1609 = vdwg.mxu0
    %v1610 = vpack.c.bf16 %v1607, %v1604
    %v1612 = vsel %vm981, %v1610, 0
    %v1615 = vsel %vm1226, %v908, 0
    %1617 = vmatprep.subr.bf16.mxu0 0
    %1618 = vmatpush1.bf16.msra.mxu0 %v1615
    %1619 = vmatprep.subr.bf16.mxu0 0
    %1620 = vmatpush1.bf16.msra.mxu0 0
    %1621 = vmatprep.subr.bf16.mxu0 0
    %1622 = vmatpush1.bf16.msra.mxu0 0
    %1623 = vmatprep.subr.bf16.mxu0 0
    %1624 = vmatpush1.bf16.msra.mxu0 0
    %1625 = vmatprep.subr.bf16.mxu0 0
    %1626 = vmatpush1.bf16.msra.mxu0 0
    %1627 = vmatprep.subr.bf16.mxu0 0
    %1628 = vmatpush1.bf16.msra.mxu0 0
    %1629 = vmatprep.subr.bf16.mxu0 0
    %1630 = vmatpush1.bf16.msra.mxu0 0
    %1631 = vmatprep.subr.bf16.mxu0 0
    %1632 = vmatpush1.bf16.msra.mxu0 0
    %1633 = vmatprep.subr.bf16.mxu0 0
    %1634 = vmatpush1.bf16.msra.mxu0 0
    %1635 = vmatprep.subr.bf16.mxu0 0
    %1636 = vmatpush1.bf16.msra.mxu0 0
    %1637 = vmatprep.subr.bf16.mxu0 0
    %1638 = vmatpush1.bf16.msra.mxu0 0
    %1639 = vmatprep.subr.bf16.mxu0 0
    %1640 = vmatpush1.bf16.msra.mxu0 0
    %1641 = vmatprep.subr.bf16.mxu0 0
    %1642 = vmatpush1.bf16.msra.mxu0 0
    %1643 = vmatprep.subr.bf16.mxu0 0
    %1644 = vmatpush1.bf16.msra.mxu0 0
    %1645 = vmatprep.subr.bf16.mxu0 0
    %1646 = vmatpush1.bf16.msra.mxu0 0
    %1647 = vmatprep.subr.bf16.mxu0 0
    %1648 = vmatpush1.bf16.msra.mxu0 0
    %1649 = vmatprep.mubr.bf16.mxu0 0
    %1650 = vmatmul.mubr.bf16.gmra.mrb[0].mxu0 %v1612
    %v1651 = vpop.f32.mrb[0].mxu0
    %v1652 = vadd.f32 0.0, %v1651
    %v1653 = vpop.f32.mrb[0].mxu0
    %v1654 = vpop.f32.mrb[0].mxu0
    %v1655 = vadd.f32 0.0, %v1654
    %v1656 = vpop.f32.mrb[0].mxu0
    %1657 = vdwg.mxu0
    %v1658 = vadd.f32 %v1487, %v1652
    %v1659 = vadd.f32 %v1488, %v1655
    %v1660 = vld [vmem:[%s9 + $0x2] sm:$0x1]
    %v1661 = vlaneseq
    %v1662 = vshrl.u32 %v1661, 7
    %v1663 = vsub.s32 0, %v1662
    %v1664 = vrot.slane %v1660, %v1663
    %v1665 = vadd.f32 %v1658, %v1664
    %v1666 = vadd.f32 %v1659, %v1664
    %v1667 = vmul.f32 %v1665, 0.5
    %v1668 = vmul.f32 %v1666, 0.5
    %v1669 = vadd.f32 %v900, %v1667
    %v1670 = vadd.f32 %v901, %v1668
    %v1671 = vpack.c.bf16 %v1666, %v1665
    %v1673 = vsel %vm67, %v1671, 0
    %1675 = vmatprep.subr.bf16.mxu0 0
    %1676 = vmatpush1.bf16.msra.mxu0 %v929
    %1677 = vmatprep.subr.bf16.mxu0 0
    %1678 = vmatpush1.bf16.msra.mxu0 %v930
    %1679 = vmatprep.subr.bf16.mxu0 0
    %1680 = vmatpush1.bf16.msra.mxu0 0
    %1681 = vmatprep.subr.bf16.mxu0 0
    %1682 = vmatpush1.bf16.msra.mxu0 0
    %1683 = vmatprep.subr.bf16.mxu0 0
    %1684 = vmatpush1.bf16.msra.mxu0 0
    %1685 = vmatprep.subr.bf16.mxu0 0
    %1686 = vmatpush1.bf16.msra.mxu0 0
    %1687 = vmatprep.subr.bf16.mxu0 0
    %1688 = vmatpush1.bf16.msra.mxu0 0
    %1689 = vmatprep.subr.bf16.mxu0 0
    %1690 = vmatpush1.bf16.msra.mxu0 0
    %1691 = vmatprep.subr.bf16.mxu0 0
    %1692 = vmatpush1.bf16.msra.mxu0 0
    %1693 = vmatprep.subr.bf16.mxu0 0
    %1694 = vmatpush1.bf16.msra.mxu0 0
    %1695 = vmatprep.subr.bf16.mxu0 0
    %1696 = vmatpush1.bf16.msra.mxu0 0
    %1697 = vmatprep.subr.bf16.mxu0 0
    %1698 = vmatpush1.bf16.msra.mxu0 0
    %1699 = vmatprep.subr.bf16.mxu0 0
    %1700 = vmatpush1.bf16.msra.mxu0 0
    %1701 = vmatprep.subr.bf16.mxu0 0
    %1702 = vmatpush1.bf16.msra.mxu0 0
    %1703 = vmatprep.subr.bf16.mxu0 0
    %1704 = vmatpush1.bf16.msra.mxu0 0
    %1705 = vmatprep.subr.bf16.mxu0 0
    %1706 = vmatpush1.bf16.msra.mxu0 0
    %1707 = vmatprep.mubr.bf16.mxu0 0
    %1708 = vmatmul.mubr.bf16.gmra.mrb[0].mxu0 %v1673
    %v1709 = vpop.f32.mrb[0].mxu0
    %v1710 = vadd.f32 %v919, %v1709
    %v1711 = vpop.f32.mrb[0].mxu0
    %v1712 = vpop.f32.mrb[0].mxu0
    %v1713 = vadd.f32 %v919, %v1712
    %v1714 = vpop.f32.mrb[0].mxu0
    %1715 = vdwg.mxu0
    %v1716 = vpack.c.bf16 %v1713, %v1710
    %1718 = vrot.lane.b32.xlu0 %v1716, 96
    %v1719 = vpop.permute.xlu0 %1718
    %v1721 = vsel %vm981, %v1716, 0
    %v1724 = vsel %vm981, %v1719, 0
    %1726 = vmatprep.subr.bf16.mxu0 0
    %1727 = vmatpush1.bf16.xpose.msra.mxu0 %v1724
    %1728 = vmatprep.subr.bf16.mxu0 0
    %1729 = vmatpush1.bf16.xpose.msra.mxu0 0
    %1730 = vmatprep.subr.bf16.mxu0 0
    %1731 = vmatpush1.bf16.xpose.msra.mxu0 0
    %1732 = vmatprep.subr.bf16.mxu0 0
    %1733 = vmatpush1.bf16.xpose.msra.mxu0 0
    %1734 = vmatprep.subr.bf16.mxu0 0
    %1735 = vmatpush1.bf16.xpose.msra.mxu0 0
    %1736 = vmatprep.subr.bf16.mxu0 0
    %1737 = vmatpush1.bf16.xpose.msra.mxu0 0
    %1738 = vmatprep.subr.bf16.mxu0 0
    %1739 = vmatpush1.bf16.xpose.msra.mxu0 0
    %1740 = vmatprep.subr.bf16.mxu0 0
    %1741 = vmatpush1.bf16.xpose.msra.mxu0 0
    %1742 = vmatprep.subr.bf16.mxu0 0
    %1743 = vmatpush1.bf16.xpose.msra.mxu0 0
    %1744 = vmatprep.subr.bf16.mxu0 0
    %1745 = vmatpush1.bf16.xpose.msra.mxu0 0
    %1746 = vmatprep.subr.bf16.mxu0 0
    %1747 = vmatpush1.bf16.xpose.msra.mxu0 0
    %1748 = vmatprep.subr.bf16.mxu0 0
    %1749 = vmatpush1.bf16.xpose.msra.mxu0 0
    %1750 = vmatprep.subr.bf16.mxu0 0
    %1751 = vmatpush1.bf16.xpose.msra.mxu0 0
    %1752 = vmatprep.subr.bf16.mxu0 0
    %1753 = vmatpush1.bf16.xpose.msra.mxu0 0
    %1754 = vmatprep.subr.bf16.mxu0 0
    %1755 = vmatpush1.bf16.xpose.msra.mxu0 0
    %1756 = vmatprep.subr.bf16.mxu0 0
    %1757 = vmatpush1.bf16.xpose.msra.mxu0 0
    %1758 = vmatprep.mubr.bf16.mxu0 0
    %1759 = vmatmul.mubr.bf16.gmra.mrb[0].mxu0 %v1721
    %v1760 = vpop.f32.mrb[0].mxu0
    %v1761 = vadd.f32 %v902, %v1760
    %v1762 = vpop.f32.mrb[0].mxu0
    %v1763 = vpop.f32.mrb[0].mxu0
    %v1764 = vadd.f32 %v903, %v1763
    %v1765 = vpop.f32.mrb[0].mxu0
    %1766 = vdwg.mxu0
    %v1767 = vsel %vm1029, %v1761, -inf
    %1768 = vmax.xlane.f32.xlu0 %v1767
    %v1769 = vpop.xlane.xlu0 %1768
    %v1770 = vsel %vm1029, %v1764, -inf
    %1771 = vmax.xlane.f32.xlu0 %v1770
    %v1772 = vpop.xlane.xlu0 %1771
    %v1773 = vsub.f32 %v1761, %v1769
    %v1774 = vsub.f32 %v1764, %v1772
    %v1775 = vmul.f32 %v1773, 1.442695
    %v1776 = vpow.pop %v1775
    %v1777 = vmul.f32 %v1774, 1.442695
    %v1778 = vpow.pop %v1777
    %v1779 = vsel %vm1029, %v1776, 0.0
    %1780 = vadd.xlane.f32.xlu0 %v1779
    %v1781 = vpop.xlane.xlu0 %1780
    %v1782 = vsel %vm1029, %v1778, 0.0
    %1783 = vadd.xlane.f32.xlu0 %v1782
    %v1784 = vpop.xlane.xlu0 %1783
    %v1785 = vrcp.pop %v1781
    %v1786 = vrcp.pop %v1784
    %v1787 = vmul.f32 %v1776, %v1785
    %v1788 = vmul.f32 %v1778, %v1786
    %v1789 = vpack.c.bf16 %v1788, %v1787
    %1790 = vrot.lane.b32.xlu0 %v1716, 64
    %v1791 = vpop.permute.xlu0 %1790
    %v1794 = vsel %vm1029, %v1789, 0
    %1796 = vmatprep.subr.bf16.mxu0 0
    %1797 = vmatpush1.bf16.msra.mxu0 %v1791
    %1798 = vmatprep.subr.bf16.mxu0 0
    %1799 = vmatpush1.bf16.msra.mxu0 0
    %1800 = vmatprep.subr.bf16.mxu0 0
    %1801 = vmatpush1.bf16.msra.mxu0 0
    %1802 = vmatprep.subr.bf16.mxu0 0
    %1803 = vmatpush1.bf16.msra.mxu0 0
    %1804 = vmatprep.subr.bf16.mxu0 0
    %1805 = vmatpush1.bf16.msra.mxu0 0
    %1806 = vmatprep.subr.bf16.mxu0 0
    %1807 = vmatpush1.bf16.msra.mxu0 0
    %1808 = vmatprep.subr.bf16.mxu0 0
    %1809 = vmatpush1.bf16.msra.mxu0 0
    %1810 = vmatprep.subr.bf16.mxu0 0
    %1811 = vmatpush1.bf16.msra.mxu0 0
    %1812 = vmatprep.subr.bf16.mxu0 0
    %1813 = vmatpush1.bf16.msra.mxu0 0
    %1814 = vmatprep.subr.bf16.mxu0 0
    %1815 = vmatpush1.bf16.msra.mxu0 0
    %1816 = vmatprep.subr.bf16.mxu0 0
    %1817 = vmatpush1.bf16.msra.mxu0 0
    %1818 = vmatprep.subr.bf16.mxu0 0
    %1819 = vmatpush1.bf16.msra.mxu0 0
    %1820 = vmatprep.subr.bf16.mxu0 0
    %1821 = vmatpush1.bf16.msra.mxu0 0
    %1822 = vmatprep.subr.bf16.mxu0 0
    %1823 = vmatpush1.bf16.msra.mxu0 0
    %1824 = vmatprep.subr.bf16.mxu0 0
    %1825 = vmatpush1.bf16.msra.mxu0 0
    %1826 = vmatprep.subr.bf16.mxu0 0
    %1827 = vmatpush1.bf16.msra.mxu0 0
    %1828 = vmatprep.mubr.bf16.mxu0 0
    %1829 = vmatmul.mubr.bf16.gmra.mrb[0].mxu0 %v1794
    %v1830 = vpop.f32.mrb[0].mxu0
    %v1831 = vadd.f32 0.0, %v1830
    %v1832 = vpop.f32.mrb[0].mxu0
    %v1833 = vpop.f32.mrb[0].mxu0
    %v1834 = vadd.f32 0.0, %v1833
    %v1835 = vpop.f32.mrb[0].mxu0
    %1836 = vdwg.mxu0
    %v1837 = vpack.c.bf16 %v1834, %v1831
    %1838 = vrot.lane.b32.xlu0 %v1716, 120
    %v1839 = vpop.permute.xlu0 %1838
    %1840 = vrot.lane.b32.xlu0 %v1716, 88
    %v1841 = vpop.permute.xlu0 %1840
    %v1843 = vsel %vm981, %v1839, 0
    %v1846 = vsel %vm981, %v1841, 0
    %1848 = vmatprep.subr.bf16.mxu0 0
    %1849 = vmatpush1.bf16.xpose.msra.mxu0 %v1846
    %1850 = vmatprep.subr.bf16.mxu0 0
    %1851 = vmatpush1.bf16.xpose.msra.mxu0 0
    %1852 = vmatprep.subr.bf16.mxu0 0
    %1853 = vmatpush1.bf16.xpose.msra.mxu0 0
    %1854 = vmatprep.subr.bf16.mxu0 0
    %1855 = vmatpush1.bf16.xpose.msra.mxu0 0
    %1856 = vmatprep.subr.bf16.mxu0 0
    %1857 = vmatpush1.bf16.xpose.msra.mxu0 0
    %1858 = vmatprep.subr.bf16.mxu0 0
    %1859 = vmatpush1.bf16.xpose.msra.mxu0 0
    %1860 = vmatprep.subr.bf16.mxu0 0
    %1861 = vmatpush1.bf16.xpose.msra.mxu0 0
    %1862 = vmatprep.subr.bf16.mxu0 0
    %1863 = vmatpush1.bf16.xpose.msra.mxu0 0
    %1864 = vmatprep.subr.bf16.mxu0 0
    %1865 = vmatpush1.bf16.xpose.msra.mxu0 0
    %1866 = vmatprep.subr.bf16.mxu0 0
    %1867 = vmatpush1.bf16.xpose.msra.mxu0 0
    %1868 = vmatprep.subr.bf16.mxu0 0
    %1869 = vmatpush1.bf16.xpose.msra.mxu0 0
    %1870 = vmatprep.subr.bf16.mxu0 0
    %1871 = vmatpush1.bf16.xpose.msra.mxu0 0
    %1872 = vmatprep.subr.bf16.mxu0 0
    %1873 = vmatpush1.bf16.xpose.msra.mxu0 0
    %1874 = vmatprep.subr.bf16.mxu0 0
    %1875 = vmatpush1.bf16.xpose.msra.mxu0 0
    %1876 = vmatprep.subr.bf16.mxu0 0
    %1877 = vmatpush1.bf16.xpose.msra.mxu0 0
    %1878 = vmatprep.subr.bf16.mxu0 0
    %1879 = vmatpush1.bf16.xpose.msra.mxu0 0
    %1880 = vmatprep.mubr.bf16.mxu0 0
    %1881 = vmatmul.mubr.bf16.gmra.mrb[0].mxu0 %v1843
    %v1882 = vpop.f32.mrb[0].mxu0
    %v1883 = vadd.f32 %v902, %v1882
    %v1884 = vpop.f32.mrb[0].mxu0
    %v1885 = vpop.f32.mrb[0].mxu0
    %v1886 = vadd.f32 %v903, %v1885
    %v1887 = vpop.f32.mrb[0].mxu0
    %1888 = vdwg.mxu0
    %v1889 = vsel %vm1029, %v1883, -inf
    %1890 = vmax.xlane.f32.xlu0 %v1889
    %v1891 = vpop.xlane.xlu0 %1890
    %v1892 = vsel %vm1029, %v1886, -inf
    %1893 = vmax.xlane.f32.xlu0 %v1892
    %v1894 = vpop.xlane.xlu0 %1893
    %v1895 = vsub.f32 %v1883, %v1891
    %v1896 = vsub.f32 %v1886, %v1894
    %v1897 = vmul.f32 %v1895, 1.442695
    %v1898 = vpow.pop %v1897
    %v1899 = vmul.f32 %v1896, 1.442695
    %v1900 = vpow.pop %v1899
    %v1901 = vsel %vm1029, %v1898, 0.0
    %1902 = vadd.xlane.f32.xlu0 %v1901
    %v1903 = vpop.xlane.xlu0 %1902
    %v1904 = vsel %vm1029, %v1900, 0.0
    %1905 = vadd.xlane.f32.xlu0 %v1904
    %v1906 = vpop.xlane.xlu0 %1905
    %v1907 = vrcp.pop %v1903
    %v1908 = vrcp.pop %v1906
    %v1909 = vmul.f32 %v1898, %v1907
    %v1910 = vmul.f32 %v1900, %v1908
    %v1911 = vpack.c.bf16 %v1910, %v1909
    %1912 = vrot.lane.b32.xlu0 %v1716, 56
    %v1913 = vpop.permute.xlu0 %1912
    %v1916 = vsel %vm1029, %v1911, 0
    %1918 = vmatprep.subr.bf16.mxu0 0
    %1919 = vmatpush1.bf16.msra.mxu0 %v1913
    %1920 = vmatprep.subr.bf16.mxu0 0
    %1921 = vmatpush1.bf16.msra.mxu0 0
    %1922 = vmatprep.subr.bf16.mxu0 0
    %1923 = vmatpush1.bf16.msra.mxu0 0
    %1924 = vmatprep.subr.bf16.mxu0 0
    %1925 = vmatpush1.bf16.msra.mxu0 0
    %1926 = vmatprep.subr.bf16.mxu0 0
    %1927 = vmatpush1.bf16.msra.mxu0 0
    %1928 = vmatprep.subr.bf16.mxu0 0
    %1929 = vmatpush1.bf16.msra.mxu0 0
    %1930 = vmatprep.subr.bf16.mxu0 0
    %1931 = vmatpush1.bf16.msra.mxu0 0
    %1932 = vmatprep.subr.bf16.mxu0 0
    %1933 = vmatpush1.bf16.msra.mxu0 0
    %1934 = vmatprep.subr.bf16.mxu0 0
    %1935 = vmatpush1.bf16.msra.mxu0 0
    %1936 = vmatprep.subr.bf16.mxu0 0
    %1937 = vmatpush1.bf16.msra.mxu0 0
    %1938 = vmatprep.subr.bf16.mxu0 0
    %1939 = vmatpush1.bf16.msra.mxu0 0
    %1940 = vmatprep.subr.bf16.mxu0 0
    %1941 = vmatpush1.bf16.msra.mxu0 0
    %1942 = vmatprep.subr.bf16.mxu0 0
    %1943 = vmatpush1.bf16.msra.mxu0 0
    %1944 = vmatprep.subr.bf16.mxu0 0
    %1945 = vmatpush1.bf16.msra.mxu0 0
    %1946 = vmatprep.subr.bf16.mxu0 0
    %1947 = vmatpush1.bf16.msra.mxu0 0
    %1948 = vmatprep.subr.bf16.mxu0 0
    %1949 = vmatpush1.bf16.msra.mxu0 0
    %1950 = vmatprep.mubr.bf16.mxu0 0
    %1951 = vmatmul.mubr.bf16.gmra.mrb[0].mxu0 %v1916
    %v1952 = vpop.f32.mrb[0].mxu0
    %v1953 = vadd.f32 0.0, %v1952
    %v1954 = vpop.f32.mrb[0].mxu0
    %v1955 = vpop.f32.mrb[0].mxu0
    %v1956 = vadd.f32 0.0, %v1955
    %v1957 = vpop.f32.mrb[0].mxu0
    %1958 = vdwg.mxu0
    %v1959 = vpack.c.bf16 %v1956, %v1953
    %v1961 = vsel %vm981, %v1959, 0
    %1963 = vmatprep.subr.bf16.mxu0 0
    %1964 = vmatpush1.bf16.msra.mxu0 %v1228
    %1965 = vmatprep.subr.bf16.mxu0 0
    %1966 = vmatpush1.bf16.msra.mxu0 0
    %1967 = vmatprep.subr.bf16.mxu0 0
    %1968 = vmatpush1.bf16.msra.mxu0 0
    %1969 = vmatprep.subr.bf16.mxu0 0
    %1970 = vmatpush1.bf16.msra.mxu0 0
    %1971 = vmatprep.subr.bf16.mxu0 0
    %1972 = vmatpush1.bf16.msra.mxu0 0
    %1973 = vmatprep.subr.bf16.mxu0 0
    %1974 = vmatpush1.bf16.msra.mxu0 0
    %1975 = vmatprep.subr.bf16.mxu0 0
    %1976 = vmatpush1.bf16.msra.mxu0 0
    %1977 = vmatprep.subr.bf16.mxu0 0
    %1978 = vmatpush1.bf16.msra.mxu0 0
    %1979 = vmatprep.subr.bf16.mxu0 0
    %1980 = vmatpush1.bf16.msra.mxu0 0
    %1981 = vmatprep.subr.bf16.mxu0 0
    %1982 = vmatpush1.bf16.msra.mxu0 0
    %1983 = vmatprep.subr.bf16.mxu0 0
    %1984 = vmatpush1.bf16.msra.mxu0 0
    %1985 = vmatprep.subr.bf16.mxu0 0
    %1986 = vmatpush1.bf16.msra.mxu0 0
    %1987 = vmatprep.subr.bf16.mxu0 0
    %1988 = vmatpush1.bf16.msra.mxu0 0
    %1989 = vmatprep.subr.bf16.mxu0 0
    %1990 = vmatpush1.bf16.msra.mxu0 0
    %1991 = vmatprep.subr.bf16.mxu0 0
    %1992 = vmatpush1.bf16.msra.mxu0 0
    %1993 = vmatprep.subr.bf16.mxu0 0
    %1994 = vmatpush1.bf16.msra.mxu0 0
    %1995 = vmatprep.mubr.bf16.mxu0 0
    %1996 = vmatmul.mubr.bf16.gmra.mrb[0].mxu0 %v1961
    %v1997 = vpop.f32.mrb[0].mxu0
    %v1998 = vadd.f32 0.0, %v1997
    %v1999 = vpop.f32.mrb[0].mxu0
    %v2000 = vpop.f32.mrb[0].mxu0
    %v2001 = vadd.f32 0.0, %v2000
    %v2002 = vpop.f32.mrb[0].mxu0
    %2003 = vdwg.mxu0
    %v2005 = vsel %vm981, %v1837, 0
    %2007 = vmatprep.subr.bf16.mxu0 0
    %2008 = vmatpush1.bf16.msra.mxu0 %v1275
    %2009 = vmatprep.subr.bf16.mxu0 0
    %2010 = vmatpush1.bf16.msra.mxu0 0
    %2011 = vmatprep.subr.bf16.mxu0 0
    %2012 = vmatpush1.bf16.msra.mxu0 0
    %2013 = vmatprep.subr.bf16.mxu0 0
    %2014 = vmatpush1.bf16.msra.mxu0 0
    %2015 = vmatprep.subr.bf16.mxu0 0
    %2016 = vmatpush1.bf16.msra.mxu0 0
    %2017 = vmatprep.subr.bf16.mxu0 0
    %2018 = vmatpush1.bf16.msra.mxu0 0
    %2019 = vmatprep.subr.bf16.mxu0 0
    %2020 = vmatpush1.bf16.msra.mxu0 0
    %2021 = vmatprep.subr.bf16.mxu0 0
    %2022 = vmatpush1.bf16.msra.mxu0 0
    %2023 = vmatprep.subr.bf16.mxu0 0
    %2024 = vmatpush1.bf16.msra.mxu0 0
    %2025 = vmatprep.subr.bf16.mxu0 0
    %2026 = vmatpush1.bf16.msra.mxu0 0
    %2027 = vmatprep.subr.bf16.mxu0 0
    %2028 = vmatpush1.bf16.msra.mxu0 0
    %2029 = vmatprep.subr.bf16.mxu0 0
    %2030 = vmatpush1.bf16.msra.mxu0 0
    %2031 = vmatprep.subr.bf16.mxu0 0
    %2032 = vmatpush1.bf16.msra.mxu0 0
    %2033 = vmatprep.subr.bf16.mxu0 0
    %2034 = vmatpush1.bf16.msra.mxu0 0
    %2035 = vmatprep.subr.bf16.mxu0 0
    %2036 = vmatpush1.bf16.msra.mxu0 0
    %2037 = vmatprep.subr.bf16.mxu0 0
    %2038 = vmatpush1.bf16.msra.mxu0 0
    %2039 = vmatprep.mubr.bf16.mxu0 0
    %2040 = vmatmul.mubr.bf16.gmra.mrb[0].mxu0 %v2005
    %v2041 = vpop.f32.mrb[0].mxu0
    %v2042 = vadd.f32 %v1998, %v2041
    %v2043 = vpop.f32.mrb[0].mxu0
    %v2044 = vpop.f32.mrb[0].mxu0
    %v2045 = vadd.f32 %v2001, %v2044
    %v2046 = vpop.f32.mrb[0].mxu0
    %2047 = vdwg.mxu0
    %2048 = vrot.lane.b32.xlu0 %v1716, 112
    %v2049 = vpop.permute.xlu0 %2048
    %2050 = vrot.lane.b32.xlu0 %v1716, 80
    %v2051 = vpop.permute.xlu0 %2050
    %v2053 = vsel %vm981, %v2049, 0
    %v2056 = vsel %vm981, %v2051, 0
    %2058 = vmatprep.subr.bf16.mxu0 0
    %2059 = vmatpush1.bf16.xpose.msra.mxu0 %v2056
    %2060 = vmatprep.subr.bf16.mxu0 0
    %2061 = vmatpush1.bf16.xpose.msra.mxu0 0
    %2062 = vmatprep.subr.bf16.mxu0 0
    %2063 = vmatpush1.bf16.xpose.msra.mxu0 0
    %2064 = vmatprep.subr.bf16.mxu0 0
    %2065 = vmatpush1.bf16.xpose.msra.mxu0 0
    %2066 = vmatprep.subr.bf16.mxu0 0
    %2067 = vmatpush1.bf16.xpose.msra.mxu0 0
    %2068 = vmatprep.subr.bf16.mxu0 0
    %2069 = vmatpush1.bf16.xpose.msra.mxu0 0
    %2070 = vmatprep.subr.bf16.mxu0 0
    %2071 = vmatpush1.bf16.xpose.msra.mxu0 0
    %2072 = vmatprep.subr.bf16.mxu0 0
    %2073 = vmatpush1.bf16.xpose.msra.mxu0 0
    %2074 = vmatprep.subr.bf16.mxu0 0
    %2075 = vmatpush1.bf16.xpose.msra.mxu0 0
    %2076 = vmatprep.subr.bf16.mxu0 0
    %2077 = vmatpush1.bf16.xpose.msra.mxu0 0
    %2078 = vmatprep.subr.bf16.mxu0 0
    %2079 = vmatpush1.bf16.xpose.msra.mxu0 0
    %2080 = vmatprep.subr.bf16.mxu0 0
    %2081 = vmatpush1.bf16.xpose.msra.mxu0 0
    %2082 = vmatprep.subr.bf16.mxu0 0
    %2083 = vmatpush1.bf16.xpose.msra.mxu0 0
    %2084 = vmatprep.subr.bf16.mxu0 0
    %2085 = vmatpush1.bf16.xpose.msra.mxu0 0
    %2086 = vmatprep.subr.bf16.mxu0 0
    %2087 = vmatpush1.bf16.xpose.msra.mxu0 0
    %2088 = vmatprep.subr.bf16.mxu0 0
    %2089 = vmatpush1.bf16.xpose.msra.mxu0 0
    %2090 = vmatprep.mubr.bf16.mxu0 0
    %2091 = vmatmul.mubr.bf16.gmra.mrb[0].mxu0 %v2053
    %v2092 = vpop.f32.mrb[0].mxu0
    %v2093 = vadd.f32 %v902, %v2092
    %v2094 = vpop.f32.mrb[0].mxu0
    %v2095 = vpop.f32.mrb[0].mxu0
    %v2096 = vadd.f32 %v903, %v2095
    %v2097 = vpop.f32.mrb[0].mxu0
    %2098 = vdwg.mxu0
    %v2099 = vsel %vm1029, %v2093, -inf
    %2100 = vmax.xlane.f32.xlu0 %v2099
    %v2101 = vpop.xlane.xlu0 %2100
    %v2102 = vsel %vm1029, %v2096, -inf
    %2103 = vmax.xlane.f32.xlu0 %v2102
    %v2104 = vpop.xlane.xlu0 %2103
    %v2105 = vsub.f32 %v2093, %v2101
    %v2106 = vsub.f32 %v2096, %v2104
    %v2107 = vmul.f32 %v2105, 1.442695
    %v2108 = vpow.pop %v2107
    %v2109 = vmul.f32 %v2106, 1.442695
    %v2110 = vpow.pop %v2109
    %v2111 = vsel %vm1029, %v2108, 0.0
    %2112 = vadd.xlane.f32.xlu0 %v2111
    %v2113 = vpop.xlane.xlu0 %2112
    %v2114 = vsel %vm1029, %v2110, 0.0
    %2115 = vadd.xlane.f32.xlu0 %v2114
    %v2116 = vpop.xlane.xlu0 %2115
    %v2117 = vrcp.pop %v2113
    %v2118 = vrcp.pop %v2116
    %v2119 = vmul.f32 %v2108, %v2117
    %v2120 = vmul.f32 %v2110, %v2118
    %v2121 = vpack.c.bf16 %v2120, %v2119
    %2122 = vrot.lane.b32.xlu0 %v1716, 48
    %v2123 = vpop.permute.xlu0 %2122
    %v2126 = vsel %vm1029, %v2121, 0
    %2128 = vmatprep.subr.bf16.mxu0 0
    %2129 = vmatpush1.bf16.msra.mxu0 %v2123
    %2130 = vmatprep.subr.bf16.mxu0 0
    %2131 = vmatpush1.bf16.msra.mxu0 0
    %2132 = vmatprep.subr.bf16.mxu0 0
    %2133 = vmatpush1.bf16.msra.mxu0 0
    %2134 = vmatprep.subr.bf16.mxu0 0
    %2135 = vmatpush1.bf16.msra.mxu0 0
    %2136 = vmatprep.subr.bf16.mxu0 0
    %2137 = vmatpush1.bf16.msra.mxu0 0
    %2138 = vmatprep.subr.bf16.mxu0 0
    %2139 = vmatpush1.bf16.msra.mxu0 0
    %2140 = vmatprep.subr.bf16.mxu0 0
    %2141 = vmatpush1.bf16.msra.mxu0 0
    %2142 = vmatprep.subr.bf16.mxu0 0
    %2143 = vmatpush1.bf16.msra.mxu0 0
    %2144 = vmatprep.subr.bf16.mxu0 0
    %2145 = vmatpush1.bf16.msra.mxu0 0
    %2146 = vmatprep.subr.bf16.mxu0 0
    %2147 = vmatpush1.bf16.msra.mxu0 0
    %2148 = vmatprep.subr.bf16.mxu0 0
    %2149 = vmatpush1.bf16.msra.mxu0 0
    %2150 = vmatprep.subr.bf16.mxu0 0
    %2151 = vmatpush1.bf16.msra.mxu0 0
    %2152 = vmatprep.subr.bf16.mxu0 0
    %2153 = vmatpush1.bf16.msra.mxu0 0
    %2154 = vmatprep.subr.bf16.mxu0 0
    %2155 = vmatpush1.bf16.msra.mxu0 0
    %2156 = vmatprep.subr.bf16.mxu0 0
    %2157 = vmatpush1.bf16.msra.mxu0 0
    %2158 = vmatprep.subr.bf16.mxu0 0
    %2159 = vmatpush1.bf16.msra.mxu0 0
    %2160 = vmatprep.mubr.bf16.mxu0 0
    %2161 = vmatmul.mubr.bf16.gmra.mrb[0].mxu0 %v2126
    %v2162 = vpop.f32.mrb[0].mxu0
    %v2163 = vadd.f32 0.0, %v2162
    %v2164 = vpop.f32.mrb[0].mxu0
    %v2165 = vpop.f32.mrb[0].mxu0
    %v2166 = vadd.f32 0.0, %v2165
    %v2167 = vpop.f32.mrb[0].mxu0
    %2168 = vdwg.mxu0
    %v2169 = vpack.c.bf16 %v2166, %v2163
    %v2171 = vsel %vm981, %v2169, 0
    %2173 = vmatprep.subr.bf16.mxu0 0
    %2174 = vmatpush1.bf16.msra.mxu0 %v1444
    %2175 = vmatprep.subr.bf16.mxu0 0
    %2176 = vmatpush1.bf16.msra.mxu0 0
    %2177 = vmatprep.subr.bf16.mxu0 0
    %2178 = vmatpush1.bf16.msra.mxu0 0
    %2179 = vmatprep.subr.bf16.mxu0 0
    %2180 = vmatpush1.bf16.msra.mxu0 0
    %2181 = vmatprep.subr.bf16.mxu0 0
    %2182 = vmatpush1.bf16.msra.mxu0 0
    %2183 = vmatprep.subr.bf16.mxu0 0
    %2184 = vmatpush1.bf16.msra.mxu0 0
    %2185 = vmatprep.subr.bf16.mxu0 0
    %2186 = vmatpush1.bf16.msra.mxu0 0
    %2187 = vmatprep.subr.bf16.mxu0 0
    %2188 = vmatpush1.bf16.msra.mxu0 0
    %2189 = vmatprep.subr.bf16.mxu0 0
    %2190 = vmatpush1.bf16.msra.mxu0 0
    %2191 = vmatprep.subr.bf16.mxu0 0
    %2192 = vmatpush1.bf16.msra.mxu0 0
    %2193 = vmatprep.subr.bf16.mxu0 0
    %2194 = vmatpush1.bf16.msra.mxu0 0
    %2195 = vmatprep.subr.bf16.mxu0 0
    %2196 = vmatpush1.bf16.msra.mxu0 0
    %2197 = vmatprep.subr.bf16.mxu0 0
    %2198 = vmatpush1.bf16.msra.mxu0 0
    %2199 = vmatprep.subr.bf16.mxu0 0
    %2200 = vmatpush1.bf16.msra.mxu0 0
    %2201 = vmatprep.subr.bf16.mxu0 0
    %2202 = vmatpush1.bf16.msra.mxu0 0
    %2203 = vmatprep.subr.bf16.mxu0 0
    %2204 = vmatpush1.bf16.msra.mxu0 0
    %2205 = vmatprep.mubr.bf16.mxu0 0
    %2206 = vmatmul.mubr.bf16.gmra.mrb[0].mxu0 %v2171
    %v2207 = vpop.f32.mrb[0].mxu0
    %v2208 = vadd.f32 0.0, %v2207
    %v2209 = vpop.f32.mrb[0].mxu0
    %v2210 = vpop.f32.mrb[0].mxu0
    %v2211 = vadd.f32 0.0, %v2210
    %v2212 = vpop.f32.mrb[0].mxu0
    %2213 = vdwg.mxu0
    %v2214 = vadd.f32 %v2042, %v2208
    %v2215 = vadd.f32 %v2045, %v2211
    %2216 = vrot.lane.b32.xlu0 %v1716, 104
    %v2217 = vpop.permute.xlu0 %2216
    %2218 = vrot.lane.b32.xlu0 %v1716, 72
    %v2219 = vpop.permute.xlu0 %2218
    %v2221 = vsel %vm981, %v2217, 0
    %v2224 = vsel %vm981, %v2219, 0
    %2226 = vmatprep.subr.bf16.mxu0 0
    %2227 = vmatpush1.bf16.xpose.msra.mxu0 %v2224
    %2228 = vmatprep.subr.bf16.mxu0 0
    %2229 = vmatpush1.bf16.xpose.msra.mxu0 0
    %2230 = vmatprep.subr.bf16.mxu0 0
    %2231 = vmatpush1.bf16.xpose.msra.mxu0 0
    %2232 = vmatprep.subr.bf16.mxu0 0
    %2233 = vmatpush1.bf16.xpose.msra.mxu0 0
    %2234 = vmatprep.subr.bf16.mxu0 0
    %2235 = vmatpush1.bf16.xpose.msra.mxu0 0
    %2236 = vmatprep.subr.bf16.mxu0 0
    %2237 = vmatpush1.bf16.xpose.msra.mxu0 0
    %2238 = vmatprep.subr.bf16.mxu0 0
    %2239 = vmatpush1.bf16.xpose.msra.mxu0 0
    %2240 = vmatprep.subr.bf16.mxu0 0
    %2241 = vmatpush1.bf16.xpose.msra.mxu0 0
    %2242 = vmatprep.subr.bf16.mxu0 0
    %2243 = vmatpush1.bf16.xpose.msra.mxu0 0
    %2244 = vmatprep.subr.bf16.mxu0 0
    %2245 = vmatpush1.bf16.xpose.msra.mxu0 0
    %2246 = vmatprep.subr.bf16.mxu0 0
    %2247 = vmatpush1.bf16.xpose.msra.mxu0 0
    %2248 = vmatprep.subr.bf16.mxu0 0
    %2249 = vmatpush1.bf16.xpose.msra.mxu0 0
    %2250 = vmatprep.subr.bf16.mxu0 0
    %2251 = vmatpush1.bf16.xpose.msra.mxu0 0
    %2252 = vmatprep.subr.bf16.mxu0 0
    %2253 = vmatpush1.bf16.xpose.msra.mxu0 0
    %2254 = vmatprep.subr.bf16.mxu0 0
    %2255 = vmatpush1.bf16.xpose.msra.mxu0 0
    %2256 = vmatprep.subr.bf16.mxu0 0
    %2257 = vmatpush1.bf16.xpose.msra.mxu0 0
    %2258 = vmatprep.mubr.bf16.mxu0 0
    %2259 = vmatmul.mubr.bf16.gmra.mrb[0].mxu0 %v2221
    %v2260 = vpop.f32.mrb[0].mxu0
    %v2261 = vadd.f32 %v902, %v2260
    %v2262 = vpop.f32.mrb[0].mxu0
    %v2263 = vpop.f32.mrb[0].mxu0
    %v2264 = vadd.f32 %v903, %v2263
    %v2265 = vpop.f32.mrb[0].mxu0
    %2266 = vdwg.mxu0
    %v2267 = vsel %vm1029, %v2261, -inf
    %2268 = vmax.xlane.f32.xlu0 %v2267
    %v2269 = vpop.xlane.xlu0 %2268
    %v2270 = vsel %vm1029, %v2264, -inf
    %2271 = vmax.xlane.f32.xlu0 %v2270
    %v2272 = vpop.xlane.xlu0 %2271
    %v2273 = vsub.f32 %v2261, %v2269
    %v2274 = vsub.f32 %v2264, %v2272
    %v2275 = vmul.f32 %v2273, 1.442695
    %v2276 = vpow.pop %v2275
    %v2277 = vmul.f32 %v2274, 1.442695
    %v2278 = vpow.pop %v2277
    %v2279 = vsel %vm1029, %v2276, 0.0
    %2280 = vadd.xlane.f32.xlu0 %v2279
    %v2281 = vpop.xlane.xlu0 %2280
    %v2282 = vsel %vm1029, %v2278, 0.0
    %2283 = vadd.xlane.f32.xlu0 %v2282
    %v2284 = vpop.xlane.xlu0 %2283
    %v2285 = vrcp.pop %v2281
    %v2286 = vrcp.pop %v2284
    %v2287 = vmul.f32 %v2276, %v2285
    %v2288 = vmul.f32 %v2278, %v2286
    %v2289 = vpack.c.bf16 %v2288, %v2287
    %2290 = vrot.lane.b32.xlu0 %v1716, 40
    %v2291 = vpop.permute.xlu0 %2290
    %v2294 = vsel %vm1029, %v2289, 0
    %2296 = vmatprep.subr.bf16.mxu0 0
    %2297 = vmatpush1.bf16.msra.mxu0 %v2291
    %2298 = vmatprep.subr.bf16.mxu0 0
    %2299 = vmatpush1.bf16.msra.mxu0 0
    %2300 = vmatprep.subr.bf16.mxu0 0
    %2301 = vmatpush1.bf16.msra.mxu0 0
    %2302 = vmatprep.subr.bf16.mxu0 0
    %2303 = vmatpush1.bf16.msra.mxu0 0
    %2304 = vmatprep.subr.bf16.mxu0 0
    %2305 = vmatpush1.bf16.msra.mxu0 0
    %2306 = vmatprep.subr.bf16.mxu0 0
    %2307 = vmatpush1.bf16.msra.mxu0 0
    %2308 = vmatprep.subr.bf16.mxu0 0
    %2309 = vmatpush1.bf16.msra.mxu0 0
    %2310 = vmatprep.subr.bf16.mxu0 0
    %2311 = vmatpush1.bf16.msra.mxu0 0
    %2312 = vmatprep.subr.bf16.mxu0 0
    %2313 = vmatpush1.bf16.msra.mxu0 0
    %2314 = vmatprep.subr.bf16.mxu0 0
    %2315 = vmatpush1.bf16.msra.mxu0 0
    %2316 = vmatprep.subr.bf16.mxu0 0
    %2317 = vmatpush1.bf16.msra.mxu0 0
    %2318 = vmatprep.subr.bf16.mxu0 0
    %2319 = vmatpush1.bf16.msra.mxu0 0
    %2320 = vmatprep.subr.bf16.mxu0 0
    %2321 = vmatpush1.bf16.msra.mxu0 0
    %2322 = vmatprep.subr.bf16.mxu0 0
    %2323 = vmatpush1.bf16.msra.mxu0 0
    %2324 = vmatprep.subr.bf16.mxu0 0
    %2325 = vmatpush1.bf16.msra.mxu0 0
    %2326 = vmatprep.subr.bf16.mxu0 0
    %2327 = vmatpush1.bf16.msra.mxu0 0
    %2328 = vmatprep.mubr.bf16.mxu0 0
    %2329 = vmatmul.mubr.bf16.gmra.mrb[0].mxu0 %v2294
    %v2330 = vpop.f32.mrb[0].mxu0
    %v2331 = vadd.f32 0.0, %v2330
    %v2332 = vpop.f32.mrb[0].mxu0
    %v2333 = vpop.f32.mrb[0].mxu0
    %v2334 = vadd.f32 0.0, %v2333
    %v2335 = vpop.f32.mrb[0].mxu0
    %2336 = vdwg.mxu0
    %v2337 = vpack.c.bf16 %v2334, %v2331
    %v2339 = vsel %vm981, %v2337, 0
    %2341 = vmatprep.subr.bf16.mxu0 0
    %2342 = vmatpush1.bf16.msra.mxu0 %v1615
    %2343 = vmatprep.subr.bf16.mxu0 0
    %2344 = vmatpush1.bf16.msra.mxu0 0
    %2345 = vmatprep.subr.bf16.mxu0 0
    %2346 = vmatpush1.bf16.msra.mxu0 0
    %2347 = vmatprep.subr.bf16.mxu0 0
    %2348 = vmatpush1.bf16.msra.mxu0 0
    %2349 = vmatprep.subr.bf16.mxu0 0
    %2350 = vmatpush1.bf16.msra.mxu0 0
    %2351 = vmatprep.subr.bf16.mxu0 0
    %2352 = vmatpush1.bf16.msra.mxu0 0
    %2353 = vmatprep.subr.bf16.mxu0 0
    %2354 = vmatpush1.bf16.msra.mxu0 0
    %2355 = vmatprep.subr.bf16.mxu0 0
    %2356 = vmatpush1.bf16.msra.mxu0 0
    %2357 = vmatprep.subr.bf16.mxu0 0
    %2358 = vmatpush1.bf16.msra.mxu0 0
    %2359 = vmatprep.subr.bf16.mxu0 0
    %2360 = vmatpush1.bf16.msra.mxu0 0
    %2361 = vmatprep.subr.bf16.mxu0 0
    %2362 = vmatpush1.bf16.msra.mxu0 0
    %2363 = vmatprep.subr.bf16.mxu0 0
    %2364 = vmatpush1.bf16.msra.mxu0 0
    %2365 = vmatprep.subr.bf16.mxu0 0
    %2366 = vmatpush1.bf16.msra.mxu0 0
    %2367 = vmatprep.subr.bf16.mxu0 0
    %2368 = vmatpush1.bf16.msra.mxu0 0
    %2369 = vmatprep.subr.bf16.mxu0 0
    %2370 = vmatpush1.bf16.msra.mxu0 0
    %2371 = vmatprep.subr.bf16.mxu0 0
    %2372 = vmatpush1.bf16.msra.mxu0 0
    %2373 = vmatprep.mubr.bf16.mxu0 0
    %2374 = vmatmul.mubr.bf16.gmra.mrb[0].mxu0 %v2339
    %v2375 = vpop.f32.mrb[0].mxu0
    %v2376 = vadd.f32 0.0, %v2375
    %v2377 = vpop.f32.mrb[0].mxu0
    %v2378 = vpop.f32.mrb[0].mxu0
    %v2379 = vadd.f32 0.0, %v2378
    %v2380 = vpop.f32.mrb[0].mxu0
    %2381 = vdwg.mxu0
    %v2382 = vadd.f32 %v2214, %v2376
    %v2383 = vadd.f32 %v2215, %v2379
    %v2384 = vld [vmem:[%s9 + $0x3] sm:$0x1]
    %v2385 = vlaneseq
    %v2386 = vshrl.u32 %v2385, 7
    %v2387 = vsub.s32 0, %v2386
    %v2388 = vrot.slane %v2384, %v2387
    %v2389 = vadd.f32 %v2382, %v2388
    %v2390 = vadd.f32 %v2383, %v2388
    %v2391 = vmul.f32 %v2389, 0.25
    %v2392 = vmul.f32 %v2390, 0.25
    %v2393 = vadd.f32 %v1669, %v2391
    %v2394 = vadd.f32 %v1670, %v2392
    %v2395 = vpack.c.bf16 %v2390, %v2389
    %v2397 = vsel %vm67, %v2395, 0
    %2399 = vmatprep.subr.bf16.mxu0 0
    %2400 = vmatpush1.bf16.msra.mxu0 %v929
    %2401 = vmatprep.subr.bf16.mxu0 0
    %2402 = vmatpush1.bf16.msra.mxu0 %v930
    %2403 = vmatprep.subr.bf16.mxu0 0
    %2404 = vmatpush1.bf16.msra.mxu0 0
    %2405 = vmatprep.subr.bf16.mxu0 0
    %2406 = vmatpush1.bf16.msra.mxu0 0
    %2407 = vmatprep.subr.bf16.mxu0 0
    %2408 = vmatpush1.bf16.msra.mxu0 0
    %2409 = vmatprep.subr.bf16.mxu0 0
    %2410 = vmatpush1.bf16.msra.mxu0 0
    %2411 = vmatprep.subr.bf16.mxu0 0
    %2412 = vmatpush1.bf16.msra.mxu0 0
    %2413 = vmatprep.subr.bf16.mxu0 0
    %2414 = vmatpush1.bf16.msra.mxu0 0
    %2415 = vmatprep.subr.bf16.mxu0 0
    %2416 = vmatpush1.bf16.msra.mxu0 0
    %2417 = vmatprep.subr.bf16.mxu0 0
    %2418 = vmatpush1.bf16.msra.mxu0 0
    %2419 = vmatprep.subr.bf16.mxu0 0
    %2420 = vmatpush1.bf16.msra.mxu0 0
    %2421 = vmatprep.subr.bf16.mxu0 0
    %2422 = vmatpush1.bf16.msra.mxu0 0
    %2423 = vmatprep.subr.bf16.mxu0 0
    %2424 = vmatpush1.bf16.msra.mxu0 0
    %2425 = vmatprep.subr.bf16.mxu0 0
    %2426 = vmatpush1.bf16.msra.mxu0 0
    %2427 = vmatprep.subr.bf16.mxu0 0
    %2428 = vmatpush1.bf16.msra.mxu0 0
    %2429 = vmatprep.subr.bf16.mxu0 0
    %2430 = vmatpush1.bf16.msra.mxu0 0
    %2431 = vmatprep.mubr.bf16.mxu0 0
    %2432 = vmatmul.mubr.bf16.gmra.mrb[0].mxu0 %v2397
    %v2433 = vpop.f32.mrb[0].mxu0
    %v2434 = vadd.f32 %v919, %v2433
    %v2435 = vpop.f32.mrb[0].mxu0
    %v2436 = vpop.f32.mrb[0].mxu0
    %v2437 = vadd.f32 %v919, %v2436
    %v2438 = vpop.f32.mrb[0].mxu0
    %2439 = vdwg.mxu0
    %v2440 = vpack.c.bf16 %v2437, %v2434
    %2442 = vrot.lane.b32.xlu0 %v2440, 96
    %v2443 = vpop.permute.xlu0 %2442
    %v2445 = vsel %vm981, %v2440, 0
    %v2448 = vsel %vm981, %v2443, 0
    %2450 = vmatprep.subr.bf16.mxu0 0
    %2451 = vmatpush1.bf16.xpose.msra.mxu0 %v2448
    %2452 = vmatprep.subr.bf16.mxu0 0
    %2453 = vmatpush1.bf16.xpose.msra.mxu0 0
    %2454 = vmatprep.subr.bf16.mxu0 0
    %2455 = vmatpush1.bf16.xpose.msra.mxu0 0
    %2456 = vmatprep.subr.bf16.mxu0 0
    %2457 = vmatpush1.bf16.xpose.msra.mxu0 0
    %2458 = vmatprep.subr.bf16.mxu0 0
    %2459 = vmatpush1.bf16.xpose.msra.mxu0 0
    %2460 = vmatprep.subr.bf16.mxu0 0
    %2461 = vmatpush1.bf16.xpose.msra.mxu0 0
    %2462 = vmatprep.subr.bf16.mxu0 0
    %2463 = vmatpush1.bf16.xpose.msra.mxu0 0
    %2464 = vmatprep.subr.bf16.mxu0 0
    %2465 = vmatpush1.bf16.xpose.msra.mxu0 0
    %2466 = vmatprep.subr.bf16.mxu0 0
    %2467 = vmatpush1.bf16.xpose.msra.mxu0 0
    %2468 = vmatprep.subr.bf16.mxu0 0
    %2469 = vmatpush1.bf16.xpose.msra.mxu0 0
    %2470 = vmatprep.subr.bf16.mxu0 0
    %2471 = vmatpush1.bf16.xpose.msra.mxu0 0
    %2472 = vmatprep.subr.bf16.mxu0 0
    %2473 = vmatpush1.bf16.xpose.msra.mxu0 0
    %2474 = vmatprep.subr.bf16.mxu0 0
    %2475 = vmatpush1.bf16.xpose.msra.mxu0 0
    %2476 = vmatprep.subr.bf16.mxu0 0
    %2477 = vmatpush1.bf16.xpose.msra.mxu0 0
    %2478 = vmatprep.subr.bf16.mxu0 0
    %2479 = vmatpush1.bf16.xpose.msra.mxu0 0
    %2480 = vmatprep.subr.bf16.mxu0 0
    %2481 = vmatpush1.bf16.xpose.msra.mxu0 0
    %2482 = vmatprep.mubr.bf16.mxu0 0
    %2483 = vmatmul.mubr.bf16.gmra.mrb[0].mxu0 %v2445
    %v2484 = vpop.f32.mrb[0].mxu0
    %v2485 = vadd.f32 %v902, %v2484
    %v2486 = vpop.f32.mrb[0].mxu0
    %v2487 = vpop.f32.mrb[0].mxu0
    %v2488 = vadd.f32 %v903, %v2487
    %v2489 = vpop.f32.mrb[0].mxu0
    %2490 = vdwg.mxu0
    %v2491 = vsel %vm1029, %v2485, -inf
    %2492 = vmax.xlane.f32.xlu0 %v2491
    %v2493 = vpop.xlane.xlu0 %2492
    %v2494 = vsel %vm1029, %v2488, -inf
    %2495 = vmax.xlane.f32.xlu0 %v2494
    %v2496 = vpop.xlane.xlu0 %2495
    %v2497 = vsub.f32 %v2485, %v2493
    %v2498 = vsub.f32 %v2488, %v2496
    %v2499 = vmul.f32 %v2497, 1.442695
    %v2500 = vpow.pop %v2499
    %v2501 = vmul.f32 %v2498, 1.442695
    %v2502 = vpow.pop %v2501
    %v2503 = vsel %vm1029, %v2500, 0.0
    %2504 = vadd.xlane.f32.xlu0 %v2503
    %v2505 = vpop.xlane.xlu0 %2504
    %v2506 = vsel %vm1029, %v2502, 0.0
    %2507 = vadd.xlane.f32.xlu0 %v2506
    %v2508 = vpop.xlane.xlu0 %2507
    %v2509 = vrcp.pop %v2505
    %v2510 = vrcp.pop %v2508
    %v2511 = vmul.f32 %v2500, %v2509
    %v2512 = vmul.f32 %v2502, %v2510
    %v2513 = vpack.c.bf16 %v2512, %v2511
    %2514 = vrot.lane.b32.xlu0 %v2440, 64
    %v2515 = vpop.permute.xlu0 %2514
    %v2518 = vsel %vm1029, %v2513, 0
    %2520 = vmatprep.subr.bf16.mxu0 0
    %2521 = vmatpush1.bf16.msra.mxu0 %v2515
    %2522 = vmatprep.subr.bf16.mxu0 0
    %2523 = vmatpush1.bf16.msra.mxu0 0
    %2524 = vmatprep.subr.bf16.mxu0 0
    %2525 = vmatpush1.bf16.msra.mxu0 0
    %2526 = vmatprep.subr.bf16.mxu0 0
    %2527 = vmatpush1.bf16.msra.mxu0 0
    %2528 = vmatprep.subr.bf16.mxu0 0
    %2529 = vmatpush1.bf16.msra.mxu0 0
    %2530 = vmatprep.subr.bf16.mxu0 0
    %2531 = vmatpush1.bf16.msra.mxu0 0
    %2532 = vmatprep.subr.bf16.mxu0 0
    %2533 = vmatpush1.bf16.msra.mxu0 0
    %2534 = vmatprep.subr.bf16.mxu0 0
    %2535 = vmatpush1.bf16.msra.mxu0 0
    %2536 = vmatprep.subr.bf16.mxu0 0
    %2537 = vmatpush1.bf16.msra.mxu0 0
    %2538 = vmatprep.subr.bf16.mxu0 0
    %2539 = vmatpush1.bf16.msra.mxu0 0
    %2540 = vmatprep.subr.bf16.mxu0 0
    %2541 = vmatpush1.bf16.msra.mxu0 0
    %2542 = vmatprep.subr.bf16.mxu0 0
    %2543 = vmatpush1.bf16.msra.mxu0 0
    %2544 = vmatprep.subr.bf16.mxu0 0
    %2545 = vmatpush1.bf16.msra.mxu0 0
    %2546 = vmatprep.subr.bf16.mxu0 0
    %2547 = vmatpush1.bf16.msra.mxu0 0
    %2548 = vmatprep.subr.bf16.mxu0 0
    %2549 = vmatpush1.bf16.msra.mxu0 0
    %2550 = vmatprep.subr.bf16.mxu0 0
    %2551 = vmatpush1.bf16.msra.mxu0 0
    %2552 = vmatprep.mubr.bf16.mxu0 0
    %2553 = vmatmul.mubr.bf16.gmra.mrb[0].mxu0 %v2518
    %v2554 = vpop.f32.mrb[0].mxu0
    %v2555 = vadd.f32 0.0, %v2554
    %v2556 = vpop.f32.mrb[0].mxu0
    %v2557 = vpop.f32.mrb[0].mxu0
    %v2558 = vadd.f32 0.0, %v2557
    %v2559 = vpop.f32.mrb[0].mxu0
    %2560 = vdwg.mxu0
    %v2561 = vpack.c.bf16 %v2558, %v2555
    %2562 = vrot.lane.b32.xlu0 %v2440, 120
    %v2563 = vpop.permute.xlu0 %2562
    %2564 = vrot.lane.b32.xlu0 %v2440, 88
    %v2565 = vpop.permute.xlu0 %2564
    %v2567 = vsel %vm981, %v2563, 0
    %v2570 = vsel %vm981, %v2565, 0
    %2572 = vmatprep.subr.bf16.mxu0 0
    %2573 = vmatpush1.bf16.xpose.msra.mxu0 %v2570
    %2574 = vmatprep.subr.bf16.mxu0 0
    %2575 = vmatpush1.bf16.xpose.msra.mxu0 0
    %2576 = vmatprep.subr.bf16.mxu0 0
    %2577 = vmatpush1.bf16.xpose.msra.mxu0 0
    %2578 = vmatprep.subr.bf16.mxu0 0
    %2579 = vmatpush1.bf16.xpose.msra.mxu0 0
    %2580 = vmatprep.subr.bf16.mxu0 0
    %2581 = vmatpush1.bf16.xpose.msra.mxu0 0
    %2582 = vmatprep.subr.bf16.mxu0 0
    %2583 = vmatpush1.bf16.xpose.msra.mxu0 0
    %2584 = vmatprep.subr.bf16.mxu0 0
    %2585 = vmatpush1.bf16.xpose.msra.mxu0 0
    %2586 = vmatprep.subr.bf16.mxu0 0
    %2587 = vmatpush1.bf16.xpose.msra.mxu0 0
    %2588 = vmatprep.subr.bf16.mxu0 0
    %2589 = vmatpush1.bf16.xpose.msra.mxu0 0
    %2590 = vmatprep.subr.bf16.mxu0 0
    %2591 = vmatpush1.bf16.xpose.msra.mxu0 0
    %2592 = vmatprep.subr.bf16.mxu0 0
    %2593 = vmatpush1.bf16.xpose.msra.mxu0 0
    %2594 = vmatprep.subr.bf16.mxu0 0
    %2595 = vmatpush1.bf16.xpose.msra.mxu0 0
    %2596 = vmatprep.subr.bf16.mxu0 0
    %2597 = vmatpush1.bf16.xpose.msra.mxu0 0
    %2598 = vmatprep.subr.bf16.mxu0 0
    %2599 = vmatpush1.bf16.xpose.msra.mxu0 0
    %2600 = vmatprep.subr.bf16.mxu0 0
    %2601 = vmatpush1.bf16.xpose.msra.mxu0 0
    %2602 = vmatprep.subr.bf16.mxu0 0
    %2603 = vmatpush1.bf16.xpose.msra.mxu0 0
    %2604 = vmatprep.mubr.bf16.mxu0 0
    %2605 = vmatmul.mubr.bf16.gmra.mrb[0].mxu0 %v2567
    %v2606 = vpop.f32.mrb[0].mxu0
    %v2607 = vadd.f32 %v902, %v2606
    %v2608 = vpop.f32.mrb[0].mxu0
    %v2609 = vpop.f32.mrb[0].mxu0
    %v2610 = vadd.f32 %v903, %v2609
    %v2611 = vpop.f32.mrb[0].mxu0
    %2612 = vdwg.mxu0
    %v2613 = vsel %vm1029, %v2607, -inf
    %2614 = vmax.xlane.f32.xlu0 %v2613
    %v2615 = vpop.xlane.xlu0 %2614
    %v2616 = vsel %vm1029, %v2610, -inf
    %2617 = vmax.xlane.f32.xlu0 %v2616
    %v2618 = vpop.xlane.xlu0 %2617
    %v2619 = vsub.f32 %v2607, %v2615
    %v2620 = vsub.f32 %v2610, %v2618
    %v2621 = vmul.f32 %v2619, 1.442695
    %v2622 = vpow.pop %v2621
    %v2623 = vmul.f32 %v2620, 1.442695
    %v2624 = vpow.pop %v2623
    %v2625 = vsel %vm1029, %v2622, 0.0
    %2626 = vadd.xlane.f32.xlu0 %v2625
    %v2627 = vpop.xlane.xlu0 %2626
    %v2628 = vsel %vm1029, %v2624, 0.0
    %2629 = vadd.xlane.f32.xlu0 %v2628
    %v2630 = vpop.xlane.xlu0 %2629
    %v2631 = vrcp.pop %v2627
    %v2632 = vrcp.pop %v2630
    %v2633 = vmul.f32 %v2622, %v2631
    %v2634 = vmul.f32 %v2624, %v2632
    %v2635 = vpack.c.bf16 %v2634, %v2633
    %2636 = vrot.lane.b32.xlu0 %v2440, 56
    %v2637 = vpop.permute.xlu0 %2636
    %v2640 = vsel %vm1029, %v2635, 0
    %2642 = vmatprep.subr.bf16.mxu0 0
    %2643 = vmatpush1.bf16.msra.mxu0 %v2637
    %2644 = vmatprep.subr.bf16.mxu0 0
    %2645 = vmatpush1.bf16.msra.mxu0 0
    %2646 = vmatprep.subr.bf16.mxu0 0
    %2647 = vmatpush1.bf16.msra.mxu0 0
    %2648 = vmatprep.subr.bf16.mxu0 0
    %2649 = vmatpush1.bf16.msra.mxu0 0
    %2650 = vmatprep.subr.bf16.mxu0 0
    %2651 = vmatpush1.bf16.msra.mxu0 0
    %2652 = vmatprep.subr.bf16.mxu0 0
    %2653 = vmatpush1.bf16.msra.mxu0 0
    %2654 = vmatprep.subr.bf16.mxu0 0
    %2655 = vmatpush1.bf16.msra.mxu0 0
    %2656 = vmatprep.subr.bf16.mxu0 0
    %2657 = vmatpush1.bf16.msra.mxu0 0
    %2658 = vmatprep.subr.bf16.mxu0 0
    %2659 = vmatpush1.bf16.msra.mxu0 0
    %2660 = vmatprep.subr.bf16.mxu0 0
    %2661 = vmatpush1.bf16.msra.mxu0 0
    %2662 = vmatprep.subr.bf16.mxu0 0
    %2663 = vmatpush1.bf16.msra.mxu0 0
    %2664 = vmatprep.subr.bf16.mxu0 0
    %2665 = vmatpush1.bf16.msra.mxu0 0
    %2666 = vmatprep.subr.bf16.mxu0 0
    %2667 = vmatpush1.bf16.msra.mxu0 0
    %2668 = vmatprep.subr.bf16.mxu0 0
    %2669 = vmatpush1.bf16.msra.mxu0 0
    %2670 = vmatprep.subr.bf16.mxu0 0
    %2671 = vmatpush1.bf16.msra.mxu0 0
    %2672 = vmatprep.subr.bf16.mxu0 0
    %2673 = vmatpush1.bf16.msra.mxu0 0
    %2674 = vmatprep.mubr.bf16.mxu0 0
    %2675 = vmatmul.mubr.bf16.gmra.mrb[0].mxu0 %v2640
    %v2676 = vpop.f32.mrb[0].mxu0
    %v2677 = vadd.f32 0.0, %v2676
    %v2678 = vpop.f32.mrb[0].mxu0
    %v2679 = vpop.f32.mrb[0].mxu0
    %v2680 = vadd.f32 0.0, %v2679
    %v2681 = vpop.f32.mrb[0].mxu0
    %2682 = vdwg.mxu0
    %v2683 = vpack.c.bf16 %v2680, %v2677
    %v2685 = vsel %vm981, %v2683, 0
    %2687 = vmatprep.subr.bf16.mxu0 0
    %2688 = vmatpush1.bf16.msra.mxu0 %v1228
    %2689 = vmatprep.subr.bf16.mxu0 0
    %2690 = vmatpush1.bf16.msra.mxu0 0
    %2691 = vmatprep.subr.bf16.mxu0 0
    %2692 = vmatpush1.bf16.msra.mxu0 0
    %2693 = vmatprep.subr.bf16.mxu0 0
    %2694 = vmatpush1.bf16.msra.mxu0 0
    %2695 = vmatprep.subr.bf16.mxu0 0
    %2696 = vmatpush1.bf16.msra.mxu0 0
    %2697 = vmatprep.subr.bf16.mxu0 0
    %2698 = vmatpush1.bf16.msra.mxu0 0
    %2699 = vmatprep.subr.bf16.mxu0 0
    %2700 = vmatpush1.bf16.msra.mxu0 0
    %2701 = vmatprep.subr.bf16.mxu0 0
    %2702 = vmatpush1.bf16.msra.mxu0 0
    %2703 = vmatprep.subr.bf16.mxu0 0
    %2704 = vmatpush1.bf16.msra.mxu0 0
    %2705 = vmatprep.subr.bf16.mxu0 0
    %2706 = vmatpush1.bf16.msra.mxu0 0
    %2707 = vmatprep.subr.bf16.mxu0 0
    %2708 = vmatpush1.bf16.msra.mxu0 0
    %2709 = vmatprep.subr.bf16.mxu0 0
    %2710 = vmatpush1.bf16.msra.mxu0 0
    %2711 = vmatprep.subr.bf16.mxu0 0
    %2712 = vmatpush1.bf16.msra.mxu0 0
    %2713 = vmatprep.subr.bf16.mxu0 0
    %2714 = vmatpush1.bf16.msra.mxu0 0
    %2715 = vmatprep.subr.bf16.mxu0 0
    %2716 = vmatpush1.bf16.msra.mxu0 0
    %2717 = vmatprep.subr.bf16.mxu0 0
    %2718 = vmatpush1.bf16.msra.mxu0 0
    %2719 = vmatprep.mubr.bf16.mxu0 0
    %2720 = vmatmul.mubr.bf16.gmra.mrb[0].mxu0 %v2685
    %v2721 = vpop.f32.mrb[0].mxu0
    %v2722 = vadd.f32 0.0, %v2721
    %v2723 = vpop.f32.mrb[0].mxu0
    %v2724 = vpop.f32.mrb[0].mxu0
    %v2725 = vadd.f32 0.0, %v2724
    %v2726 = vpop.f32.mrb[0].mxu0
    %2727 = vdwg.mxu0
    %v2729 = vsel %vm981, %v2561, 0
    %2731 = vmatprep.subr.bf16.mxu0 0
    %2732 = vmatpush1.bf16.msra.mxu0 %v1275
    %2733 = vmatprep.subr.bf16.mxu0 0
    %2734 = vmatpush1.bf16.msra.mxu0 0
    %2735 = vmatprep.subr.bf16.mxu0 0
    %2736 = vmatpush1.bf16.msra.mxu0 0
    %2737 = vmatprep.subr.bf16.mxu0 0
    %2738 = vmatpush1.bf16.msra.mxu0 0
    %2739 = vmatprep.subr.bf16.mxu0 0
    %2740 = vmatpush1.bf16.msra.mxu0 0
    %2741 = vmatprep.subr.bf16.mxu0 0
    %2742 = vmatpush1.bf16.msra.mxu0 0
    %2743 = vmatprep.subr.bf16.mxu0 0
    %2744 = vmatpush1.bf16.msra.mxu0 0
    %2745 = vmatprep.subr.bf16.mxu0 0
    %2746 = vmatpush1.bf16.msra.mxu0 0
    %2747 = vmatprep.subr.bf16.mxu0 0
    %2748 = vmatpush1.bf16.msra.mxu0 0
    %2749 = vmatprep.subr.bf16.mxu0 0
    %2750 = vmatpush1.bf16.msra.mxu0 0
    %2751 = vmatprep.subr.bf16.mxu0 0
    %2752 = vmatpush1.bf16.msra.mxu0 0
    %2753 = vmatprep.subr.bf16.mxu0 0
    %2754 = vmatpush1.bf16.msra.mxu0 0
    %2755 = vmatprep.subr.bf16.mxu0 0
    %2756 = vmatpush1.bf16.msra.mxu0 0
    %2757 = vmatprep.subr.bf16.mxu0 0
    %2758 = vmatpush1.bf16.msra.mxu0 0
    %2759 = vmatprep.subr.bf16.mxu0 0
    %2760 = vmatpush1.bf16.msra.mxu0 0
    %2761 = vmatprep.subr.bf16.mxu0 0
    %2762 = vmatpush1.bf16.msra.mxu0 0
    %2763 = vmatprep.mubr.bf16.mxu0 0
    %2764 = vmatmul.mubr.bf16.gmra.mrb[0].mxu0 %v2729
    %v2765 = vpop.f32.mrb[0].mxu0
    %v2766 = vadd.f32 %v2722, %v2765
    %v2767 = vpop.f32.mrb[0].mxu0
    %v2768 = vpop.f32.mrb[0].mxu0
    %v2769 = vadd.f32 %v2725, %v2768
    %v2770 = vpop.f32.mrb[0].mxu0
    %2771 = vdwg.mxu0
    %2772 = vrot.lane.b32.xlu0 %v2440, 112
    %v2773 = vpop.permute.xlu0 %2772
    %2774 = vrot.lane.b32.xlu0 %v2440, 80
    %v2775 = vpop.permute.xlu0 %2774
    %v2777 = vsel %vm981, %v2773, 0
    %v2780 = vsel %vm981, %v2775, 0
    %2782 = vmatprep.subr.bf16.mxu0 0
    %2783 = vmatpush1.bf16.xpose.msra.mxu0 %v2780
    %2784 = vmatprep.subr.bf16.mxu0 0
    %2785 = vmatpush1.bf16.xpose.msra.mxu0 0
    %2786 = vmatprep.subr.bf16.mxu0 0
    %2787 = vmatpush1.bf16.xpose.msra.mxu0 0
    %2788 = vmatprep.subr.bf16.mxu0 0
    %2789 = vmatpush1.bf16.xpose.msra.mxu0 0
    %2790 = vmatprep.subr.bf16.mxu0 0
    %2791 = vmatpush1.bf16.xpose.msra.mxu0 0
    %2792 = vmatprep.subr.bf16.mxu0 0
    %2793 = vmatpush1.bf16.xpose.msra.mxu0 0
    %2794 = vmatprep.subr.bf16.mxu0 0
    %2795 = vmatpush1.bf16.xpose.msra.mxu0 0
    %2796 = vmatprep.subr.bf16.mxu0 0
    %2797 = vmatpush1.bf16.xpose.msra.mxu0 0
    %2798 = vmatprep.subr.bf16.mxu0 0
    %2799 = vmatpush1.bf16.xpose.msra.mxu0 0
    %2800 = vmatprep.subr.bf16.mxu0 0
    %2801 = vmatpush1.bf16.xpose.msra.mxu0 0
    %2802 = vmatprep.subr.bf16.mxu0 0
    %2803 = vmatpush1.bf16.xpose.msra.mxu0 0
    %2804 = vmatprep.subr.bf16.mxu0 0
    %2805 = vmatpush1.bf16.xpose.msra.mxu0 0
    %2806 = vmatprep.subr.bf16.mxu0 0
    %2807 = vmatpush1.bf16.xpose.msra.mxu0 0
    %2808 = vmatprep.subr.bf16.mxu0 0
    %2809 = vmatpush1.bf16.xpose.msra.mxu0 0
    %2810 = vmatprep.subr.bf16.mxu0 0
    %2811 = vmatpush1.bf16.xpose.msra.mxu0 0
    %2812 = vmatprep.subr.bf16.mxu0 0
    %2813 = vmatpush1.bf16.xpose.msra.mxu0 0
    %2814 = vmatprep.mubr.bf16.mxu0 0
    %2815 = vmatmul.mubr.bf16.gmra.mrb[0].mxu0 %v2777
    %v2816 = vpop.f32.mrb[0].mxu0
    %v2817 = vadd.f32 %v902, %v2816
    %v2818 = vpop.f32.mrb[0].mxu0
    %v2819 = vpop.f32.mrb[0].mxu0
    %v2820 = vadd.f32 %v903, %v2819
    %v2821 = vpop.f32.mrb[0].mxu0
    %2822 = vdwg.mxu0
    %v2823 = vsel %vm1029, %v2817, -inf
    %2824 = vmax.xlane.f32.xlu0 %v2823
    %v2825 = vpop.xlane.xlu0 %2824
    %v2826 = vsel %vm1029, %v2820, -inf
    %2827 = vmax.xlane.f32.xlu0 %v2826
    %v2828 = vpop.xlane.xlu0 %2827
    %v2829 = vsub.f32 %v2817, %v2825
    %v2830 = vsub.f32 %v2820, %v2828
    %v2831 = vmul.f32 %v2829, 1.442695
    %v2832 = vpow.pop %v2831
    %v2833 = vmul.f32 %v2830, 1.442695
    %v2834 = vpow.pop %v2833
    %v2835 = vsel %vm1029, %v2832, 0.0
    %2836 = vadd.xlane.f32.xlu0 %v2835
    %v2837 = vpop.xlane.xlu0 %2836
    %v2838 = vsel %vm1029, %v2834, 0.0
    %2839 = vadd.xlane.f32.xlu0 %v2838
    %v2840 = vpop.xlane.xlu0 %2839
    %v2841 = vrcp.pop %v2837
    %v2842 = vrcp.pop %v2840
    %v2843 = vmul.f32 %v2832, %v2841
    %v2844 = vmul.f32 %v2834, %v2842
    %v2845 = vpack.c.bf16 %v2844, %v2843
    %2846 = vrot.lane.b32.xlu0 %v2440, 48
    %v2847 = vpop.permute.xlu0 %2846
    %v2850 = vsel %vm1029, %v2845, 0
    %2852 = vmatprep.subr.bf16.mxu0 0
    %2853 = vmatpush1.bf16.msra.mxu0 %v2847
    %2854 = vmatprep.subr.bf16.mxu0 0
    %2855 = vmatpush1.bf16.msra.mxu0 0
    %2856 = vmatprep.subr.bf16.mxu0 0
    %2857 = vmatpush1.bf16.msra.mxu0 0
    %2858 = vmatprep.subr.bf16.mxu0 0
    %2859 = vmatpush1.bf16.msra.mxu0 0
    %2860 = vmatprep.subr.bf16.mxu0 0
    %2861 = vmatpush1.bf16.msra.mxu0 0
    %2862 = vmatprep.subr.bf16.mxu0 0
    %2863 = vmatpush1.bf16.msra.mxu0 0
    %2864 = vmatprep.subr.bf16.mxu0 0
    %2865 = vmatpush1.bf16.msra.mxu0 0
    %2866 = vmatprep.subr.bf16.mxu0 0
    %2867 = vmatpush1.bf16.msra.mxu0 0
    %2868 = vmatprep.subr.bf16.mxu0 0
    %2869 = vmatpush1.bf16.msra.mxu0 0
    %2870 = vmatprep.subr.bf16.mxu0 0
    %2871 = vmatpush1.bf16.msra.mxu0 0
    %2872 = vmatprep.subr.bf16.mxu0 0
    %2873 = vmatpush1.bf16.msra.mxu0 0
    %2874 = vmatprep.subr.bf16.mxu0 0
    %2875 = vmatpush1.bf16.msra.mxu0 0
    %2876 = vmatprep.subr.bf16.mxu0 0
    %2877 = vmatpush1.bf16.msra.mxu0 0
    %2878 = vmatprep.subr.bf16.mxu0 0
    %2879 = vmatpush1.bf16.msra.mxu0 0
    %2880 = vmatprep.subr.bf16.mxu0 0
    %2881 = vmatpush1.bf16.msra.mxu0 0
    %2882 = vmatprep.subr.bf16.mxu0 0
    %2883 = vmatpush1.bf16.msra.mxu0 0
    %2884 = vmatprep.mubr.bf16.mxu0 0
    %2885 = vmatmul.mubr.bf16.gmra.mrb[0].mxu0 %v2850
    %v2886 = vpop.f32.mrb[0].mxu0
    %v2887 = vadd.f32 0.0, %v2886
    %v2888 = vpop.f32.mrb[0].mxu0
    %v2889 = vpop.f32.mrb[0].mxu0
    %v2890 = vadd.f32 0.0, %v2889
    %v2891 = vpop.f32.mrb[0].mxu0
    %2892 = vdwg.mxu0
    %v2893 = vpack.c.bf16 %v2890, %v2887
    %v2895 = vsel %vm981, %v2893, 0
    %2897 = vmatprep.subr.bf16.mxu0 0
    %2898 = vmatpush1.bf16.msra.mxu0 %v1444
    %2899 = vmatprep.subr.bf16.mxu0 0
    %2900 = vmatpush1.bf16.msra.mxu0 0
    %2901 = vmatprep.subr.bf16.mxu0 0
    %2902 = vmatpush1.bf16.msra.mxu0 0
    %2903 = vmatprep.subr.bf16.mxu0 0
    %2904 = vmatpush1.bf16.msra.mxu0 0
    %2905 = vmatprep.subr.bf16.mxu0 0
    %2906 = vmatpush1.bf16.msra.mxu0 0
    %2907 = vmatprep.subr.bf16.mxu0 0
    %2908 = vmatpush1.bf16.msra.mxu0 0
    %2909 = vmatprep.subr.bf16.mxu0 0
    %2910 = vmatpush1.bf16.msra.mxu0 0
    %2911 = vmatprep.subr.bf16.mxu0 0
    %2912 = vmatpush1.bf16.msra.mxu0 0
    %2913 = vmatprep.subr.bf16.mxu0 0
    %2914 = vmatpush1.bf16.msra.mxu0 0
    %2915 = vmatprep.subr.bf16.mxu0 0
    %2916 = vmatpush1.bf16.msra.mxu0 0
    %2917 = vmatprep.subr.bf16.mxu0 0
    %2918 = vmatpush1.bf16.msra.mxu0 0
    %2919 = vmatprep.subr.bf16.mxu0 0
    %2920 = vmatpush1.bf16.msra.mxu0 0
    %2921 = vmatprep.subr.bf16.mxu0 0
    %2922 = vmatpush1.bf16.msra.mxu0 0
    %2923 = vmatprep.subr.bf16.mxu0 0
    %2924 = vmatpush1.bf16.msra.mxu0 0
    %2925 = vmatprep.subr.bf16.mxu0 0
    %2926 = vmatpush1.bf16.msra.mxu0 0
    %2927 = vmatprep.subr.bf16.mxu0 0
    %2928 = vmatpush1.bf16.msra.mxu0 0
    %2929 = vmatprep.mubr.bf16.mxu0 0
    %2930 = vmatmul.mubr.bf16.gmra.mrb[0].mxu0 %v2895
    %v2931 = vpop.f32.mrb[0].mxu0
    %v2932 = vadd.f32 0.0, %v2931
    %v2933 = vpop.f32.mrb[0].mxu0
    %v2934 = vpop.f32.mrb[0].mxu0
    %v2935 = vadd.f32 0.0, %v2934
    %v2936 = vpop.f32.mrb[0].mxu0
    %2937 = vdwg.mxu0
    %v2938 = vadd.f32 %v2766, %v2932
    %v2939 = vadd.f32 %v2769, %v2935
    %2940 = vrot.lane.b32.xlu0 %v2440, 104
    %v2941 = vpop.permute.xlu0 %2940
    %2942 = vrot.lane.b32.xlu0 %v2440, 72
    %v2943 = vpop.permute.xlu0 %2942
    %v2945 = vsel %vm981, %v2941, 0
    %v2948 = vsel %vm981, %v2943, 0
    %2950 = vmatprep.subr.bf16.mxu0 0
    %2951 = vmatpush1.bf16.xpose.msra.mxu0 %v2948
    %2952 = vmatprep.subr.bf16.mxu0 0
    %2953 = vmatpush1.bf16.xpose.msra.mxu0 0
    %2954 = vmatprep.subr.bf16.mxu0 0
    %2955 = vmatpush1.bf16.xpose.msra.mxu0 0
    %2956 = vmatprep.subr.bf16.mxu0 0
    %2957 = vmatpush1.bf16.xpose.msra.mxu0 0
    %2958 = vmatprep.subr.bf16.mxu0 0
    %2959 = vmatpush1.bf16.xpose.msra.mxu0 0
    %2960 = vmatprep.subr.bf16.mxu0 0
    %2961 = vmatpush1.bf16.xpose.msra.mxu0 0
    %2962 = vmatprep.subr.bf16.mxu0 0
    %2963 = vmatpush1.bf16.xpose.msra.mxu0 0
    %2964 = vmatprep.subr.bf16.mxu0 0
    %2965 = vmatpush1.bf16.xpose.msra.mxu0 0
    %2966 = vmatprep.subr.bf16.mxu0 0
    %2967 = vmatpush1.bf16.xpose.msra.mxu0 0
    %2968 = vmatprep.subr.bf16.mxu0 0
    %2969 = vmatpush1.bf16.xpose.msra.mxu0 0
    %2970 = vmatprep.subr.bf16.mxu0 0
    %2971 = vmatpush1.bf16.xpose.msra.mxu0 0
    %2972 = vmatprep.subr.bf16.mxu0 0
    %2973 = vmatpush1.bf16.xpose.msra.mxu0 0
    %2974 = vmatprep.subr.bf16.mxu0 0
    %2975 = vmatpush1.bf16.xpose.msra.mxu0 0
    %2976 = vmatprep.subr.bf16.mxu0 0
    %2977 = vmatpush1.bf16.xpose.msra.mxu0 0
    %2978 = vmatprep.subr.bf16.mxu0 0
    %2979 = vmatpush1.bf16.xpose.msra.mxu0 0
    %2980 = vmatprep.subr.bf16.mxu0 0
    %2981 = vmatpush1.bf16.xpose.msra.mxu0 0
    %2982 = vmatprep.mubr.bf16.mxu0 0
    %2983 = vmatmul.mubr.bf16.gmra.mrb[0].mxu0 %v2945
    %v2984 = vpop.f32.mrb[0].mxu0
    %v2985 = vadd.f32 %v902, %v2984
    %v2986 = vpop.f32.mrb[0].mxu0
    %v2987 = vpop.f32.mrb[0].mxu0
    %v2988 = vadd.f32 %v903, %v2987
    %v2989 = vpop.f32.mrb[0].mxu0
    %2990 = vdwg.mxu0
    %v2991 = vsel %vm1029, %v2985, -inf
    %2992 = vmax.xlane.f32.xlu0 %v2991
    %v2993 = vpop.xlane.xlu0 %2992
    %v2994 = vsel %vm1029, %v2988, -inf
    %2995 = vmax.xlane.f32.xlu0 %v2994
    %v2996 = vpop.xlane.xlu0 %2995
    %v2997 = vsub.f32 %v2985, %v2993
    %v2998 = vsub.f32 %v2988, %v2996
    %v2999 = vmul.f32 %v2997, 1.442695
    %v3000 = vpow.pop %v2999
    %v3001 = vmul.f32 %v2998, 1.442695
    %v3002 = vpow.pop %v3001
    %v3003 = vsel %vm1029, %v3000, 0.0
    %3004 = vadd.xlane.f32.xlu0 %v3003
    %v3005 = vpop.xlane.xlu0 %3004
    %v3006 = vsel %vm1029, %v3002, 0.0
    %3007 = vadd.xlane.f32.xlu0 %v3006
    %v3008 = vpop.xlane.xlu0 %3007
    %v3009 = vrcp.pop %v3005
    %v3010 = vrcp.pop %v3008
    %v3011 = vmul.f32 %v3000, %v3009
    %v3012 = vmul.f32 %v3002, %v3010
    %v3013 = vpack.c.bf16 %v3012, %v3011
    %3014 = vrot.lane.b32.xlu0 %v2440, 40
    %v3015 = vpop.permute.xlu0 %3014
    %v3018 = vsel %vm1029, %v3013, 0
    %3020 = vmatprep.subr.bf16.mxu0 0
    %3021 = vmatpush1.bf16.msra.mxu0 %v3015
    %3022 = vmatprep.subr.bf16.mxu0 0
    %3023 = vmatpush1.bf16.msra.mxu0 0
    %3024 = vmatprep.subr.bf16.mxu0 0
    %3025 = vmatpush1.bf16.msra.mxu0 0
    %3026 = vmatprep.subr.bf16.mxu0 0
    %3027 = vmatpush1.bf16.msra.mxu0 0
    %3028 = vmatprep.subr.bf16.mxu0 0
    %3029 = vmatpush1.bf16.msra.mxu0 0
    %3030 = vmatprep.subr.bf16.mxu0 0
    %3031 = vmatpush1.bf16.msra.mxu0 0
    %3032 = vmatprep.subr.bf16.mxu0 0
    %3033 = vmatpush1.bf16.msra.mxu0 0
    %3034 = vmatprep.subr.bf16.mxu0 0
    %3035 = vmatpush1.bf16.msra.mxu0 0
    %3036 = vmatprep.subr.bf16.mxu0 0
    %3037 = vmatpush1.bf16.msra.mxu0 0
    %3038 = vmatprep.subr.bf16.mxu0 0
    %3039 = vmatpush1.bf16.msra.mxu0 0
    %3040 = vmatprep.subr.bf16.mxu0 0
    %3041 = vmatpush1.bf16.msra.mxu0 0
    %3042 = vmatprep.subr.bf16.mxu0 0
    %3043 = vmatpush1.bf16.msra.mxu0 0
    %3044 = vmatprep.subr.bf16.mxu0 0
    %3045 = vmatpush1.bf16.msra.mxu0 0
    %3046 = vmatprep.subr.bf16.mxu0 0
    %3047 = vmatpush1.bf16.msra.mxu0 0
    %3048 = vmatprep.subr.bf16.mxu0 0
    %3049 = vmatpush1.bf16.msra.mxu0 0
    %3050 = vmatprep.subr.bf16.mxu0 0
    %3051 = vmatpush1.bf16.msra.mxu0 0
    %3052 = vmatprep.mubr.bf16.mxu0 0
    %3053 = vmatmul.mubr.bf16.gmra.mrb[0].mxu0 %v3018
    %v3054 = vpop.f32.mrb[0].mxu0
    %v3055 = vadd.f32 0.0, %v3054
    %v3056 = vpop.f32.mrb[0].mxu0
    %v3057 = vpop.f32.mrb[0].mxu0
    %v3058 = vadd.f32 0.0, %v3057
    %v3059 = vpop.f32.mrb[0].mxu0
    %3060 = vdwg.mxu0
    %v3061 = vpack.c.bf16 %v3058, %v3055
    %v3063 = vsel %vm981, %v3061, 0
    %3065 = vmatprep.subr.bf16.mxu0 0
    %3066 = vmatpush1.bf16.msra.mxu0 %v1615
    %3067 = vmatprep.subr.bf16.mxu0 0
    %3068 = vmatpush1.bf16.msra.mxu0 0
    %3069 = vmatprep.subr.bf16.mxu0 0
    %3070 = vmatpush1.bf16.msra.mxu0 0
    %3071 = vmatprep.subr.bf16.mxu0 0
    %3072 = vmatpush1.bf16.msra.mxu0 0
    %3073 = vmatprep.subr.bf16.mxu0 0
    %3074 = vmatpush1.bf16.msra.mxu0 0
    %3075 = vmatprep.subr.bf16.mxu0 0
    %3076 = vmatpush1.bf16.msra.mxu0 0
    %3077 = vmatprep.subr.bf16.mxu0 0
    %3078 = vmatpush1.bf16.msra.mxu0 0
    %3079 = vmatprep.subr.bf16.mxu0 0
    %3080 = vmatpush1.bf16.msra.mxu0 0
    %3081 = vmatprep.subr.bf16.mxu0 0
    %3082 = vmatpush1.bf16.msra.mxu0 0
    %3083 = vmatprep.subr.bf16.mxu0 0
    %3084 = vmatpush1.bf16.msra.mxu0 0
    %3085 = vmatprep.subr.bf16.mxu0 0
    %3086 = vmatpush1.bf16.msra.mxu0 0
    %3087 = vmatprep.subr.bf16.mxu0 0
    %3088 = vmatpush1.bf16.msra.mxu0 0
    %3089 = vmatprep.subr.bf16.mxu0 0
    %3090 = vmatpush1.bf16.msra.mxu0 0
    %3091 = vmatprep.subr.bf16.mxu0 0
    %3092 = vmatpush1.bf16.msra.mxu0 0
    %3093 = vmatprep.subr.bf16.mxu0 0
    %3094 = vmatpush1.bf16.msra.mxu0 0
    %3095 = vmatprep.subr.bf16.mxu0 0
    %3096 = vmatpush1.bf16.msra.mxu0 0
    %3097 = vmatprep.mubr.bf16.mxu0 0
    %3098 = vmatmul.mubr.bf16.gmra.mrb[0].mxu0 %v3063
    %v3099 = vpop.f32.mrb[0].mxu0
    %v3100 = vadd.f32 0.0, %v3099
    %v3101 = vpop.f32.mrb[0].mxu0
    %v3102 = vpop.f32.mrb[0].mxu0
    %v3103 = vadd.f32 0.0, %v3102
    %v3104 = vpop.f32.mrb[0].mxu0
    %3105 = vdwg.mxu0
    %v3106 = vadd.f32 %v2938, %v3100
    %v3107 = vadd.f32 %v2939, %v3103
    %v3108 = vld [vmem:[%s9 + $0x4] sm:$0x1]
    %v3109 = vlaneseq
    %v3110 = vshrl.u32 %v3109, 7
    %v3111 = vsub.s32 0, %v3110
    %v3112 = vrot.slane %v3108, %v3111
    %v3113 = vadd.f32 %v3106, %v3112
    %v3114 = vadd.f32 %v3107, %v3112
    %v3115 = vmul.f32 %v3113, 0.125
    %v3116 = vmul.f32 %v3114, 0.125
    %v3117 = vadd.f32 %v2393, %v3115
    %v3118 = vadd.f32 %v2394, %v3116
    %s3119 = scalar_lea.vmem %s1, 16
    %v3120 = vld [vmem:[%s3119] sm:$0xf]
    %v3121 = vld [vmem:[%s3119 + $0x4] sm:$0xf]
    %v3122 = vld [vmem:[%s3119 + $0x8] sm:$0xf]
    %v3123 = vld [vmem:[%s3119 + $0xc] sm:$0xf]
    %v3124 = vpack.c.bf16 %v3118, %v3117
    %v3129 = vunpack.c.l.b16 %v3120
    %v3130 = vunpack.c.l.b16 %v3121
    %v3131 = vunpack.c.l.b16 %v3122
    %v3132 = vunpack.c.l.b16 %v3123
    %v3133 = vpack.c.b16 %v3130, %v3129
    %v3134 = vpack.c.b16 %v3132, %v3131
    %v3138 = vsel %vm67, %v3124, 0
    %3140 = vmatprep.subr.bf16.mxu0 0
    %3141 = vmatpush1.bf16.msra.mxu0 %v3133
    %3142 = vmatprep.subr.bf16.mxu0 0
    %3143 = vmatpush1.bf16.msra.mxu0 %v3134
    %3144 = vmatprep.subr.bf16.mxu0 0
    %3145 = vmatpush1.bf16.msra.mxu0 0
    %3146 = vmatprep.subr.bf16.mxu0 0
    %3147 = vmatpush1.bf16.msra.mxu0 0
    %3148 = vmatprep.subr.bf16.mxu0 0
    %3149 = vmatpush1.bf16.msra.mxu0 0
    %3150 = vmatprep.subr.bf16.mxu0 0
    %3151 = vmatpush1.bf16.msra.mxu0 0
    %3152 = vmatprep.subr.bf16.mxu0 0
    %3153 = vmatpush1.bf16.msra.mxu0 0
    %3154 = vmatprep.subr.bf16.mxu0 0
    %3155 = vmatpush1.bf16.msra.mxu0 0
    %3156 = vmatprep.subr.bf16.mxu0 0
    %3157 = vmatpush1.bf16.msra.mxu0 0
    %3158 = vmatprep.subr.bf16.mxu0 0
    %3159 = vmatpush1.bf16.msra.mxu0 0
    %3160 = vmatprep.subr.bf16.mxu0 0
    %3161 = vmatpush1.bf16.msra.mxu0 0
    %3162 = vmatprep.subr.bf16.mxu0 0
    %3163 = vmatpush1.bf16.msra.mxu0 0
    %3164 = vmatprep.subr.bf16.mxu0 0
    %3165 = vmatpush1.bf16.msra.mxu0 0
    %3166 = vmatprep.subr.bf16.mxu0 0
    %3167 = vmatpush1.bf16.msra.mxu0 0
    %3168 = vmatprep.subr.bf16.mxu0 0
    %3169 = vmatpush1.bf16.msra.mxu0 0
    %3170 = vmatprep.subr.bf16.mxu0 0
    %3171 = vmatpush1.bf16.msra.mxu0 0
    %3172 = vmatprep.mubr.bf16.mxu0 0
    %3173 = vmatmul.mubr.bf16.gmra.mrb[0].mxu0 %v3138
    %v3174 = vpop.f32.mrb[0].mxu0
    %v3175 = vadd.f32 0.0, %v3174
    %v3176 = vpop.f32.mrb[0].mxu0
    %v3177 = vpop.f32.mrb[0].mxu0
    %v3178 = vadd.f32 0.0, %v3177
    %v3179 = vpop.f32.mrb[0].mxu0
    %3180 = vdwg.mxu0
    %3183 = vrot.lane.b32.xlu0 %v3175, 96
    %v3184 = vpop.permute.xlu0 %3183
    %3185 = vrot.lane.b32.xlu0 %v3178, 96
    %v3186 = vpop.permute.xlu0 %3185
    %v3189 = vadd.f32 %v108, %v3184
    %v3190 = vadd.f32 %v112, %v3186
    %v3191 = vld [vmem:[%s9 + $0x5] sm:$0x1]
    %v3192 = vlaneseq
    %v3193 = vshrl.u32 %v3192, 7
    %v3194 = vsub.s32 0, %v3193
    %v3195 = vrot.slane %v3191, %v3194
    %3197 = vrot.lane.b32.xlu0 %v3195, 96
    %v3198 = vpop.permute.xlu0 %3197
    %v3200 = vadd.f32 %v3189, %v3198
    %v3201 = vadd.f32 %v3190, %v3198
    %v3202 = vxor.u32 %v3200, 2147483648
    %v3203 = vxor.u32 %v3201, 2147483648
    %v3204 = vmul.f32 %v3202, 1.442695
    %v3205 = vpow.pop %v3204
    %v3206 = vmul.f32 %v3203, 1.442695
    %v3207 = vpow.pop %v3206
    %v3208 = vadd.f32 %v3205, 1.0
    %v3209 = vadd.f32 %v3207, 1.0
    %v3210 = vrcp.pop %v3208
    %v3211 = vmul.f32 1.0, %v3210
    %v3212 = vrcp.pop %v3209
    %v3213 = vmul.f32 1.0, %v3212
    %v3214 = vsub.f32 %v3117, %v40
    %v3215 = vsub.f32 %v3118, %v41
    %3218 = vrot.lane.b32.xlu0 %v3214, 96
    %v3219 = vpop.permute.xlu0 %3218
    %3220 = vrot.lane.b32.xlu0 %v3215, 96
    %v3221 = vpop.permute.xlu0 %3220
    %v3224 = vmul.f32 %v3211, %v3219
    %v3225 = vmul.f32 %v3213, %v3221
    %3228 = vrot.lane.b32.xlu0 %v3224, 32
    %v3229 = vpop.permute.xlu0 %3228
    %3230 = vrot.lane.b32.xlu0 %v3225, 32
    %v3231 = vpop.permute.xlu0 %3230
    %v3234 = vadd.f32 %v40, %v3229
    %v3235 = vadd.f32 %v41, %v3231
    %v3236 = vsel %vm67, %v3234, 0.0
    %3237 = vadd.xlane.f32.xlu0 %v3236
    %v3238 = vpop.xlane.xlu0 %3237
    %v3239 = vsel %vm67, %v3235, 0.0
    %3240 = vadd.xlane.f32.xlu0 %v3239
    %v3241 = vpop.xlane.xlu0 %3240
    %v3242 = vrcp.pop 32.0
    %v3243 = vmul.f32 %v3238, %v3242
    %v3244 = vmul.f32 %v3241, %v3242
    %v3245 = vsub.f32 %v3234, %v3243
    %v3246 = vsub.f32 %v3235, %v3244
    %v3247 = vmul.f32 %v3245, %v3245
    %v3248 = vmul.f32 %v3246, %v3246
    %v3249 = vsel %vm67, %v3247, 0.0
    %3250 = vadd.xlane.f32.xlu0 %v3249
    %v3251 = vpop.xlane.xlu0 %3250
    %v3252 = vsel %vm67, %v3248, 0.0
    %3253 = vadd.xlane.f32.xlu0 %v3252
    %v3254 = vpop.xlane.xlu0 %3253
    %v3255 = vmul.f32 %v3251, %v3242
    %v3256 = vmul.f32 %v3254, %v3242
    %v3257 = vadd.f32 %v3255, 1e-05
    %v3258 = vadd.f32 %v3256, 1e-05
    %v3259 = vrsqrt.pop %v3257
    %v3260 = vrsqrt.pop %v3258
    %v3261 = vmul.f32 %v3245, %v3259
    %v3262 = vmul.f32 %v3246, %v3260
    %v3263 = vld [vmem:[%s9 + $0x6] sm:$0x1]
    %v3264 = vlaneseq
    %v3265 = vshrl.u32 %v3264, 7
    %v3266 = vsub.s32 0, %v3265
    %v3267 = vrot.slane %v3263, %v3266
    %v3268 = vmul.f32 %v3261, %v3267
    %v3269 = vmul.f32 %v3262, %v3267
    %v3270 = vld [vmem:[%s9 + $0x7] sm:$0x1]
    %v3271 = vlaneseq
    %v3272 = vshrl.u32 %v3271, 7
    %v3273 = vsub.s32 0, %v3272
    %v3274 = vrot.slane %v3270, %v3273
    %v3275 = vadd.f32 %v3268, %v3274
    %v3276 = vadd.f32 %v3269, %v3274
    %s3277 = scalar_lea.vmem %s1, 32
    %v3278 = vld [vmem:[%s3277] sm:$0xf]
    %v3279 = vld [vmem:[%s3277 + $0x4] sm:$0xf]
    %v3280 = vld [vmem:[%s3277 + $0x8] sm:$0xf]
    %v3281 = vld [vmem:[%s3277 + $0xc] sm:$0xf]
    %v3282 = vpack.c.bf16 %v3276, %v3275
    %v3283 = vld [vmem:[%s9 + $0x8] sm:$0x1]
    %v3284 = vlaneseq
    %v3285 = vshrl.u32 %v3284, 7
    %v3286 = vsub.s32 0, %v3285
    %v3287 = vrot.slane %v3283, %v3286
    %v3292 = vunpack.c.l.b16 %v3278
    %v3293 = vunpack.c.l.b16 %v3279
    %v3294 = vunpack.c.l.b16 %v3280
    %v3295 = vunpack.c.l.b16 %v3281
    %v3296 = vpack.c.b16 %v3293, %v3292
    %v3297 = vpack.c.b16 %v3295, %v3294
    %v3301 = vsel %vm67, %v3282, 0
    %3303 = vmatprep.subr.bf16.mxu0 0
    %3304 = vmatpush1.bf16.msra.mxu0 %v3296
    %3305 = vmatprep.subr.bf16.mxu0 0
    %3306 = vmatpush1.bf16.msra.mxu0 %v3297
    %3307 = vmatprep.subr.bf16.mxu0 0
    %3308 = vmatpush1.bf16.msra.mxu0 0
    %3309 = vmatprep.subr.bf16.mxu0 0
    %3310 = vmatpush1.bf16.msra.mxu0 0
    %3311 = vmatprep.subr.bf16.mxu0 0
    %3312 = vmatpush1.bf16.msra.mxu0 0
    %3313 = vmatprep.subr.bf16.mxu0 0
    %3314 = vmatpush1.bf16.msra.mxu0 0
    %3315 = vmatprep.subr.bf16.mxu0 0
    %3316 = vmatpush1.bf16.msra.mxu0 0
    %3317 = vmatprep.subr.bf16.mxu0 0
    %3318 = vmatpush1.bf16.msra.mxu0 0
    %3319 = vmatprep.subr.bf16.mxu0 0
    %3320 = vmatpush1.bf16.msra.mxu0 0
    %3321 = vmatprep.subr.bf16.mxu0 0
    %3322 = vmatpush1.bf16.msra.mxu0 0
    %3323 = vmatprep.subr.bf16.mxu0 0
    %3324 = vmatpush1.bf16.msra.mxu0 0
    %3325 = vmatprep.subr.bf16.mxu0 0
    %3326 = vmatpush1.bf16.msra.mxu0 0
    %3327 = vmatprep.subr.bf16.mxu0 0
    %3328 = vmatpush1.bf16.msra.mxu0 0
    %3329 = vmatprep.subr.bf16.mxu0 0
    %3330 = vmatpush1.bf16.msra.mxu0 0
    %3331 = vmatprep.subr.bf16.mxu0 0
    %3332 = vmatpush1.bf16.msra.mxu0 0
    %3333 = vmatprep.subr.bf16.mxu0 0
    %3334 = vmatpush1.bf16.msra.mxu0 0
    %3335 = vmatprep.mubr.bf16.mxu0 0
    %3336 = vmatmul.mubr.bf16.gmra.mrb[0].mxu0 %v3301
    %v3337 = vpop.f32.mrb[0].mxu0
    %v3338 = vadd.f32 %v3287, %v3337
    %v3339 = vpop.f32.mrb[0].mxu0
    %v3340 = vpop.f32.mrb[0].mxu0
    %v3341 = vadd.f32 %v3287, %v3340
    %v3342 = vpop.f32.mrb[0].mxu0
    %3343 = vdwg.mxu0
    %3344 = vst.msk [vmem:[#allocation2] sm:$0xff] %vm67, %v3338
    %3345 = vst.msk [vmem:[#allocation2 + $0x8] sm:$0xff] %vm67, %v3341
    // Predicated region
    $region46: #{tpu_custom_call.1} parent=1 // pred_check
      _
    $region47: #{tpu_custom_call.1} parent=1 // pred_check_branch
      %3347 = sbr.rel (0) target = $region49
    $region48: #{tpu_custom_call.1} parent=1 // pred_region
      %s3349 = ssub.s32 256, 256
      %3350 = vsyncadd [#allocation3], %s3349
      %s3351 = sshll.u32 [#allocation2], 4
      %s3352 = int_to_ptr.vmem [resolvable:$true] %s3351
      %3357 = dma.vmem_to_hbm [thread:$0]  %s3352, 256, %s11, [#allocation3], 128, 128, 8
    $region49: #{tpu_custom_call.1} parent=1 // pred_fallthru
      _
    // Predicated region
    $region50: #{tpu_custom_call.1} parent=1 // pred_check
      _
    $region51: #{tpu_custom_call.1} parent=1 // pred_check_branch
      %3359 = sbr.rel (0) target = $region53
    $region52: #{tpu_custom_call.1} parent=1 // pred_region
      %3360 = dma.done [#allocation3], 256
    $region53: #{tpu_custom_call.1} parent=1 // pred_fallthru
      _
    %3361 = vsyncpa [#allocation3], 1

</llo_original>
